<compile_context>
chip_gen: v7x
topology: tpu7x:2x2x1
jax: 0.10.0
libtpu: 0.0.40
codegen_flags: <defaults>
</compile_context>

<pallas_src>
import functools

import jax
import jax.numpy as jnp
from jax.experimental import pallas as pl
from jax.experimental.pallas import tpu as pltpu


def _silu(x):
    return x * jax.nn.sigmoid(x)


def _channel_to_space(x):
    b, c, h, w = x.shape
    s = x.reshape(b, c // 4, 2, 2, h, w)
    s = jnp.transpose(s, (0, 1, 4, 2, 5, 3))
    return s.reshape(b, c // 4, h * 2, w * 2)


def _round_up(v, m):
    return (v + m - 1) // m * m


# ----------------------------- kernel helpers ------------------------------


def _conv3x3(slab_ref, w_ref, b_ref, cmask_ref, *, wimg, m_al, halo):
    """3x3 conv as 9 tap matmuls with f32 accumulation.

    slab_ref : bf16 VMEM ref [Ci, halo + m_al + halo]; interior holds the
               row-major flattened image, halos and alignment tail are zero.
    w_ref    : bf16 ref [9, Co, Ci], tap-major (dh, dw).
    cmask_ref: bf16 ref [3, m_al]; rows 0/2 zero column-wrapped contributions
               for dw = -1 / +1 (row wrap lands in the zero halo).
    """
    acc = None
    t = 0
    for dh in (-1, 0, 1):
        for dw in (-1, 0, 1):
            base = halo + dh * wimg + dw
            xt = slab_ref[:, base:base + m_al]          # bf16 slice of VMEM ref
            if dw != 0:
                xt = xt * cmask_ref[dw + 1:dw + 2, :]   # kill column wrap
            p = jnp.dot(w_ref[t], xt, preferred_element_type=jnp.float32)
            acc = p if acc is None else acc + p
            t += 1
    return acc + b_ref[...]


def _group_norm(z, vmask, gagg, gamma, beta, n_per_group, eps):
    """GroupNorm of an f32 [C, m_al] slab; vmask zeroes the alignment tail.

    `gagg` is the block-diagonal same-group matrix [C, C]; one matmul does
    the per-group reduce AND the broadcast back to channels.
    """
    zm = z * vmask
    csum = jnp.sum(zm, axis=1, keepdims=True)                       # [C, 1]
    csq = jnp.sum(zm * zm, axis=1, keepdims=True)                   # [C, 1]
    mean = jnp.dot(gagg, csum, preferred_element_type=jnp.float32) / n_per_group
    ex2 = jnp.dot(gagg, csq, preferred_element_type=jnp.float32) / n_per_group
    var = jnp.maximum(ex2 - mean * mean, 0.0)      # guard cancellation
    inv = jax.lax.rsqrt(var + eps)
    return (z - mean) * inv * gamma + beta


# ----------------------------- Pallas kernels ------------------------------


def _upsample_block_kernel(xu_ref, sc_ref, vmask_ref, cmask_ref, w1_ref,
                           b1_ref, w2_ref, b2_ref, g_ref, bt_ref, gagg_ref,
                           o_ref, slab_a, slab_b, *,
                           wimg, m_al, halo, n_per_group, eps):
    cin = xu_ref.shape[1]
    cout = o_ref.shape[1]
    vmask = vmask_ref[...]

    # conv1 on the nearest-upsampled input, then SiLU (no norm in this block)
    slab_a[:, 0:halo] = jnp.zeros((cin, halo), jnp.bfloat16)
    slab_a[:, halo + m_al:] = jnp.zeros((cin, halo), jnp.bfloat16)
    slab_a[:, halo:halo + m_al] = xu_ref[0]                 # aligned bf16 copy
    z1 = _conv3x3(slab_a, w1_ref, b1_ref, cmask_ref,
                  wimg=wimg, m_al=m_al, halo=halo)
    a1 = _silu(z1) * vmask

    # conv2 -> GroupNorm -> SiLU -> + shortcut
    slab_b[:, 0:halo] = jnp.zeros((cout, halo), jnp.bfloat16)
    slab_b[:, halo + m_al:] = jnp.zeros((cout, halo), jnp.bfloat16)
    slab_b[:, halo:halo + m_al] = a1.astype(jnp.bfloat16)   # single cast
    z2 = _conv3x3(slab_b, w2_ref, b2_ref, cmask_ref,
                  wimg=wimg, m_al=m_al, halo=halo)
    a2 = _silu(_group_norm(z2, vmask, gagg_ref[...], g_ref[...], bt_ref[...],
                           n_per_group, eps)) * vmask
    o_ref[0] = (a2 + sc_ref[0]).astype(jnp.bfloat16)        # lane-dense store


def _conv_block_kernel(x_ref, vmask_ref, cmask_ref, w1_ref, b1_ref, g1_ref,
                       bt1_ref, w2_ref, b2_ref, g2_ref, bt2_ref, gagg_ref,
                       o_ref, slab, *, wimg, m_al, halo, n_per_group, eps):
    c = o_ref.shape[1]
    vmask = vmask_ref[...]
    gagg = gagg_ref[...]

    slab[:, 0:halo] = jnp.zeros((c, halo), jnp.bfloat16)
    slab[:, halo + m_al:] = jnp.zeros((c, halo), jnp.bfloat16)
    slab[:, halo:halo + m_al] = x_ref[0]
    z1 = _conv3x3(slab, w1_ref, b1_ref, cmask_ref,
                  wimg=wimg, m_al=m_al, halo=halo)
    a1 = _silu(_group_norm(z1, vmask, gagg, g1_ref[...], bt1_ref[...],
                           n_per_group, eps)) * vmask

    # z1 is fully consumed before the slab interior is restaged (WAR is fine
    # under Pallas program-order ref semantics); halos are still zero.
    slab[:, halo:halo + m_al] = a1.astype(jnp.bfloat16)
    z2 = _conv3x3(slab, w2_ref, b2_ref, cmask_ref,
                  wimg=wimg, m_al=m_al, halo=halo)
    a2 = _silu(_group_norm(z2, vmask, gagg, g2_ref[...], bt2_ref[...],
                           n_per_group, eps)) * vmask
    o_ref[0] = (a2 + x_ref[0]).astype(jnp.bfloat16)         # residual


# ------------------------------- JAX glue ----------------------------------


def decoder_stage(x, up_params, block_params, *, num_groups=8, eps=1e-5):
    w1, b1, w2, b2, gamma, beta = up_params
    B, cin, H, W = x.shape
    cout = w1.shape[0]
    assert cin % 4 == 0 and cout % num_groups == 0 and cout % (cin // 4) == 0

    H2, W2 = 2 * H, 2 * W
    M = H2 * W2                          # valid flat-spatial length
    m_al = _round_up(M, 128)             # lane-dense / MXU-aligned length
    halo = _round_up(W2 + 1, 128)        # aligned zero halo >= one row + 1
    lh = m_al + 2 * halo
    gsize = cout // num_groups
    n_per_group = float(M * gsize)

    def wpack(w):                        # [Co,Ci,3,3] -> [9,Co,Ci] bf16 tap-major
        co, ci = w.shape[0], w.shape[1]
        return (jnp.transpose(w, (2, 3, 0, 1)).reshape(9, co, ci)
                .astype(jnp.bfloat16))

    def col(v):
        return v.reshape(-1, 1).astype(jnp.float32)

    def flat(a):                         # [B,C,H2,W2] -> bf16 [B,C,m_al], zero tail
        a = a.reshape(B, a.shape[1], M)
        if m_al > M:
            a = jnp.pad(a, ((0, 0), (0, 0), (0, m_al - M)))
        return a.astype(jnp.bfloat16)

    # Wrapper-side nearest-2x upsample + channel_to_space shortcut (bf16,
    # unpadded).  Folding these into the first kernel is a further (mostly
    # v5e) HBM saving not taken here.
    xu = jnp.repeat(jnp.repeat(x, 2, axis=2), 2, axis=3)
    sc = _channel_to_space(x)
    sc = jnp.concatenate([sc] * (cout // sc.shape[1]), axis=1)

    m_idx = jnp.arange(m_al)
    valid = m_idx < M
    colidx = m_idx % W2
    vmask = valid.astype(jnp.float32).reshape(1, m_al)
    cmask = jnp.stack([valid & (colidx != 0),          # dw = -1
                       valid,                          # dw =  0 (unused)
                       valid & (colidx != W2 - 1)],    # dw = +1
                      axis=0).astype(jnp.bfloat16)     # [3, m_al]
    same_group = (jnp.arange(cout)[:, None] // gsize
                  == jnp.arange(cout)[None, :] // gsize)
    gagg = same_group.astype(jnp.float32)              # [cout, cout]

    cp = pltpu.CompilerParams(dimension_semantics=("parallel",),
                              vmem_limit_bytes=48 * 1024 * 1024)
    per_b = lambda b: (b, 0, 0)
    c2 = lambda b: (0, 0)
    c3 = lambda b: (0, 0, 0)

    up_call = pl.pallas_call(
        functools.partial(_upsample_block_kernel, wimg=W2, m_al=m_al,
                          halo=halo, n_per_group=n_per_group, eps=float(eps)),
        out_shape=jax.ShapeDtypeStruct((B, cout, m_al), jnp.bfloat16),
        grid=(B,),
        in_specs=[
            pl.BlockSpec((1, cin, m_al), per_b),     # upsampled input (bf16)
            pl.BlockSpec((1, cout, m_al), per_b),    # shortcut (bf16)
            pl.BlockSpec((1, m_al), c2),             # valid mask (f32)
            pl.BlockSpec((3, m_al), c2),             # column-wrap masks (bf16)
            pl.BlockSpec((9, cout, cin), c3),        # conv1 weight (bf16)
            pl.BlockSpec((cout, 1), c2),             # conv1 bias
            pl.BlockSpec((9, cout, cout), c3),       # conv2 weight (bf16)
            pl.BlockSpec((cout, 1), c2),             # conv2 bias
            pl.BlockSpec((cout, 1), c2),             # gamma
            pl.BlockSpec((cout, 1), c2),             # beta
            pl.BlockSpec((cout, cout), c2),          # group-aggregation matrix
        ],
        out_specs=pl.BlockSpec((1, cout, m_al), per_b),
        scratch_shapes=[pltpu.VMEM((cin, lh), jnp.bfloat16),
                        pltpu.VMEM((cout, lh), jnp.bfloat16)],
        compiler_params=cp,
    )

    y = up_call(flat(xu), flat(sc), vmask, cmask, wpack(w1), col(b1),
                wpack(w2), col(b2), col(gamma), col(beta), gagg)

    blk_call = pl.pallas_call(
        functools.partial(_conv_block_kernel, wimg=W2, m_al=m_al, halo=halo,
                          n_per_group=n_per_group, eps=float(eps)),
        out_shape=jax.ShapeDtypeStruct((B, cout, m_al), jnp.bfloat16),
        grid=(B,),
        in_specs=[
            pl.BlockSpec((1, cout, m_al), per_b),    # block input (bf16)
            pl.BlockSpec((1, m_al), c2),             # valid mask
            pl.BlockSpec((3, m_al), c2),             # column-wrap masks
            pl.BlockSpec((9, cout, cout), c3),       # conv1 weight
            pl.BlockSpec((cout, 1), c2),             # conv1 bias
            pl.BlockSpec((cout, 1), c2),             # norm1 gamma
            pl.BlockSpec((cout, 1), c2),             # norm1 beta
            pl.BlockSpec((9, cout, cout), c3),       # conv2 weight
            pl.BlockSpec((cout, 1), c2),             # conv2 bias
            pl.BlockSpec((cout, 1), c2),             # norm2 gamma
            pl.BlockSpec((cout, 1), c2),             # norm2 beta
            pl.BlockSpec((cout, cout), c2),          # group-aggregation matrix
        ],
        out_specs=pl.BlockSpec((1, cout, m_al), per_b),
        scratch_shapes=[pltpu.VMEM((cout, lh), jnp.bfloat16)],
        compiler_params=cp,
    )

    for (cw1, cb1, g1, bt1, cw2, cb2, g2, bt2) in block_params:
        y = blk_call(y, vmask, cmask, wpack(cw1), col(cb1), col(g1), col(bt1),
                     wpack(cw2), col(cb2), col(g2), col(bt2), gagg)

    # strip the alignment tail, back to NCHW f32
    return y[:, :, :M].astype(jnp.float32).reshape(B, cout, H2, W2)


# --------------------------- pure-JAX reference ----------------------------


def _conv2d_ref(x, w, b):
    dn = ("NCHW", "OIHW", "NCHW")
    y = jax.lax.conv_general_dilated(x, w, (1, 1), ((1, 1), (1, 1)),
                                     dimension_numbers=dn)
    return y + b.reshape(1, -1, 1, 1)


def _gn_ref(x, gamma, beta, num_groups, eps):
    B, C, H, W = x.shape
    g = x.reshape(B, num_groups, C // num_groups, H, W)
    mean = g.mean(axis=(2, 3, 4), keepdims=True)
    var = g.var(axis=(2, 3, 4), keepdims=True)
    g = (g - mean) / jnp.sqrt(var + eps)
    return (g.reshape(B, C, H, W) * gamma.reshape(1, -1, 1, 1)
            + beta.reshape(1, -1, 1, 1))


def reference(x, up_params, block_params, num_groups=8, eps=1e-5):
    w1, b1, w2, b2, gamma, beta = up_params
    sc = _channel_to_space(x)
    y = jnp.repeat(jnp.repeat(x, 2, axis=2), 2, axis=3)
    y = _silu(_conv2d_ref(y, w1, b1))
    y = _conv2d_ref(y, w2, b2)
    y = _silu(_gn_ref(y, gamma, beta, num_groups, eps))
    sc = jnp.concatenate([sc] * (y.shape[1] // sc.shape[1]), axis=1)
    y = y + sc
    for (cw1, cb1, g1, bt1, cw2, cb2, g2, bt2) in block_params:
        r = y
        y = _silu(_gn_ref(_conv2d_ref(y, cw1, cb1), g1, bt1, num_groups, eps))
        y = _silu(_gn_ref(_conv2d_ref(y, cw2, cb2), g2, bt2, num_groups, eps))
        y = y + r
    return y


# ---------------------------------- main -----------------------------------


if __name__ == "__main__":
    IN_CH, OUT_CH, NUM_BLOCKS = 8, 16, 3     # needs IN_CH%4==0, OUT_CH%8==0
    B, H, W = 2, 8, 8                        # upsampled output: 16x16

    key = jax.random.PRNGKey(0)
    keys = iter(jax.random.split(key, 40))

    def rnd(shape, scale=0.1):
        return scale * jax.random.normal(next(keys), shape, jnp.float32)

    up_params = (rnd((OUT_CH, IN_CH, 3, 3)), rnd((OUT_CH,)),
                 rnd((OUT_CH, OUT_CH, 3, 3)), rnd((OUT_CH,)),
                 1.0 + rnd((OUT_CH,)), rnd((OUT_CH,)))
    block_params = tuple(
        (rnd((OUT_CH, OUT_CH, 3, 3)), rnd((OUT_CH,)),
         1.0 + rnd((OUT_CH,)), rnd((OUT_CH,)),
         rnd((OUT_CH, OUT_CH, 3, 3)), rnd((OUT_CH,)),
         1.0 + rnd((OUT_CH,)), rnd((OUT_CH,)))
        for _ in range(NUM_BLOCKS))
    x = jax.random.normal(next(keys), (B, IN_CH, H, W), jnp.float32)

    out = jax.jit(decoder_stage)(x, up_params, block_params)
    out = jax.block_until_ready(out)
    assert out.shape == (B, OUT_CH, 2 * H, 2 * W), out.shape

    ref = reference(x, up_params, block_params)
    max_err = float(jnp.max(jnp.abs(out - ref)))
    assert jnp.allclose(out, ref, atol=5e-2, rtol=5e-2), f"max abs err {max_err}"

    print("KERNEL_OK")
</pallas_src>

<mosaic_0001>
module attributes {stable_mosaic.version = 11 : i64} {
  func.func @_conv_block_kernel(%arg0: i32, %arg1: memref<1x16x256xbf16, #tpu.memory_space<vmem>>, %arg2: memref<1x256xf32, #tpu.memory_space<vmem>>, %arg3: memref<3x256xbf16, #tpu.memory_space<vmem>>, %arg4: memref<9x16x16xbf16, #tpu.memory_space<vmem>>, %arg5: memref<16x1xf32, #tpu.memory_space<vmem>>, %arg6: memref<16x1xf32, #tpu.memory_space<vmem>>, %arg7: memref<16x1xf32, #tpu.memory_space<vmem>>, %arg8: memref<9x16x16xbf16, #tpu.memory_space<vmem>>, %arg9: memref<16x1xf32, #tpu.memory_space<vmem>>, %arg10: memref<16x1xf32, #tpu.memory_space<vmem>>, %arg11: memref<16x1xf32, #tpu.memory_space<vmem>>, %arg12: memref<16x16xf32, #tpu.memory_space<vmem>>, %arg13: memref<1x16x256xbf16, #tpu.memory_space<vmem>>, %arg14: memref<16x512xbf16, #tpu.memory_space<vmem>>) attributes {dimension_semantics = [#tpu.dimension_semantics<parallel>], iteration_bounds = array<i64: 2>, scalar_prefetch = 0 : i64, scratch_operands = 1 : i64, tpu.core_type = #tpu.core_type<tc>, window_params = [{transform_indices = @transform_0, window_bounds = array<i64: 1, 16, 256>}, {pipeline_mode = #tpu.pipeline_mode<synchronous>, transform_indices = @transform_1, window_bounds = array<i64: 1, 256>}, {pipeline_mode = #tpu.pipeline_mode<synchronous>, transform_indices = @transform_2, window_bounds = array<i64: 3, 256>}, {pipeline_mode = #tpu.pipeline_mode<synchronous>, transform_indices = @transform_3, window_bounds = array<i64: 9, 16, 16>}, {pipeline_mode = #tpu.pipeline_mode<synchronous>, transform_indices = @transform_4, window_bounds = array<i64: 16, 1>}, {pipeline_mode = #tpu.pipeline_mode<synchronous>, transform_indices = @transform_5, window_bounds = array<i64: 16, 1>}, {pipeline_mode = #tpu.pipeline_mode<synchronous>, transform_indices = @transform_6, window_bounds = array<i64: 16, 1>}, {pipeline_mode = #tpu.pipeline_mode<synchronous>, transform_indices = @transform_7, window_bounds = array<i64: 9, 16, 16>}, {pipeline_mode = #tpu.pipeline_mode<synchronous>, transform_indices = @transform_8, window_bounds = array<i64: 16, 1>}, {pipeline_mode = #tpu.pipeline_mode<synchronous>, transform_indices = @transform_9, window_bounds = array<i64: 16, 1>}, {pipeline_mode = #tpu.pipeline_mode<synchronous>, transform_indices = @transform_10, window_bounds = array<i64: 16, 1>}, {pipeline_mode = #tpu.pipeline_mode<synchronous>, transform_indices = @transform_11, window_bounds = array<i64: 16, 16>}, {transform_indices = @transform_12, window_bounds = array<i64: 1, 16, 256>}]} {
    %c0 = arith.constant 0 : index
    %c0_0 = arith.constant 0 : index
    %0 = vector.load %arg2[%c0, %c0_0] : memref<1x256xf32, #tpu.memory_space<vmem>>, vector<1x256xf32>
    %c0_1 = arith.constant 0 : index
    %c0_2 = arith.constant 0 : index
    %1 = vector.load %arg12[%c0_1, %c0_2] : memref<16x16xf32, #tpu.memory_space<vmem>>, vector<16x16xf32>
    %cst = arith.constant 0.000000e+00 : bf16
    %2 = vector.broadcast %cst : bf16 to vector<16x128xbf16>
    %c0_3 = arith.constant 0 : index
    %c0_4 = arith.constant 0 : index
    %3 = vector.load %arg14[%c0_3, %c0_4] : memref<16x512xbf16, #tpu.memory_space<vmem>>, vector<16x128xbf16>
    tpu.vector_store %arg14[%c0_3, %c0_4], %2 {strides = array<i32>} : memref<16x512xbf16, #tpu.memory_space<vmem>>, vector<16x128xbf16>,
    %cst_5 = arith.constant 0.000000e+00 : bf16
    %4 = vector.broadcast %cst_5 : bf16 to vector<16x128xbf16>
    %c0_6 = arith.constant 0 : index
    %c384 = arith.constant 384 : index
    %5 = vector.load %arg14[%c0_6, %c384] : memref<16x512xbf16, #tpu.memory_space<vmem>>, vector<16x128xbf16>
    tpu.vector_store %arg14[%c0_6, %c384], %4 {strides = array<i32>} : memref<16x512xbf16, #tpu.memory_space<vmem>>, vector<16x128xbf16>,
    %c0_7 = arith.constant 0 : index
    %c0_8 = arith.constant 0 : index
    %c0_9 = arith.constant 0 : index
    %6 = vector.load %arg1[%c0_7, %c0_8, %c0_9] : memref<1x16x256xbf16, #tpu.memory_space<vmem>>, vector<1x16x256xbf16>
    %7 = vector.shape_cast %6 : vector<1x16x256xbf16> to vector<16x256xbf16>
    %c0_10 = arith.constant 0 : index
    %c128 = arith.constant 128 : index
    %8 = vector.load %arg14[%c0_10, %c128] : memref<16x512xbf16, #tpu.memory_space<vmem>>, vector<16x256xbf16>
    tpu.vector_store %arg14[%c0_10, %c128], %7 {strides = array<i32>} : memref<16x512xbf16, #tpu.memory_space<vmem>>, vector<16x256xbf16>,
    %c0_11 = arith.constant 0 : index
    %c111 = arith.constant 111 : index
    %9 = vector.load %arg14[%c0_11, %c111] : memref<16x512xbf16, #tpu.memory_space<vmem>>, vector<16x256xbf16>
    %c0_12 = arith.constant 0 : index
    %c0_13 = arith.constant 0 : index
    %10 = vector.load %arg3[%c0_12, %c0_13] : memref<3x256xbf16, #tpu.memory_space<vmem>>, vector<1x256xbf16>
    %11 = vector.broadcast %10 : vector<1x256xbf16> to vector<16x256xbf16>
    %12 = arith.mulf %9, %11 : vector<16x256xbf16>
    %c0_14 = arith.constant 0 : index
    %c0_15 = arith.constant 0 : index
    %c0_16 = arith.constant 0 : index
    %13 = vector.load %arg4[%c0_14, %c0_15, %c0_16] : memref<9x16x16xbf16, #tpu.memory_space<vmem>>, vector<1x16x16xbf16>
    %14 = vector.shape_cast %13 : vector<1x16x16xbf16> to vector<16x16xbf16>
    %cst_17 = arith.constant dense<0.000000e+00> : vector<16x256xf32>
    %15 = tpu.matmul %14, %12, %cst_17 {dimension_numbers = #tpu.dot_dimension_numbers<[1], [0], [0], [1], [0, 0, 1, 1], [], []>} : vector<16x16xbf16>, vector<16x256xbf16>, vector<16x256xf32> -> vector<16x256xf32>
    %c0_18 = arith.constant 0 : index
    %c112 = arith.constant 112 : index
    %16 = vector.load %arg14[%c0_18, %c112] : memref<16x512xbf16, #tpu.memory_space<vmem>>, vector<16x256xbf16>
    %c1 = arith.constant 1 : index
    %c0_19 = arith.constant 0 : index
    %c0_20 = arith.constant 0 : index
    %17 = vector.load %arg4[%c1, %c0_19, %c0_20] : memref<9x16x16xbf16, #tpu.memory_space<vmem>>, vector<1x16x16xbf16>
    %18 = vector.shape_cast %17 : vector<1x16x16xbf16> to vector<16x16xbf16>
    %cst_21 = arith.constant dense<0.000000e+00> : vector<16x256xf32>
    %19 = tpu.matmul %18, %16, %cst_21 {dimension_numbers = #tpu.dot_dimension_numbers<[1], [0], [0], [1], [0, 0, 1, 1], [], []>} : vector<16x16xbf16>, vector<16x256xbf16>, vector<16x256xf32> -> vector<16x256xf32>
    %20 = arith.addf %15, %19 : vector<16x256xf32>
    %c0_22 = arith.constant 0 : index
    %c113 = arith.constant 113 : index
    %21 = vector.load %arg14[%c0_22, %c113] : memref<16x512xbf16, #tpu.memory_space<vmem>>, vector<16x256xbf16>
    %c2 = arith.constant 2 : index
    %c0_23 = arith.constant 0 : index
    %22 = vector.load %arg3[%c2, %c0_23] : memref<3x256xbf16, #tpu.memory_space<vmem>>, vector<1x256xbf16>
    %23 = vector.broadcast %22 : vector<1x256xbf16> to vector<16x256xbf16>
    %24 = arith.mulf %21, %23 : vector<16x256xbf16>
    %c2_24 = arith.constant 2 : index
    %c0_25 = arith.constant 0 : index
    %c0_26 = arith.constant 0 : index
    %25 = vector.load %arg4[%c2_24, %c0_25, %c0_26] : memref<9x16x16xbf16, #tpu.memory_space<vmem>>, vector<1x16x16xbf16>
    %26 = vector.shape_cast %25 : vector<1x16x16xbf16> to vector<16x16xbf16>
    %cst_27 = arith.constant dense<0.000000e+00> : vector<16x256xf32>
    %27 = tpu.matmul %26, %24, %cst_27 {dimension_numbers = #tpu.dot_dimension_numbers<[1], [0], [0], [1], [0, 0, 1, 1], [], []>} : vector<16x16xbf16>, vector<16x256xbf16>, vector<16x256xf32> -> vector<16x256xf32>
    %28 = arith.addf %20, %27 : vector<16x256xf32>
    %c0_28 = arith.constant 0 : index
    %c127 = arith.constant 127 : index
    %29 = vector.load %arg14[%c0_28, %c127] : memref<16x512xbf16, #tpu.memory_space<vmem>>, vector<16x256xbf16>
    %c0_29 = arith.constant 0 : index
    %c0_30 = arith.constant 0 : index
    %30 = vector.load %arg3[%c0_29, %c0_30] : memref<3x256xbf16, #tpu.memory_space<vmem>>, vector<1x256xbf16>
    %31 = vector.broadcast %30 : vector<1x256xbf16> to vector<16x256xbf16>
    %32 = arith.mulf %29, %31 : vector<16x256xbf16>
    %c3 = arith.constant 3 : index
    %c0_31 = arith.constant 0 : index
    %c0_32 = arith.constant 0 : index
    %33 = vector.load %arg4[%c3, %c0_31, %c0_32] : memref<9x16x16xbf16, #tpu.memory_space<vmem>>, vector<1x16x16xbf16>
    %34 = vector.shape_cast %33 : vector<1x16x16xbf16> to vector<16x16xbf16>
    %cst_33 = arith.constant dense<0.000000e+00> : vector<16x256xf32>
    %35 = tpu.matmul %34, %32, %cst_33 {dimension_numbers = #tpu.dot_dimension_numbers<[1], [0], [0], [1], [0, 0, 1, 1], [], []>} : vector<16x16xbf16>, vector<16x256xbf16>, vector<16x256xf32> -> vector<16x256xf32>
    %36 = arith.addf %28, %35 : vector<16x256xf32>
    %c0_34 = arith.constant 0 : index
    %c128_35 = arith.constant 128 : index
    %37 = vector.load %arg14[%c0_34, %c128_35] : memref<16x512xbf16, #tpu.memory_space<vmem>>, vector<16x256xbf16>
    %c4 = arith.constant 4 : index
    %c0_36 = arith.constant 0 : index
    %c0_37 = arith.constant 0 : index
    %38 = vector.load %arg4[%c4, %c0_36, %c0_37] : memref<9x16x16xbf16, #tpu.memory_space<vmem>>, vector<1x16x16xbf16>
    %39 = vector.shape_cast %38 : vector<1x16x16xbf16> to vector<16x16xbf16>
    %cst_38 = arith.constant dense<0.000000e+00> : vector<16x256xf32>
    %40 = tpu.matmul %39, %37, %cst_38 {dimension_numbers = #tpu.dot_dimension_numbers<[1], [0], [0], [1], [0, 0, 1, 1], [], []>} : vector<16x16xbf16>, vector<16x256xbf16>, vector<16x256xf32> -> vector<16x256xf32>
    %41 = arith.addf %36, %40 : vector<16x256xf32>
    %c0_39 = arith.constant 0 : index
    %c129 = arith.constant 129 : index
    %42 = vector.load %arg14[%c0_39, %c129] : memref<16x512xbf16, #tpu.memory_space<vmem>>, vector<16x256xbf16>
    %c2_40 = arith.constant 2 : index
    %c0_41 = arith.constant 0 : index
    %43 = vector.load %arg3[%c2_40, %c0_41] : memref<3x256xbf16, #tpu.memory_space<vmem>>, vector<1x256xbf16>
    %44 = vector.broadcast %43 : vector<1x256xbf16> to vector<16x256xbf16>
    %45 = arith.mulf %42, %44 : vector<16x256xbf16>
    %c5 = arith.constant 5 : index
    %c0_42 = arith.constant 0 : index
    %c0_43 = arith.constant 0 : index
    %46 = vector.load %arg4[%c5, %c0_42, %c0_43] : memref<9x16x16xbf16, #tpu.memory_space<vmem>>, vector<1x16x16xbf16>
    %47 = vector.shape_cast %46 : vector<1x16x16xbf16> to vector<16x16xbf16>
    %cst_44 = arith.constant dense<0.000000e+00> : vector<16x256xf32>
    %48 = tpu.matmul %47, %45, %cst_44 {dimension_numbers = #tpu.dot_dimension_numbers<[1], [0], [0], [1], [0, 0, 1, 1], [], []>} : vector<16x16xbf16>, vector<16x256xbf16>, vector<16x256xf32> -> vector<16x256xf32>
    %49 = arith.addf %41, %48 : vector<16x256xf32>
    %c0_45 = arith.constant 0 : index
    %c143 = arith.constant 143 : index
    %50 = vector.load %arg14[%c0_45, %c143] : memref<16x512xbf16, #tpu.memory_space<vmem>>, vector<16x256xbf16>
    %c0_46 = arith.constant 0 : index
    %c0_47 = arith.constant 0 : index
    %51 = vector.load %arg3[%c0_46, %c0_47] : memref<3x256xbf16, #tpu.memory_space<vmem>>, vector<1x256xbf16>
    %52 = vector.broadcast %51 : vector<1x256xbf16> to vector<16x256xbf16>
    %53 = arith.mulf %50, %52 : vector<16x256xbf16>
    %c6 = arith.constant 6 : index
    %c0_48 = arith.constant 0 : index
    %c0_49 = arith.constant 0 : index
    %54 = vector.load %arg4[%c6, %c0_48, %c0_49] : memref<9x16x16xbf16, #tpu.memory_space<vmem>>, vector<1x16x16xbf16>
    %55 = vector.shape_cast %54 : vector<1x16x16xbf16> to vector<16x16xbf16>
    %cst_50 = arith.constant dense<0.000000e+00> : vector<16x256xf32>
    %56 = tpu.matmul %55, %53, %cst_50 {dimension_numbers = #tpu.dot_dimension_numbers<[1], [0], [0], [1], [0, 0, 1, 1], [], []>} : vector<16x16xbf16>, vector<16x256xbf16>, vector<16x256xf32> -> vector<16x256xf32>
    %57 = arith.addf %49, %56 : vector<16x256xf32>
    %c0_51 = arith.constant 0 : index
    %c144 = arith.constant 144 : index
    %58 = vector.load %arg14[%c0_51, %c144] : memref<16x512xbf16, #tpu.memory_space<vmem>>, vector<16x256xbf16>
    %c7 = arith.constant 7 : index
    %c0_52 = arith.constant 0 : index
    %c0_53 = arith.constant 0 : index
    %59 = vector.load %arg4[%c7, %c0_52, %c0_53] : memref<9x16x16xbf16, #tpu.memory_space<vmem>>, vector<1x16x16xbf16>
    %60 = vector.shape_cast %59 : vector<1x16x16xbf16> to vector<16x16xbf16>
    %cst_54 = arith.constant dense<0.000000e+00> : vector<16x256xf32>
    %61 = tpu.matmul %60, %58, %cst_54 {dimension_numbers = #tpu.dot_dimension_numbers<[1], [0], [0], [1], [0, 0, 1, 1], [], []>} : vector<16x16xbf16>, vector<16x256xbf16>, vector<16x256xf32> -> vector<16x256xf32>
    %62 = arith.addf %57, %61 : vector<16x256xf32>
    %c0_55 = arith.constant 0 : index
    %c145 = arith.constant 145 : index
    %63 = vector.load %arg14[%c0_55, %c145] : memref<16x512xbf16, #tpu.memory_space<vmem>>, vector<16x256xbf16>
    %c2_56 = arith.constant 2 : index
    %c0_57 = arith.constant 0 : index
    %64 = vector.load %arg3[%c2_56, %c0_57] : memref<3x256xbf16, #tpu.memory_space<vmem>>, vector<1x256xbf16>
    %65 = vector.broadcast %64 : vector<1x256xbf16> to vector<16x256xbf16>
    %66 = arith.mulf %63, %65 : vector<16x256xbf16>
    %c8 = arith.constant 8 : index
    %c0_58 = arith.constant 0 : index
    %c0_59 = arith.constant 0 : index
    %67 = vector.load %arg4[%c8, %c0_58, %c0_59] : memref<9x16x16xbf16, #tpu.memory_space<vmem>>, vector<1x16x16xbf16>
    %68 = vector.shape_cast %67 : vector<1x16x16xbf16> to vector<16x16xbf16>
    %cst_60 = arith.constant dense<0.000000e+00> : vector<16x256xf32>
    %69 = tpu.matmul %68, %66, %cst_60 {dimension_numbers = #tpu.dot_dimension_numbers<[1], [0], [0], [1], [0, 0, 1, 1], [], []>} : vector<16x16xbf16>, vector<16x256xbf16>, vector<16x256xf32> -> vector<16x256xf32>
    %70 = arith.addf %62, %69 : vector<16x256xf32>
    %c0_61 = arith.constant 0 : index
    %c0_62 = arith.constant 0 : index
    %71 = vector.load %arg5[%c0_61, %c0_62] : memref<16x1xf32, #tpu.memory_space<vmem>>, vector<16x1xf32>
    %72 = vector.broadcast %71 : vector<16x1xf32> to vector<16x256xf32>
    %73 = arith.addf %70, %72 : vector<16x256xf32>
    %c0_63 = arith.constant 0 : index
    %c0_64 = arith.constant 0 : index
    %74 = vector.load %arg6[%c0_63, %c0_64] : memref<16x1xf32, #tpu.memory_space<vmem>>, vector<16x1xf32>
    %c0_65 = arith.constant 0 : index
    %c0_66 = arith.constant 0 : index
    %75 = vector.load %arg7[%c0_65, %c0_66] : memref<16x1xf32, #tpu.memory_space<vmem>>, vector<16x1xf32>
    %76 = vector.broadcast %0 : vector<1x256xf32> to vector<16x256xf32>
    %77 = arith.mulf %73, %76 : vector<16x256xf32>
    %cst_67 = arith.constant dense<0.000000e+00> : vector<16xf32>
    %78 = vector.multi_reduction <add>, %77, %cst_67 [1] : vector<16x256xf32> to vector<16xf32>
    %79 = vector.shape_cast %78 : vector<16xf32> to vector<16x1xf32>
    %80 = arith.mulf %77, %77 : vector<16x256xf32>
    %cst_68 = arith.constant dense<0.000000e+00> : vector<16xf32>
    %81 = vector.multi_reduction <add>, %80, %cst_68 [1] : vector<16x256xf32> to vector<16xf32>
    %82 = vector.shape_cast %81 : vector<16xf32> to vector<16x1xf32>
    %cst_69 = arith.constant dense<0.000000e+00> : vector<16x1xf32>
    %83 = tpu.matmul %1, %79, %cst_69 {dimension_numbers = #tpu.dot_dimension_numbers<[1], [0], [0], [1], [0, 0, 1, 1], [], []>} : vector<16x16xf32>, vector<16x1xf32>, vector<16x1xf32> -> vector<16x1xf32>
    %cst_70 = arith.constant 5.120000e+02 : f32
    %84 = vector.broadcast %cst_70 : f32 to vector<16x1xf32>
    %85 = arith.divf %83, %84 : vector<16x1xf32>
    %cst_71 = arith.constant dense<0.000000e+00> : vector<16x1xf32>
    %86 = tpu.matmul %1, %82, %cst_71 {dimension_numbers = #tpu.dot_dimension_numbers<[1], [0], [0], [1], [0, 0, 1, 1], [], []>} : vector<16x16xf32>, vector<16x1xf32>, vector<16x1xf32> -> vector<16x1xf32>
    %cst_72 = arith.constant 5.120000e+02 : f32
    %87 = vector.broadcast %cst_72 : f32 to vector<16x1xf32>
    %88 = arith.divf %86, %87 : vector<16x1xf32>
    %89 = arith.mulf %85, %85 : vector<16x1xf32>
    %90 = arith.subf %88, %89 : vector<16x1xf32>
    %cst_73 = arith.constant 0.000000e+00 : f32
    %91 = vector.broadcast %cst_73 : f32 to vector<16x1xf32>
    %92 = arith.maximumf %90, %91 : vector<16x1xf32>
    %cst_74 = arith.constant 9.99999974E-6 : f32
    %93 = vector.broadcast %cst_74 : f32 to vector<16x1xf32>
    %94 = arith.addf %92, %93 : vector<16x1xf32>
    %95 = math.rsqrt %94 : vector<16x1xf32>
    %96 = vector.broadcast %85 : vector<16x1xf32> to vector<16x256xf32>
    %97 = arith.subf %73, %96 : vector<16x256xf32>
    %98 = vector.broadcast %95 : vector<16x1xf32> to vector<16x256xf32>
    %99 = arith.mulf %97, %98 : vector<16x256xf32>
    %100 = vector.broadcast %74 : vector<16x1xf32> to vector<16x256xf32>
    %101 = arith.mulf %99, %100 : vector<16x256xf32>
    %102 = vector.broadcast %75 : vector<16x1xf32> to vector<16x256xf32>
    %103 = arith.addf %101, %102 : vector<16x256xf32>
    %104 = arith.negf %103 : vector<16x256xf32>
    %105 = math.exp %104 : vector<16x256xf32>
    %cst_75 = arith.constant 1.000000e+00 : f32
    %106 = vector.broadcast %cst_75 : f32 to vector<16x256xf32>
    %107 = arith.addf %106, %105 : vector<16x256xf32>
    %108 = arith.divf %106, %107 : vector<16x256xf32>
    %109 = arith.mulf %103, %108 : vector<16x256xf32>
    %110 = vector.broadcast %0 : vector<1x256xf32> to vector<16x256xf32>
    %111 = arith.mulf %109, %110 : vector<16x256xf32>
    %112 = arith.truncf %111 : vector<16x256xf32> to vector<16x256xbf16>
    %c0_76 = arith.constant 0 : index
    %c128_77 = arith.constant 128 : index
    %113 = vector.load %arg14[%c0_76, %c128_77] : memref<16x512xbf16, #tpu.memory_space<vmem>>, vector<16x256xbf16>
    tpu.vector_store %arg14[%c0_76, %c128_77], %112 {strides = array<i32>} : memref<16x512xbf16, #tpu.memory_space<vmem>>, vector<16x256xbf16>,
    %c0_78 = arith.constant 0 : index
    %c111_79 = arith.constant 111 : index
    %114 = vector.load %arg14[%c0_78, %c111_79] : memref<16x512xbf16, #tpu.memory_space<vmem>>, vector<16x256xbf16>
    %c0_80 = arith.constant 0 : index
    %c0_81 = arith.constant 0 : index
    %115 = vector.load %arg3[%c0_80, %c0_81] : memref<3x256xbf16, #tpu.memory_space<vmem>>, vector<1x256xbf16>
    %116 = vector.broadcast %115 : vector<1x256xbf16> to vector<16x256xbf16>
    %117 = arith.mulf %114, %116 : vector<16x256xbf16>
    %c0_82 = arith.constant 0 : index
    %c0_83 = arith.constant 0 : index
    %c0_84 = arith.constant 0 : index
    %118 = vector.load %arg8[%c0_82, %c0_83, %c0_84] : memref<9x16x16xbf16, #tpu.memory_space<vmem>>, vector<1x16x16xbf16>
    %119 = vector.shape_cast %118 : vector<1x16x16xbf16> to vector<16x16xbf16>
    %cst_85 = arith.constant dense<0.000000e+00> : vector<16x256xf32>
    %120 = tpu.matmul %119, %117, %cst_85 {dimension_numbers = #tpu.dot_dimension_numbers<[1], [0], [0], [1], [0, 0, 1, 1], [], []>} : vector<16x16xbf16>, vector<16x256xbf16>, vector<16x256xf32> -> vector<16x256xf32>
    %c0_86 = arith.constant 0 : index
    %c112_87 = arith.constant 112 : index
    %121 = vector.load %arg14[%c0_86, %c112_87] : memref<16x512xbf16, #tpu.memory_space<vmem>>, vector<16x256xbf16>
    %c1_88 = arith.constant 1 : index
    %c0_89 = arith.constant 0 : index
    %c0_90 = arith.constant 0 : index
    %122 = vector.load %arg8[%c1_88, %c0_89, %c0_90] : memref<9x16x16xbf16, #tpu.memory_space<vmem>>, vector<1x16x16xbf16>
    %123 = vector.shape_cast %122 : vector<1x16x16xbf16> to vector<16x16xbf16>
    %cst_91 = arith.constant dense<0.000000e+00> : vector<16x256xf32>
    %124 = tpu.matmul %123, %121, %cst_91 {dimension_numbers = #tpu.dot_dimension_numbers<[1], [0], [0], [1], [0, 0, 1, 1], [], []>} : vector<16x16xbf16>, vector<16x256xbf16>, vector<16x256xf32> -> vector<16x256xf32>
    %125 = arith.addf %120, %124 : vector<16x256xf32>
    %c0_92 = arith.constant 0 : index
    %c113_93 = arith.constant 113 : index
    %126 = vector.load %arg14[%c0_92, %c113_93] : memref<16x512xbf16, #tpu.memory_space<vmem>>, vector<16x256xbf16>
    %c2_94 = arith.constant 2 : index
    %c0_95 = arith.constant 0 : index
    %127 = vector.load %arg3[%c2_94, %c0_95] : memref<3x256xbf16, #tpu.memory_space<vmem>>, vector<1x256xbf16>
    %128 = vector.broadcast %127 : vector<1x256xbf16> to vector<16x256xbf16>
    %129 = arith.mulf %126, %128 : vector<16x256xbf16>
    %c2_96 = arith.constant 2 : index
    %c0_97 = arith.constant 0 : index
    %c0_98 = arith.constant 0 : index
    %130 = vector.load %arg8[%c2_96, %c0_97, %c0_98] : memref<9x16x16xbf16, #tpu.memory_space<vmem>>, vector<1x16x16xbf16>
    %131 = vector.shape_cast %130 : vector<1x16x16xbf16> to vector<16x16xbf16>
    %cst_99 = arith.constant dense<0.000000e+00> : vector<16x256xf32>
    %132 = tpu.matmul %131, %129, %cst_99 {dimension_numbers = #tpu.dot_dimension_numbers<[1], [0], [0], [1], [0, 0, 1, 1], [], []>} : vector<16x16xbf16>, vector<16x256xbf16>, vector<16x256xf32> -> vector<16x256xf32>
    %133 = arith.addf %125, %132 : vector<16x256xf32>
    %c0_100 = arith.constant 0 : index
    %c127_101 = arith.constant 127 : index
    %134 = vector.load %arg14[%c0_100, %c127_101] : memref<16x512xbf16, #tpu.memory_space<vmem>>, vector<16x256xbf16>
    %c0_102 = arith.constant 0 : index
    %c0_103 = arith.constant 0 : index
    %135 = vector.load %arg3[%c0_102, %c0_103] : memref<3x256xbf16, #tpu.memory_space<vmem>>, vector<1x256xbf16>
    %136 = vector.broadcast %135 : vector<1x256xbf16> to vector<16x256xbf16>
    %137 = arith.mulf %134, %136 : vector<16x256xbf16>
    %c3_104 = arith.constant 3 : index
    %c0_105 = arith.constant 0 : index
    %c0_106 = arith.constant 0 : index
    %138 = vector.load %arg8[%c3_104, %c0_105, %c0_106] : memref<9x16x16xbf16, #tpu.memory_space<vmem>>, vector<1x16x16xbf16>
    %139 = vector.shape_cast %138 : vector<1x16x16xbf16> to vector<16x16xbf16>
    %cst_107 = arith.constant dense<0.000000e+00> : vector<16x256xf32>
    %140 = tpu.matmul %139, %137, %cst_107 {dimension_numbers = #tpu.dot_dimension_numbers<[1], [0], [0], [1], [0, 0, 1, 1], [], []>} : vector<16x16xbf16>, vector<16x256xbf16>, vector<16x256xf32> -> vector<16x256xf32>
    %141 = arith.addf %133, %140 : vector<16x256xf32>
    %c0_108 = arith.constant 0 : index
    %c128_109 = arith.constant 128 : index
    %142 = vector.load %arg14[%c0_108, %c128_109] : memref<16x512xbf16, #tpu.memory_space<vmem>>, vector<16x256xbf16>
    %c4_110 = arith.constant 4 : index
    %c0_111 = arith.constant 0 : index
    %c0_112 = arith.constant 0 : index
    %143 = vector.load %arg8[%c4_110, %c0_111, %c0_112] : memref<9x16x16xbf16, #tpu.memory_space<vmem>>, vector<1x16x16xbf16>
    %144 = vector.shape_cast %143 : vector<1x16x16xbf16> to vector<16x16xbf16>
    %cst_113 = arith.constant dense<0.000000e+00> : vector<16x256xf32>
    %145 = tpu.matmul %144, %142, %cst_113 {dimension_numbers = #tpu.dot_dimension_numbers<[1], [0], [0], [1], [0, 0, 1, 1], [], []>} : vector<16x16xbf16>, vector<16x256xbf16>, vector<16x256xf32> -> vector<16x256xf32>
    %146 = arith.addf %141, %145 : vector<16x256xf32>
    %c0_114 = arith.constant 0 : index
    %c129_115 = arith.constant 129 : index
    %147 = vector.load %arg14[%c0_114, %c129_115] : memref<16x512xbf16, #tpu.memory_space<vmem>>, vector<16x256xbf16>
    %c2_116 = arith.constant 2 : index
    %c0_117 = arith.constant 0 : index
    %148 = vector.load %arg3[%c2_116, %c0_117] : memref<3x256xbf16, #tpu.memory_space<vmem>>, vector<1x256xbf16>
    %149 = vector.broadcast %148 : vector<1x256xbf16> to vector<16x256xbf16>
    %150 = arith.mulf %147, %149 : vector<16x256xbf16>
    %c5_118 = arith.constant 5 : index
    %c0_119 = arith.constant 0 : index
    %c0_120 = arith.constant 0 : index
    %151 = vector.load %arg8[%c5_118, %c0_119, %c0_120] : memref<9x16x16xbf16, #tpu.memory_space<vmem>>, vector<1x16x16xbf16>
    %152 = vector.shape_cast %151 : vector<1x16x16xbf16> to vector<16x16xbf16>
    %cst_121 = arith.constant dense<0.000000e+00> : vector<16x256xf32>
    %153 = tpu.matmul %152, %150, %cst_121 {dimension_numbers = #tpu.dot_dimension_numbers<[1], [0], [0], [1], [0, 0, 1, 1], [], []>} : vector<16x16xbf16>, vector<16x256xbf16>, vector<16x256xf32> -> vector<16x256xf32>
    %154 = arith.addf %146, %153 : vector<16x256xf32>
    %c0_122 = arith.constant 0 : index
    %c143_123 = arith.constant 143 : index
    %155 = vector.load %arg14[%c0_122, %c143_123] : memref<16x512xbf16, #tpu.memory_space<vmem>>, vector<16x256xbf16>
    %c0_124 = arith.constant 0 : index
    %c0_125 = arith.constant 0 : index
    %156 = vector.load %arg3[%c0_124, %c0_125] : memref<3x256xbf16, #tpu.memory_space<vmem>>, vector<1x256xbf16>
    %157 = vector.broadcast %156 : vector<1x256xbf16> to vector<16x256xbf16>
    %158 = arith.mulf %155, %157 : vector<16x256xbf16>
    %c6_126 = arith.constant 6 : index
    %c0_127 = arith.constant 0 : index
    %c0_128 = arith.constant 0 : index
    %159 = vector.load %arg8[%c6_126, %c0_127, %c0_128] : memref<9x16x16xbf16, #tpu.memory_space<vmem>>, vector<1x16x16xbf16>
    %160 = vector.shape_cast %159 : vector<1x16x16xbf16> to vector<16x16xbf16>
    %cst_129 = arith.constant dense<0.000000e+00> : vector<16x256xf32>
    %161 = tpu.matmul %160, %158, %cst_129 {dimension_numbers = #tpu.dot_dimension_numbers<[1], [0], [0], [1], [0, 0, 1, 1], [], []>} : vector<16x16xbf16>, vector<16x256xbf16>, vector<16x256xf32> -> vector<16x256xf32>
    %162 = arith.addf %154, %161 : vector<16x256xf32>
    %c0_130 = arith.constant 0 : index
    %c144_131 = arith.constant 144 : index
    %163 = vector.load %arg14[%c0_130, %c144_131] : memref<16x512xbf16, #tpu.memory_space<vmem>>, vector<16x256xbf16>
    %c7_132 = arith.constant 7 : index
    %c0_133 = arith.constant 0 : index
    %c0_134 = arith.constant 0 : index
    %164 = vector.load %arg8[%c7_132, %c0_133, %c0_134] : memref<9x16x16xbf16, #tpu.memory_space<vmem>>, vector<1x16x16xbf16>
    %165 = vector.shape_cast %164 : vector<1x16x16xbf16> to vector<16x16xbf16>
    %cst_135 = arith.constant dense<0.000000e+00> : vector<16x256xf32>
    %166 = tpu.matmul %165, %163, %cst_135 {dimension_numbers = #tpu.dot_dimension_numbers<[1], [0], [0], [1], [0, 0, 1, 1], [], []>} : vector<16x16xbf16>, vector<16x256xbf16>, vector<16x256xf32> -> vector<16x256xf32>
    %167 = arith.addf %162, %166 : vector<16x256xf32>
    %c0_136 = arith.constant 0 : index
    %c145_137 = arith.constant 145 : index
    %168 = vector.load %arg14[%c0_136, %c145_137] : memref<16x512xbf16, #tpu.memory_space<vmem>>, vector<16x256xbf16>
    %c2_138 = arith.constant 2 : index
    %c0_139 = arith.constant 0 : index
    %169 = vector.load %arg3[%c2_138, %c0_139] : memref<3x256xbf16, #tpu.memory_space<vmem>>, vector<1x256xbf16>
    %170 = vector.broadcast %169 : vector<1x256xbf16> to vector<16x256xbf16>
    %171 = arith.mulf %168, %170 : vector<16x256xbf16>
    %c8_140 = arith.constant 8 : index
    %c0_141 = arith.constant 0 : index
    %c0_142 = arith.constant 0 : index
    %172 = vector.load %arg8[%c8_140, %c0_141, %c0_142] : memref<9x16x16xbf16, #tpu.memory_space<vmem>>, vector<1x16x16xbf16>
    %173 = vector.shape_cast %172 : vector<1x16x16xbf16> to vector<16x16xbf16>
    %cst_143 = arith.constant dense<0.000000e+00> : vector<16x256xf32>
    %174 = tpu.matmul %173, %171, %cst_143 {dimension_numbers = #tpu.dot_dimension_numbers<[1], [0], [0], [1], [0, 0, 1, 1], [], []>} : vector<16x16xbf16>, vector<16x256xbf16>, vector<16x256xf32> -> vector<16x256xf32>
    %175 = arith.addf %167, %174 : vector<16x256xf32>
    %c0_144 = arith.constant 0 : index
    %c0_145 = arith.constant 0 : index
    %176 = vector.load %arg9[%c0_144, %c0_145] : memref<16x1xf32, #tpu.memory_space<vmem>>, vector<16x1xf32>
    %177 = vector.broadcast %176 : vector<16x1xf32> to vector<16x256xf32>
    %178 = arith.addf %175, %177 : vector<16x256xf32>
    %c0_146 = arith.constant 0 : index
    %c0_147 = arith.constant 0 : index
    %179 = vector.load %arg10[%c0_146, %c0_147] : memref<16x1xf32, #tpu.memory_space<vmem>>, vector<16x1xf32>
    %c0_148 = arith.constant 0 : index
    %c0_149 = arith.constant 0 : index
    %180 = vector.load %arg11[%c0_148, %c0_149] : memref<16x1xf32, #tpu.memory_space<vmem>>, vector<16x1xf32>
    %181 = vector.broadcast %0 : vector<1x256xf32> to vector<16x256xf32>
    %182 = arith.mulf %178, %181 : vector<16x256xf32>
    %cst_150 = arith.constant dense<0.000000e+00> : vector<16xf32>
    %183 = vector.multi_reduction <add>, %182, %cst_150 [1] : vector<16x256xf32> to vector<16xf32>
    %184 = vector.shape_cast %183 : vector<16xf32> to vector<16x1xf32>
    %185 = arith.mulf %182, %182 : vector<16x256xf32>
    %cst_151 = arith.constant dense<0.000000e+00> : vector<16xf32>
    %186 = vector.multi_reduction <add>, %185, %cst_151 [1] : vector<16x256xf32> to vector<16xf32>
    %187 = vector.shape_cast %186 : vector<16xf32> to vector<16x1xf32>
    %cst_152 = arith.constant dense<0.000000e+00> : vector<16x1xf32>
    %188 = tpu.matmul %1, %184, %cst_152 {dimension_numbers = #tpu.dot_dimension_numbers<[1], [0], [0], [1], [0, 0, 1, 1], [], []>} : vector<16x16xf32>, vector<16x1xf32>, vector<16x1xf32> -> vector<16x1xf32>
    %cst_153 = arith.constant 5.120000e+02 : f32
    %189 = vector.broadcast %cst_153 : f32 to vector<16x1xf32>
    %190 = arith.divf %188, %189 : vector<16x1xf32>
    %cst_154 = arith.constant dense<0.000000e+00> : vector<16x1xf32>
    %191 = tpu.matmul %1, %187, %cst_154 {dimension_numbers = #tpu.dot_dimension_numbers<[1], [0], [0], [1], [0, 0, 1, 1], [], []>} : vector<16x16xf32>, vector<16x1xf32>, vector<16x1xf32> -> vector<16x1xf32>
    %cst_155 = arith.constant 5.120000e+02 : f32
    %192 = vector.broadcast %cst_155 : f32 to vector<16x1xf32>
    %193 = arith.divf %191, %192 : vector<16x1xf32>
    %194 = arith.mulf %190, %190 : vector<16x1xf32>
    %195 = arith.subf %193, %194 : vector<16x1xf32>
    %cst_156 = arith.constant 0.000000e+00 : f32
    %196 = vector.broadcast %cst_156 : f32 to vector<16x1xf32>
    %197 = arith.maximumf %195, %196 : vector<16x1xf32>
    %cst_157 = arith.constant 9.99999974E-6 : f32
    %198 = vector.broadcast %cst_157 : f32 to vector<16x1xf32>
    %199 = arith.addf %197, %198 : vector<16x1xf32>
    %200 = math.rsqrt %199 : vector<16x1xf32>
    %201 = vector.broadcast %190 : vector<16x1xf32> to vector<16x256xf32>
    %202 = arith.subf %178, %201 : vector<16x256xf32>
    %203 = vector.broadcast %200 : vector<16x1xf32> to vector<16x256xf32>
    %204 = arith.mulf %202, %203 : vector<16x256xf32>
    %205 = vector.broadcast %179 : vector<16x1xf32> to vector<16x256xf32>
    %206 = arith.mulf %204, %205 : vector<16x256xf32>
    %207 = vector.broadcast %180 : vector<16x1xf32> to vector<16x256xf32>
    %208 = arith.addf %206, %207 : vector<16x256xf32>
    %209 = arith.negf %208 : vector<16x256xf32>
    %210 = math.exp %209 : vector<16x256xf32>
    %cst_158 = arith.constant 1.000000e+00 : f32
    %211 = vector.broadcast %cst_158 : f32 to vector<16x256xf32>
    %212 = arith.addf %211, %210 : vector<16x256xf32>
    %213 = arith.divf %211, %212 : vector<16x256xf32>
    %214 = arith.mulf %208, %213 : vector<16x256xf32>
    %215 = vector.broadcast %0 : vector<1x256xf32> to vector<16x256xf32>
    %216 = arith.mulf %214, %215 : vector<16x256xf32>
    %c0_159 = arith.constant 0 : index
    %c0_160 = arith.constant 0 : index
    %c0_161 = arith.constant 0 : index
    %217 = vector.load %arg1[%c0_159, %c0_160, %c0_161] : memref<1x16x256xbf16, #tpu.memory_space<vmem>>, vector<1x16x256xbf16>
    %218 = vector.shape_cast %217 : vector<1x16x256xbf16> to vector<16x256xbf16>
    %219 = arith.extf %218 : vector<16x256xbf16> to vector<16x256xf32>
    %220 = arith.addf %216, %219 : vector<16x256xf32>
    %221 = arith.truncf %220 : vector<16x256xf32> to vector<16x256xbf16>
    %c0_162 = arith.constant 0 : index
    %c0_163 = arith.constant 0 : index
    %c0_164 = arith.constant 0 : index
    %222 = vector.load %arg13[%c0_162, %c0_163, %c0_164] : memref<1x16x256xbf16, #tpu.memory_space<vmem>>, vector<1x16x256xbf16>
    %223 = vector.shape_cast %222 : vector<1x16x256xbf16> to vector<16x256xbf16>
    %224 = vector.shape_cast %221 : vector<16x256xbf16> to vector<1x16x256xbf16>
    tpu.vector_store %arg13[%c0_162, %c0_163, %c0_164], %224 {strides = array<i32>} : memref<1x16x256xbf16, #tpu.memory_space<vmem>>, vector<1x16x256xbf16>,
    return
  }
  func.func @transform_0(%arg0: i32) -> (i32, i32, i32) {
    %c0_i32 = arith.constant 0 : i32
    %c0_i32_0 = arith.constant 0 : i32
    %c0_i32_1 = arith.constant 0 : i32
    return %arg0, %c0_i32, %c0_i32_0 : i32, i32, i32
  }
  func.func @transform_1(%arg0: i32) -> (i32, i32) {
    %c0_i32 = arith.constant 0 : i32
    %c0_i32_0 = arith.constant 0 : i32
    %c0_i32_1 = arith.constant 0 : i32
    return %c0_i32, %c0_i32_0 : i32, i32
  }
  func.func @transform_2(%arg0: i32) -> (i32, i32) {
    %c0_i32 = arith.constant 0 : i32
    %c0_i32_0 = arith.constant 0 : i32
    %c0_i32_1 = arith.constant 0 : i32
    return %c0_i32, %c0_i32_0 : i32, i32
  }
  func.func @transform_3(%arg0: i32) -> (i32, i32, i32) {
    %c0_i32 = arith.constant 0 : i32
    %c0_i32_0 = arith.constant 0 : i32
    %c0_i32_1 = arith.constant 0 : i32
    %c0_i32_2 = arith.constant 0 : i32
    return %c0_i32, %c0_i32_0, %c0_i32_1 : i32, i32, i32
  }
  func.func @transform_4(%arg0: i32) -> (i32, i32) {
    %c0_i32 = arith.constant 0 : i32
    %c0_i32_0 = arith.constant 0 : i32
    %c0_i32_1 = arith.constant 0 : i32
    return %c0_i32, %c0_i32_0 : i32, i32
  }
  func.func @transform_5(%arg0: i32) -> (i32, i32) {
    %c0_i32 = arith.constant 0 : i32
    %c0_i32_0 = arith.constant 0 : i32
    %c0_i32_1 = arith.constant 0 : i32
    return %c0_i32, %c0_i32_0 : i32, i32
  }
  func.func @transform_6(%arg0: i32) -> (i32, i32) {
    %c0_i32 = arith.constant 0 : i32
    %c0_i32_0 = arith.constant 0 : i32
    %c0_i32_1 = arith.constant 0 : i32
    return %c0_i32, %c0_i32_0 : i32, i32
  }
  func.func @transform_7(%arg0: i32) -> (i32, i32, i32) {
    %c0_i32 = arith.constant 0 : i32
    %c0_i32_0 = arith.constant 0 : i32
    %c0_i32_1 = arith.constant 0 : i32
    %c0_i32_2 = arith.constant 0 : i32
    return %c0_i32, %c0_i32_0, %c0_i32_1 : i32, i32, i32
  }
  func.func @transform_8(%arg0: i32) -> (i32, i32) {
    %c0_i32 = arith.constant 0 : i32
    %c0_i32_0 = arith.constant 0 : i32
    %c0_i32_1 = arith.constant 0 : i32
    return %c0_i32, %c0_i32_0 : i32, i32
  }
  func.func @transform_9(%arg0: i32) -> (i32, i32) {
    %c0_i32 = arith.constant 0 : i32
    %c0_i32_0 = arith.constant 0 : i32
    %c0_i32_1 = arith.constant 0 : i32
    return %c0_i32, %c0_i32_0 : i32, i32
  }
  func.func @transform_10(%arg0: i32) -> (i32, i32) {
    %c0_i32 = arith.constant 0 : i32
    %c0_i32_0 = arith.constant 0 : i32
    %c0_i32_1 = arith.constant 0 : i32
    return %c0_i32, %c0_i32_0 : i32, i32
  }
  func.func @transform_11(%arg0: i32) -> (i32, i32) {
    %c0_i32 = arith.constant 0 : i32
    %c0_i32_0 = arith.constant 0 : i32
    %c0_i32_1 = arith.constant 0 : i32
    return %c0_i32, %c0_i32_0 : i32, i32
  }
  func.func @transform_12(%arg0: i32) -> (i32, i32, i32) {
    %c0_i32 = arith.constant 0 : i32
    %c0_i32_0 = arith.constant 0 : i32
    %c0_i32_1 = arith.constant 0 : i32
    return %arg0, %c0_i32, %c0_i32_0 : i32, i32, i32
  }
}

module attributes {stable_mosaic.version = 11 : i64} {
  func.func @_upsample_block_kernel(%arg0: i32, %arg1: memref<1x8x256xbf16, #tpu.memory_space<vmem>>, %arg2: memref<1x16x256xbf16, #tpu.memory_space<vmem>>, %arg3: memref<1x256xf32, #tpu.memory_space<vmem>>, %arg4: memref<3x256xbf16, #tpu.memory_space<vmem>>, %arg5: memref<9x16x8xbf16, #tpu.memory_space<vmem>>, %arg6: memref<16x1xf32, #tpu.memory_space<vmem>>, %arg7: memref<9x16x16xbf16, #tpu.memory_space<vmem>>, %arg8: memref<16x1xf32, #tpu.memory_space<vmem>>, %arg9: memref<16x1xf32, #tpu.memory_space<vmem>>, %arg10: memref<16x1xf32, #tpu.memory_space<vmem>>, %arg11: memref<16x16xf32, #tpu.memory_space<vmem>>, %arg12: memref<1x16x256xbf16, #tpu.memory_space<vmem>>, %arg13: memref<8x512xbf16, #tpu.memory_space<vmem>>, %arg14: memref<16x512xbf16, #tpu.memory_space<vmem>>) attributes {dimension_semantics = [#tpu.dimension_semantics<parallel>], iteration_bounds = array<i64: 2>, scalar_prefetch = 0 : i64, scratch_operands = 2 : i64, tpu.core_type = #tpu.core_type<tc>, window_params = [{transform_indices = @transform_0, window_bounds = array<i64: 1, 8, 256>}, {transform_indices = @transform_1, window_bounds = array<i64: 1, 16, 256>}, {pipeline_mode = #tpu.pipeline_mode<synchronous>, transform_indices = @transform_2, window_bounds = array<i64: 1, 256>}, {pipeline_mode = #tpu.pipeline_mode<synchronous>, transform_indices = @transform_3, window_bounds = array<i64: 3, 256>}, {pipeline_mode = #tpu.pipeline_mode<synchronous>, transform_indices = @transform_4, window_bounds = array<i64: 9, 16, 8>}, {pipeline_mode = #tpu.pipeline_mode<synchronous>, transform_indices = @transform_5, window_bounds = array<i64: 16, 1>}, {pipeline_mode = #tpu.pipeline_mode<synchronous>, transform_indices = @transform_6, window_bounds = array<i64: 9, 16, 16>}, {pipeline_mode = #tpu.pipeline_mode<synchronous>, transform_indices = @transform_7, window_bounds = array<i64: 16, 1>}, {pipeline_mode = #tpu.pipeline_mode<synchronous>, transform_indices = @transform_8, window_bounds = array<i64: 16, 1>}, {pipeline_mode = #tpu.pipeline_mode<synchronous>, transform_indices = @transform_9, window_bounds = array<i64: 16, 1>}, {pipeline_mode = #tpu.pipeline_mode<synchronous>, transform_indices = @transform_10, window_bounds = array<i64: 16, 16>}, {transform_indices = @transform_11, window_bounds = array<i64: 1, 16, 256>}]} {
    %c0 = arith.constant 0 : index
    %c0_0 = arith.constant 0 : index
    %0 = vector.load %arg3[%c0, %c0_0] : memref<1x256xf32, #tpu.memory_space<vmem>>, vector<1x256xf32>
    %cst = arith.constant 0.000000e+00 : bf16
    %1 = vector.broadcast %cst : bf16 to vector<8x128xbf16>
    %c0_1 = arith.constant 0 : index
    %c0_2 = arith.constant 0 : index
    %2 = vector.load %arg13[%c0_1, %c0_2] : memref<8x512xbf16, #tpu.memory_space<vmem>>, vector<8x128xbf16>
    tpu.vector_store %arg13[%c0_1, %c0_2], %1 {strides = array<i32>} : memref<8x512xbf16, #tpu.memory_space<vmem>>, vector<8x128xbf16>,
    %cst_3 = arith.constant 0.000000e+00 : bf16
    %3 = vector.broadcast %cst_3 : bf16 to vector<8x128xbf16>
    %c0_4 = arith.constant 0 : index
    %c384 = arith.constant 384 : index
    %4 = vector.load %arg13[%c0_4, %c384] : memref<8x512xbf16, #tpu.memory_space<vmem>>, vector<8x128xbf16>
    tpu.vector_store %arg13[%c0_4, %c384], %3 {strides = array<i32>} : memref<8x512xbf16, #tpu.memory_space<vmem>>, vector<8x128xbf16>,
    %c0_5 = arith.constant 0 : index
    %c0_6 = arith.constant 0 : index
    %c0_7 = arith.constant 0 : index
    %5 = vector.load %arg1[%c0_5, %c0_6, %c0_7] : memref<1x8x256xbf16, #tpu.memory_space<vmem>>, vector<1x8x256xbf16>
    %6 = vector.shape_cast %5 : vector<1x8x256xbf16> to vector<8x256xbf16>
    %c0_8 = arith.constant 0 : index
    %c128 = arith.constant 128 : index
    %7 = vector.load %arg13[%c0_8, %c128] : memref<8x512xbf16, #tpu.memory_space<vmem>>, vector<8x256xbf16>
    tpu.vector_store %arg13[%c0_8, %c128], %6 {strides = array<i32>} : memref<8x512xbf16, #tpu.memory_space<vmem>>, vector<8x256xbf16>,
    %c0_9 = arith.constant 0 : index
    %c111 = arith.constant 111 : index
    %8 = vector.load %arg13[%c0_9, %c111] : memref<8x512xbf16, #tpu.memory_space<vmem>>, vector<8x256xbf16>
    %c0_10 = arith.constant 0 : index
    %c0_11 = arith.constant 0 : index
    %9 = vector.load %arg4[%c0_10, %c0_11] : memref<3x256xbf16, #tpu.memory_space<vmem>>, vector<1x256xbf16>
    %10 = vector.broadcast %9 : vector<1x256xbf16> to vector<8x256xbf16>
    %11 = arith.mulf %8, %10 : vector<8x256xbf16>
    %c0_12 = arith.constant 0 : index
    %c0_13 = arith.constant 0 : index
    %c0_14 = arith.constant 0 : index
    %12 = vector.load %arg5[%c0_12, %c0_13, %c0_14] : memref<9x16x8xbf16, #tpu.memory_space<vmem>>, vector<1x16x8xbf16>
    %13 = vector.shape_cast %12 : vector<1x16x8xbf16> to vector<16x8xbf16>
    %cst_15 = arith.constant dense<0.000000e+00> : vector<16x256xf32>
    %14 = tpu.matmul %13, %11, %cst_15 {dimension_numbers = #tpu.dot_dimension_numbers<[1], [0], [0], [1], [0, 0, 1, 1], [], []>} : vector<16x8xbf16>, vector<8x256xbf16>, vector<16x256xf32> -> vector<16x256xf32>
    %c0_16 = arith.constant 0 : index
    %c112 = arith.constant 112 : index
    %15 = vector.load %arg13[%c0_16, %c112] : memref<8x512xbf16, #tpu.memory_space<vmem>>, vector<8x256xbf16>
    %c1 = arith.constant 1 : index
    %c0_17 = arith.constant 0 : index
    %c0_18 = arith.constant 0 : index
    %16 = vector.load %arg5[%c1, %c0_17, %c0_18] : memref<9x16x8xbf16, #tpu.memory_space<vmem>>, vector<1x16x8xbf16>
    %17 = vector.shape_cast %16 : vector<1x16x8xbf16> to vector<16x8xbf16>
    %cst_19 = arith.constant dense<0.000000e+00> : vector<16x256xf32>
    %18 = tpu.matmul %17, %15, %cst_19 {dimension_numbers = #tpu.dot_dimension_numbers<[1], [0], [0], [1], [0, 0, 1, 1], [], []>} : vector<16x8xbf16>, vector<8x256xbf16>, vector<16x256xf32> -> vector<16x256xf32>
    %19 = arith.addf %14, %18 : vector<16x256xf32>
    %c0_20 = arith.constant 0 : index
    %c113 = arith.constant 113 : index
    %20 = vector.load %arg13[%c0_20, %c113] : memref<8x512xbf16, #tpu.memory_space<vmem>>, vector<8x256xbf16>
    %c2 = arith.constant 2 : index
    %c0_21 = arith.constant 0 : index
    %21 = vector.load %arg4[%c2, %c0_21] : memref<3x256xbf16, #tpu.memory_space<vmem>>, vector<1x256xbf16>
    %22 = vector.broadcast %21 : vector<1x256xbf16> to vector<8x256xbf16>
    %23 = arith.mulf %20, %22 : vector<8x256xbf16>
    %c2_22 = arith.constant 2 : index
    %c0_23 = arith.constant 0 : index
    %c0_24 = arith.constant 0 : index
    %24 = vector.load %arg5[%c2_22, %c0_23, %c0_24] : memref<9x16x8xbf16, #tpu.memory_space<vmem>>, vector<1x16x8xbf16>
    %25 = vector.shape_cast %24 : vector<1x16x8xbf16> to vector<16x8xbf16>
    %cst_25 = arith.constant dense<0.000000e+00> : vector<16x256xf32>
    %26 = tpu.matmul %25, %23, %cst_25 {dimension_numbers = #tpu.dot_dimension_numbers<[1], [0], [0], [1], [0, 0, 1, 1], [], []>} : vector<16x8xbf16>, vector<8x256xbf16>, vector<16x256xf32> -> vector<16x256xf32>
    %27 = arith.addf %19, %26 : vector<16x256xf32>
    %c0_26 = arith.constant 0 : index
    %c127 = arith.constant 127 : index
    %28 = vector.load %arg13[%c0_26, %c127] : memref<8x512xbf16, #tpu.memory_space<vmem>>, vector<8x256xbf16>
    %c0_27 = arith.constant 0 : index
    %c0_28 = arith.constant 0 : index
    %29 = vector.load %arg4[%c0_27, %c0_28] : memref<3x256xbf16, #tpu.memory_space<vmem>>, vector<1x256xbf16>
    %30 = vector.broadcast %29 : vector<1x256xbf16> to vector<8x256xbf16>
    %31 = arith.mulf %28, %30 : vector<8x256xbf16>
    %c3 = arith.constant 3 : index
    %c0_29 = arith.constant 0 : index
    %c0_30 = arith.constant 0 : index
    %32 = vector.load %arg5[%c3, %c0_29, %c0_30] : memref<9x16x8xbf16, #tpu.memory_space<vmem>>, vector<1x16x8xbf16>
    %33 = vector.shape_cast %32 : vector<1x16x8xbf16> to vector<16x8xbf16>
    %cst_31 = arith.constant dense<0.000000e+00> : vector<16x256xf32>
    %34 = tpu.matmul %33, %31, %cst_31 {dimension_numbers = #tpu.dot_dimension_numbers<[1], [0], [0], [1], [0, 0, 1, 1], [], []>} : vector<16x8xbf16>, vector<8x256xbf16>, vector<16x256xf32> -> vector<16x256xf32>
    %35 = arith.addf %27, %34 : vector<16x256xf32>
    %c0_32 = arith.constant 0 : index
    %c128_33 = arith.constant 128 : index
    %36 = vector.load %arg13[%c0_32, %c128_33] : memref<8x512xbf16, #tpu.memory_space<vmem>>, vector<8x256xbf16>
    %c4 = arith.constant 4 : index
    %c0_34 = arith.constant 0 : index
    %c0_35 = arith.constant 0 : index
    %37 = vector.load %arg5[%c4, %c0_34, %c0_35] : memref<9x16x8xbf16, #tpu.memory_space<vmem>>, vector<1x16x8xbf16>
    %38 = vector.shape_cast %37 : vector<1x16x8xbf16> to vector<16x8xbf16>
    %cst_36 = arith.constant dense<0.000000e+00> : vector<16x256xf32>
    %39 = tpu.matmul %38, %36, %cst_36 {dimension_numbers = #tpu.dot_dimension_numbers<[1], [0], [0], [1], [0, 0, 1, 1], [], []>} : vector<16x8xbf16>, vector<8x256xbf16>, vector<16x256xf32> -> vector<16x256xf32>
    %40 = arith.addf %35, %39 : vector<16x256xf32>
    %c0_37 = arith.constant 0 : index
    %c129 = arith.constant 129 : index
    %41 = vector.load %arg13[%c0_37, %c129] : memref<8x512xbf16, #tpu.memory_space<vmem>>, vector<8x256xbf16>
    %c2_38 = arith.constant 2 : index
    %c0_39 = arith.constant 0 : index
    %42 = vector.load %arg4[%c2_38, %c0_39] : memref<3x256xbf16, #tpu.memory_space<vmem>>, vector<1x256xbf16>
    %43 = vector.broadcast %42 : vector<1x256xbf16> to vector<8x256xbf16>
    %44 = arith.mulf %41, %43 : vector<8x256xbf16>
    %c5 = arith.constant 5 : index
    %c0_40 = arith.constant 0 : index
    %c0_41 = arith.constant 0 : index
    %45 = vector.load %arg5[%c5, %c0_40, %c0_41] : memref<9x16x8xbf16, #tpu.memory_space<vmem>>, vector<1x16x8xbf16>
    %46 = vector.shape_cast %45 : vector<1x16x8xbf16> to vector<16x8xbf16>
    %cst_42 = arith.constant dense<0.000000e+00> : vector<16x256xf32>
    %47 = tpu.matmul %46, %44, %cst_42 {dimension_numbers = #tpu.dot_dimension_numbers<[1], [0], [0], [1], [0, 0, 1, 1], [], []>} : vector<16x8xbf16>, vector<8x256xbf16>, vector<16x256xf32> -> vector<16x256xf32>
    %48 = arith.addf %40, %47 : vector<16x256xf32>
    %c0_43 = arith.constant 0 : index
    %c143 = arith.constant 143 : index
    %49 = vector.load %arg13[%c0_43, %c143] : memref<8x512xbf16, #tpu.memory_space<vmem>>, vector<8x256xbf16>
    %c0_44 = arith.constant 0 : index
    %c0_45 = arith.constant 0 : index
    %50 = vector.load %arg4[%c0_44, %c0_45] : memref<3x256xbf16, #tpu.memory_space<vmem>>, vector<1x256xbf16>
    %51 = vector.broadcast %50 : vector<1x256xbf16> to vector<8x256xbf16>
    %52 = arith.mulf %49, %51 : vector<8x256xbf16>
    %c6 = arith.constant 6 : index
    %c0_46 = arith.constant 0 : index
    %c0_47 = arith.constant 0 : index
    %53 = vector.load %arg5[%c6, %c0_46, %c0_47] : memref<9x16x8xbf16, #tpu.memory_space<vmem>>, vector<1x16x8xbf16>
    %54 = vector.shape_cast %53 : vector<1x16x8xbf16> to vector<16x8xbf16>
    %cst_48 = arith.constant dense<0.000000e+00> : vector<16x256xf32>
    %55 = tpu.matmul %54, %52, %cst_48 {dimension_numbers = #tpu.dot_dimension_numbers<[1], [0], [0], [1], [0, 0, 1, 1], [], []>} : vector<16x8xbf16>, vector<8x256xbf16>, vector<16x256xf32> -> vector<16x256xf32>
    %56 = arith.addf %48, %55 : vector<16x256xf32>
    %c0_49 = arith.constant 0 : index
    %c144 = arith.constant 144 : index
    %57 = vector.load %arg13[%c0_49, %c144] : memref<8x512xbf16, #tpu.memory_space<vmem>>, vector<8x256xbf16>
    %c7 = arith.constant 7 : index
    %c0_50 = arith.constant 0 : index
    %c0_51 = arith.constant 0 : index
    %58 = vector.load %arg5[%c7, %c0_50, %c0_51] : memref<9x16x8xbf16, #tpu.memory_space<vmem>>, vector<1x16x8xbf16>
    %59 = vector.shape_cast %58 : vector<1x16x8xbf16> to vector<16x8xbf16>
    %cst_52 = arith.constant dense<0.000000e+00> : vector<16x256xf32>
    %60 = tpu.matmul %59, %57, %cst_52 {dimension_numbers = #tpu.dot_dimension_numbers<[1], [0], [0], [1], [0, 0, 1, 1], [], []>} : vector<16x8xbf16>, vector<8x256xbf16>, vector<16x256xf32> -> vector<16x256xf32>
    %61 = arith.addf %56, %60 : vector<16x256xf32>
    %c0_53 = arith.constant 0 : index
    %c145 = arith.constant 145 : index
    %62 = vector.load %arg13[%c0_53, %c145] : memref<8x512xbf16, #tpu.memory_space<vmem>>, vector<8x256xbf16>
    %c2_54 = arith.constant 2 : index
    %c0_55 = arith.constant 0 : index
    %63 = vector.load %arg4[%c2_54, %c0_55] : memref<3x256xbf16, #tpu.memory_space<vmem>>, vector<1x256xbf16>
    %64 = vector.broadcast %63 : vector<1x256xbf16> to vector<8x256xbf16>
    %65 = arith.mulf %62, %64 : vector<8x256xbf16>
    %c8 = arith.constant 8 : index
    %c0_56 = arith.constant 0 : index
    %c0_57 = arith.constant 0 : index
    %66 = vector.load %arg5[%c8, %c0_56, %c0_57] : memref<9x16x8xbf16, #tpu.memory_space<vmem>>, vector<1x16x8xbf16>
    %67 = vector.shape_cast %66 : vector<1x16x8xbf16> to vector<16x8xbf16>
    %cst_58 = arith.constant dense<0.000000e+00> : vector<16x256xf32>
    %68 = tpu.matmul %67, %65, %cst_58 {dimension_numbers = #tpu.dot_dimension_numbers<[1], [0], [0], [1], [0, 0, 1, 1], [], []>} : vector<16x8xbf16>, vector<8x256xbf16>, vector<16x256xf32> -> vector<16x256xf32>
    %69 = arith.addf %61, %68 : vector<16x256xf32>
    %c0_59 = arith.constant 0 : index
    %c0_60 = arith.constant 0 : index
    %70 = vector.load %arg6[%c0_59, %c0_60] : memref<16x1xf32, #tpu.memory_space<vmem>>, vector<16x1xf32>
    %71 = vector.broadcast %70 : vector<16x1xf32> to vector<16x256xf32>
    %72 = arith.addf %69, %71 : vector<16x256xf32>
    %73 = arith.negf %72 : vector<16x256xf32>
    %74 = math.exp %73 : vector<16x256xf32>
    %cst_61 = arith.constant 1.000000e+00 : f32
    %75 = vector.broadcast %cst_61 : f32 to vector<16x256xf32>
    %76 = arith.addf %75, %74 : vector<16x256xf32>
    %77 = arith.divf %75, %76 : vector<16x256xf32>
    %78 = arith.mulf %72, %77 : vector<16x256xf32>
    %79 = vector.broadcast %0 : vector<1x256xf32> to vector<16x256xf32>
    %80 = arith.mulf %78, %79 : vector<16x256xf32>
    %cst_62 = arith.constant 0.000000e+00 : bf16
    %81 = vector.broadcast %cst_62 : bf16 to vector<16x128xbf16>
    %c0_63 = arith.constant 0 : index
    %c0_64 = arith.constant 0 : index
    %82 = vector.load %arg14[%c0_63, %c0_64] : memref<16x512xbf16, #tpu.memory_space<vmem>>, vector<16x128xbf16>
    tpu.vector_store %arg14[%c0_63, %c0_64], %81 {strides = array<i32>} : memref<16x512xbf16, #tpu.memory_space<vmem>>, vector<16x128xbf16>,
    %cst_65 = arith.constant 0.000000e+00 : bf16
    %83 = vector.broadcast %cst_65 : bf16 to vector<16x128xbf16>
    %c0_66 = arith.constant 0 : index
    %c384_67 = arith.constant 384 : index
    %84 = vector.load %arg14[%c0_66, %c384_67] : memref<16x512xbf16, #tpu.memory_space<vmem>>, vector<16x128xbf16>
    tpu.vector_store %arg14[%c0_66, %c384_67], %83 {strides = array<i32>} : memref<16x512xbf16, #tpu.memory_space<vmem>>, vector<16x128xbf16>,
    %85 = arith.truncf %80 : vector<16x256xf32> to vector<16x256xbf16>
    %c0_68 = arith.constant 0 : index
    %c128_69 = arith.constant 128 : index
    %86 = vector.load %arg14[%c0_68, %c128_69] : memref<16x512xbf16, #tpu.memory_space<vmem>>, vector<16x256xbf16>
    tpu.vector_store %arg14[%c0_68, %c128_69], %85 {strides = array<i32>} : memref<16x512xbf16, #tpu.memory_space<vmem>>, vector<16x256xbf16>,
    %c0_70 = arith.constant 0 : index
    %c111_71 = arith.constant 111 : index
    %87 = vector.load %arg14[%c0_70, %c111_71] : memref<16x512xbf16, #tpu.memory_space<vmem>>, vector<16x256xbf16>
    %c0_72 = arith.constant 0 : index
    %c0_73 = arith.constant 0 : index
    %88 = vector.load %arg4[%c0_72, %c0_73] : memref<3x256xbf16, #tpu.memory_space<vmem>>, vector<1x256xbf16>
    %89 = vector.broadcast %88 : vector<1x256xbf16> to vector<16x256xbf16>
    %90 = arith.mulf %87, %89 : vector<16x256xbf16>
    %c0_74 = arith.constant 0 : index
    %c0_75 = arith.constant 0 : index
    %c0_76 = arith.constant 0 : index
    %91 = vector.load %arg7[%c0_74, %c0_75, %c0_76] : memref<9x16x16xbf16, #tpu.memory_space<vmem>>, vector<1x16x16xbf16>
    %92 = vector.shape_cast %91 : vector<1x16x16xbf16> to vector<16x16xbf16>
    %cst_77 = arith.constant dense<0.000000e+00> : vector<16x256xf32>
    %93 = tpu.matmul %92, %90, %cst_77 {dimension_numbers = #tpu.dot_dimension_numbers<[1], [0], [0], [1], [0, 0, 1, 1], [], []>} : vector<16x16xbf16>, vector<16x256xbf16>, vector<16x256xf32> -> vector<16x256xf32>
    %c0_78 = arith.constant 0 : index
    %c112_79 = arith.constant 112 : index
    %94 = vector.load %arg14[%c0_78, %c112_79] : memref<16x512xbf16, #tpu.memory_space<vmem>>, vector<16x256xbf16>
    %c1_80 = arith.constant 1 : index
    %c0_81 = arith.constant 0 : index
    %c0_82 = arith.constant 0 : index
    %95 = vector.load %arg7[%c1_80, %c0_81, %c0_82] : memref<9x16x16xbf16, #tpu.memory_space<vmem>>, vector<1x16x16xbf16>
    %96 = vector.shape_cast %95 : vector<1x16x16xbf16> to vector<16x16xbf16>
    %cst_83 = arith.constant dense<0.000000e+00> : vector<16x256xf32>
    %97 = tpu.matmul %96, %94, %cst_83 {dimension_numbers = #tpu.dot_dimension_numbers<[1], [0], [0], [1], [0, 0, 1, 1], [], []>} : vector<16x16xbf16>, vector<16x256xbf16>, vector<16x256xf32> -> vector<16x256xf32>
    %98 = arith.addf %93, %97 : vector<16x256xf32>
    %c0_84 = arith.constant 0 : index
    %c113_85 = arith.constant 113 : index
    %99 = vector.load %arg14[%c0_84, %c113_85] : memref<16x512xbf16, #tpu.memory_space<vmem>>, vector<16x256xbf16>
    %c2_86 = arith.constant 2 : index
    %c0_87 = arith.constant 0 : index
    %100 = vector.load %arg4[%c2_86, %c0_87] : memref<3x256xbf16, #tpu.memory_space<vmem>>, vector<1x256xbf16>
    %101 = vector.broadcast %100 : vector<1x256xbf16> to vector<16x256xbf16>
    %102 = arith.mulf %99, %101 : vector<16x256xbf16>
    %c2_88 = arith.constant 2 : index
    %c0_89 = arith.constant 0 : index
    %c0_90 = arith.constant 0 : index
    %103 = vector.load %arg7[%c2_88, %c0_89, %c0_90] : memref<9x16x16xbf16, #tpu.memory_space<vmem>>, vector<1x16x16xbf16>
    %104 = vector.shape_cast %103 : vector<1x16x16xbf16> to vector<16x16xbf16>
    %cst_91 = arith.constant dense<0.000000e+00> : vector<16x256xf32>
    %105 = tpu.matmul %104, %102, %cst_91 {dimension_numbers = #tpu.dot_dimension_numbers<[1], [0], [0], [1], [0, 0, 1, 1], [], []>} : vector<16x16xbf16>, vector<16x256xbf16>, vector<16x256xf32> -> vector<16x256xf32>
    %106 = arith.addf %98, %105 : vector<16x256xf32>
    %c0_92 = arith.constant 0 : index
    %c127_93 = arith.constant 127 : index
    %107 = vector.load %arg14[%c0_92, %c127_93] : memref<16x512xbf16, #tpu.memory_space<vmem>>, vector<16x256xbf16>
    %c0_94 = arith.constant 0 : index
    %c0_95 = arith.constant 0 : index
    %108 = vector.load %arg4[%c0_94, %c0_95] : memref<3x256xbf16, #tpu.memory_space<vmem>>, vector<1x256xbf16>
    %109 = vector.broadcast %108 : vector<1x256xbf16> to vector<16x256xbf16>
    %110 = arith.mulf %107, %109 : vector<16x256xbf16>
    %c3_96 = arith.constant 3 : index
    %c0_97 = arith.constant 0 : index
    %c0_98 = arith.constant 0 : index
    %111 = vector.load %arg7[%c3_96, %c0_97, %c0_98] : memref<9x16x16xbf16, #tpu.memory_space<vmem>>, vector<1x16x16xbf16>
    %112 = vector.shape_cast %111 : vector<1x16x16xbf16> to vector<16x16xbf16>
    %cst_99 = arith.constant dense<0.000000e+00> : vector<16x256xf32>
    %113 = tpu.matmul %112, %110, %cst_99 {dimension_numbers = #tpu.dot_dimension_numbers<[1], [0], [0], [1], [0, 0, 1, 1], [], []>} : vector<16x16xbf16>, vector<16x256xbf16>, vector<16x256xf32> -> vector<16x256xf32>
    %114 = arith.addf %106, %113 : vector<16x256xf32>
    %c0_100 = arith.constant 0 : index
    %c128_101 = arith.constant 128 : index
    %115 = vector.load %arg14[%c0_100, %c128_101] : memref<16x512xbf16, #tpu.memory_space<vmem>>, vector<16x256xbf16>
    %c4_102 = arith.constant 4 : index
    %c0_103 = arith.constant 0 : index
    %c0_104 = arith.constant 0 : index
    %116 = vector.load %arg7[%c4_102, %c0_103, %c0_104] : memref<9x16x16xbf16, #tpu.memory_space<vmem>>, vector<1x16x16xbf16>
    %117 = vector.shape_cast %116 : vector<1x16x16xbf16> to vector<16x16xbf16>
    %cst_105 = arith.constant dense<0.000000e+00> : vector<16x256xf32>
    %118 = tpu.matmul %117, %115, %cst_105 {dimension_numbers = #tpu.dot_dimension_numbers<[1], [0], [0], [1], [0, 0, 1, 1], [], []>} : vector<16x16xbf16>, vector<16x256xbf16>, vector<16x256xf32> -> vector<16x256xf32>
    %119 = arith.addf %114, %118 : vector<16x256xf32>
    %c0_106 = arith.constant 0 : index
    %c129_107 = arith.constant 129 : index
    %120 = vector.load %arg14[%c0_106, %c129_107] : memref<16x512xbf16, #tpu.memory_space<vmem>>, vector<16x256xbf16>
    %c2_108 = arith.constant 2 : index
    %c0_109 = arith.constant 0 : index
    %121 = vector.load %arg4[%c2_108, %c0_109] : memref<3x256xbf16, #tpu.memory_space<vmem>>, vector<1x256xbf16>
    %122 = vector.broadcast %121 : vector<1x256xbf16> to vector<16x256xbf16>
    %123 = arith.mulf %120, %122 : vector<16x256xbf16>
    %c5_110 = arith.constant 5 : index
    %c0_111 = arith.constant 0 : index
    %c0_112 = arith.constant 0 : index
    %124 = vector.load %arg7[%c5_110, %c0_111, %c0_112] : memref<9x16x16xbf16, #tpu.memory_space<vmem>>, vector<1x16x16xbf16>
    %125 = vector.shape_cast %124 : vector<1x16x16xbf16> to vector<16x16xbf16>
    %cst_113 = arith.constant dense<0.000000e+00> : vector<16x256xf32>
    %126 = tpu.matmul %125, %123, %cst_113 {dimension_numbers = #tpu.dot_dimension_numbers<[1], [0], [0], [1], [0, 0, 1, 1], [], []>} : vector<16x16xbf16>, vector<16x256xbf16>, vector<16x256xf32> -> vector<16x256xf32>
    %127 = arith.addf %119, %126 : vector<16x256xf32>
    %c0_114 = arith.constant 0 : index
    %c143_115 = arith.constant 143 : index
    %128 = vector.load %arg14[%c0_114, %c143_115] : memref<16x512xbf16, #tpu.memory_space<vmem>>, vector<16x256xbf16>
    %c0_116 = arith.constant 0 : index
    %c0_117 = arith.constant 0 : index
    %129 = vector.load %arg4[%c0_116, %c0_117] : memref<3x256xbf16, #tpu.memory_space<vmem>>, vector<1x256xbf16>
    %130 = vector.broadcast %129 : vector<1x256xbf16> to vector<16x256xbf16>
    %131 = arith.mulf %128, %130 : vector<16x256xbf16>
    %c6_118 = arith.constant 6 : index
    %c0_119 = arith.constant 0 : index
    %c0_120 = arith.constant 0 : index
    %132 = vector.load %arg7[%c6_118, %c0_119, %c0_120] : memref<9x16x16xbf16, #tpu.memory_space<vmem>>, vector<1x16x16xbf16>
    %133 = vector.shape_cast %132 : vector<1x16x16xbf16> to vector<16x16xbf16>
    %cst_121 = arith.constant dense<0.000000e+00> : vector<16x256xf32>
    %134 = tpu.matmul %133, %131, %cst_121 {dimension_numbers = #tpu.dot_dimension_numbers<[1], [0], [0], [1], [0, 0, 1, 1], [], []>} : vector<16x16xbf16>, vector<16x256xbf16>, vector<16x256xf32> -> vector<16x256xf32>
    %135 = arith.addf %127, %134 : vector<16x256xf32>
    %c0_122 = arith.constant 0 : index
    %c144_123 = arith.constant 144 : index
    %136 = vector.load %arg14[%c0_122, %c144_123] : memref<16x512xbf16, #tpu.memory_space<vmem>>, vector<16x256xbf16>
    %c7_124 = arith.constant 7 : index
    %c0_125 = arith.constant 0 : index
    %c0_126 = arith.constant 0 : index
    %137 = vector.load %arg7[%c7_124, %c0_125, %c0_126] : memref<9x16x16xbf16, #tpu.memory_space<vmem>>, vector<1x16x16xbf16>
    %138 = vector.shape_cast %137 : vector<1x16x16xbf16> to vector<16x16xbf16>
    %cst_127 = arith.constant dense<0.000000e+00> : vector<16x256xf32>
    %139 = tpu.matmul %138, %136, %cst_127 {dimension_numbers = #tpu.dot_dimension_numbers<[1], [0], [0], [1], [0, 0, 1, 1], [], []>} : vector<16x16xbf16>, vector<16x256xbf16>, vector<16x256xf32> -> vector<16x256xf32>
    %140 = arith.addf %135, %139 : vector<16x256xf32>
    %c0_128 = arith.constant 0 : index
    %c145_129 = arith.constant 145 : index
    %141 = vector.load %arg14[%c0_128, %c145_129] : memref<16x512xbf16, #tpu.memory_space<vmem>>, vector<16x256xbf16>
    %c2_130 = arith.constant 2 : index
    %c0_131 = arith.constant 0 : index
    %142 = vector.load %arg4[%c2_130, %c0_131] : memref<3x256xbf16, #tpu.memory_space<vmem>>, vector<1x256xbf16>
    %143 = vector.broadcast %142 : vector<1x256xbf16> to vector<16x256xbf16>
    %144 = arith.mulf %141, %143 : vector<16x256xbf16>
    %c8_132 = arith.constant 8 : index
    %c0_133 = arith.constant 0 : index
    %c0_134 = arith.constant 0 : index
    %145 = vector.load %arg7[%c8_132, %c0_133, %c0_134] : memref<9x16x16xbf16, #tpu.memory_space<vmem>>, vector<1x16x16xbf16>
    %146 = vector.shape_cast %145 : vector<1x16x16xbf16> to vector<16x16xbf16>
    %cst_135 = arith.constant dense<0.000000e+00> : vector<16x256xf32>
    %147 = tpu.matmul %146, %144, %cst_135 {dimension_numbers = #tpu.dot_dimension_numbers<[1], [0], [0], [1], [0, 0, 1, 1], [], []>} : vector<16x16xbf16>, vector<16x256xbf16>, vector<16x256xf32> -> vector<16x256xf32>
    %148 = arith.addf %140, %147 : vector<16x256xf32>
    %c0_136 = arith.constant 0 : index
    %c0_137 = arith.constant 0 : index
    %149 = vector.load %arg8[%c0_136, %c0_137] : memref<16x1xf32, #tpu.memory_space<vmem>>, vector<16x1xf32>
    %150 = vector.broadcast %149 : vector<16x1xf32> to vector<16x256xf32>
    %151 = arith.addf %148, %150 : vector<16x256xf32>
    %c0_138 = arith.constant 0 : index
    %c0_139 = arith.constant 0 : index
    %152 = vector.load %arg11[%c0_138, %c0_139] : memref<16x16xf32, #tpu.memory_space<vmem>>, vector<16x16xf32>
    %c0_140 = arith.constant 0 : index
    %c0_141 = arith.constant 0 : index
    %153 = vector.load %arg9[%c0_140, %c0_141] : memref<16x1xf32, #tpu.memory_space<vmem>>, vector<16x1xf32>
    %c0_142 = arith.constant 0 : index
    %c0_143 = arith.constant 0 : index
    %154 = vector.load %arg10[%c0_142, %c0_143] : memref<16x1xf32, #tpu.memory_space<vmem>>, vector<16x1xf32>
    %155 = vector.broadcast %0 : vector<1x256xf32> to vector<16x256xf32>
    %156 = arith.mulf %151, %155 : vector<16x256xf32>
    %cst_144 = arith.constant dense<0.000000e+00> : vector<16xf32>
    %157 = vector.multi_reduction <add>, %156, %cst_144 [1] : vector<16x256xf32> to vector<16xf32>
    %158 = vector.shape_cast %157 : vector<16xf32> to vector<16x1xf32>
    %159 = arith.mulf %156, %156 : vector<16x256xf32>
    %cst_145 = arith.constant dense<0.000000e+00> : vector<16xf32>
    %160 = vector.multi_reduction <add>, %159, %cst_145 [1] : vector<16x256xf32> to vector<16xf32>
    %161 = vector.shape_cast %160 : vector<16xf32> to vector<16x1xf32>
    %cst_146 = arith.constant dense<0.000000e+00> : vector<16x1xf32>
    %162 = tpu.matmul %152, %158, %cst_146 {dimension_numbers = #tpu.dot_dimension_numbers<[1], [0], [0], [1], [0, 0, 1, 1], [], []>} : vector<16x16xf32>, vector<16x1xf32>, vector<16x1xf32> -> vector<16x1xf32>
    %cst_147 = arith.constant 5.120000e+02 : f32
    %163 = vector.broadcast %cst_147 : f32 to vector<16x1xf32>
    %164 = arith.divf %162, %163 : vector<16x1xf32>
    %cst_148 = arith.constant dense<0.000000e+00> : vector<16x1xf32>
    %165 = tpu.matmul %152, %161, %cst_148 {dimension_numbers = #tpu.dot_dimension_numbers<[1], [0], [0], [1], [0, 0, 1, 1], [], []>} : vector<16x16xf32>, vector<16x1xf32>, vector<16x1xf32> -> vector<16x1xf32>
    %cst_149 = arith.constant 5.120000e+02 : f32
    %166 = vector.broadcast %cst_149 : f32 to vector<16x1xf32>
    %167 = arith.divf %165, %166 : vector<16x1xf32>
    %168 = arith.mulf %164, %164 : vector<16x1xf32>
    %169 = arith.subf %167, %168 : vector<16x1xf32>
    %cst_150 = arith.constant 0.000000e+00 : f32
    %170 = vector.broadcast %cst_150 : f32 to vector<16x1xf32>
    %171 = arith.maximumf %169, %170 : vector<16x1xf32>
    %cst_151 = arith.constant 9.99999974E-6 : f32
    %172 = vector.broadcast %cst_151 : f32 to vector<16x1xf32>
    %173 = arith.addf %171, %172 : vector<16x1xf32>
    %174 = math.rsqrt %173 : vector<16x1xf32>
    %175 = vector.broadcast %164 : vector<16x1xf32> to vector<16x256xf32>
    %176 = arith.subf %151, %175 : vector<16x256xf32>
    %177 = vector.broadcast %174 : vector<16x1xf32> to vector<16x256xf32>
    %178 = arith.mulf %176, %177 : vector<16x256xf32>
    %179 = vector.broadcast %153 : vector<16x1xf32> to vector<16x256xf32>
    %180 = arith.mulf %178, %179 : vector<16x256xf32>
    %181 = vector.broadcast %154 : vector<16x1xf32> to vector<16x256xf32>
    %182 = arith.addf %180, %181 : vector<16x256xf32>
    %183 = arith.negf %182 : vector<16x256xf32>
    %184 = math.exp %183 : vector<16x256xf32>
    %cst_152 = arith.constant 1.000000e+00 : f32
    %185 = vector.broadcast %cst_152 : f32 to vector<16x256xf32>
    %186 = arith.addf %185, %184 : vector<16x256xf32>
    %187 = arith.divf %185, %186 : vector<16x256xf32>
    %188 = arith.mulf %182, %187 : vector<16x256xf32>
    %189 = vector.broadcast %0 : vector<1x256xf32> to vector<16x256xf32>
    %190 = arith.mulf %188, %189 : vector<16x256xf32>
    %c0_153 = arith.constant 0 : index
    %c0_154 = arith.constant 0 : index
    %c0_155 = arith.constant 0 : index
    %191 = vector.load %arg2[%c0_153, %c0_154, %c0_155] : memref<1x16x256xbf16, #tpu.memory_space<vmem>>, vector<1x16x256xbf16>
    %192 = vector.shape_cast %191 : vector<1x16x256xbf16> to vector<16x256xbf16>
    %193 = arith.extf %192 : vector<16x256xbf16> to vector<16x256xf32>
    %194 = arith.addf %190, %193 : vector<16x256xf32>
    %195 = arith.truncf %194 : vector<16x256xf32> to vector<16x256xbf16>
    %c0_156 = arith.constant 0 : index
    %c0_157 = arith.constant 0 : index
    %c0_158 = arith.constant 0 : index
    %196 = vector.load %arg12[%c0_156, %c0_157, %c0_158] : memref<1x16x256xbf16, #tpu.memory_space<vmem>>, vector<1x16x256xbf16>
    %197 = vector.shape_cast %196 : vector<1x16x256xbf16> to vector<16x256xbf16>
    %198 = vector.shape_cast %195 : vector<16x256xbf16> to vector<1x16x256xbf16>
    tpu.vector_store %arg12[%c0_156, %c0_157, %c0_158], %198 {strides = array<i32>} : memref<1x16x256xbf16, #tpu.memory_space<vmem>>, vector<1x16x256xbf16>,
    return
  }
  func.func @transform_0(%arg0: i32) -> (i32, i32, i32) {
    %c0_i32 = arith.constant 0 : i32
    %c0_i32_0 = arith.constant 0 : i32
    %c0_i32_1 = arith.constant 0 : i32
    return %arg0, %c0_i32, %c0_i32_0 : i32, i32, i32
  }
  func.func @transform_1(%arg0: i32) -> (i32, i32, i32) {
    %c0_i32 = arith.constant 0 : i32
    %c0_i32_0 = arith.constant 0 : i32
    %c0_i32_1 = arith.constant 0 : i32
    return %arg0, %c0_i32, %c0_i32_0 : i32, i32, i32
  }
  func.func @transform_2(%arg0: i32) -> (i32, i32) {
    %c0_i32 = arith.constant 0 : i32
    %c0_i32_0 = arith.constant 0 : i32
    %c0_i32_1 = arith.constant 0 : i32
    return %c0_i32, %c0_i32_0 : i32, i32
  }
  func.func @transform_3(%arg0: i32) -> (i32, i32) {
    %c0_i32 = arith.constant 0 : i32
    %c0_i32_0 = arith.constant 0 : i32
    %c0_i32_1 = arith.constant 0 : i32
    return %c0_i32, %c0_i32_0 : i32, i32
  }
  func.func @transform_4(%arg0: i32) -> (i32, i32, i32) {
    %c0_i32 = arith.constant 0 : i32
    %c0_i32_0 = arith.constant 0 : i32
    %c0_i32_1 = arith.constant 0 : i32
    %c0_i32_2 = arith.constant 0 : i32
    return %c0_i32, %c0_i32_0, %c0_i32_1 : i32, i32, i32
  }
  func.func @transform_5(%arg0: i32) -> (i32, i32) {
    %c0_i32 = arith.constant 0 : i32
    %c0_i32_0 = arith.constant 0 : i32
    %c0_i32_1 = arith.constant 0 : i32
    return %c0_i32, %c0_i32_0 : i32, i32
  }
  func.func @transform_6(%arg0: i32) -> (i32, i32, i32) {
    %c0_i32 = arith.constant 0 : i32
    %c0_i32_0 = arith.constant 0 : i32
    %c0_i32_1 = arith.constant 0 : i32
    %c0_i32_2 = arith.constant 0 : i32
    return %c0_i32, %c0_i32_0, %c0_i32_1 : i32, i32, i32
  }
  func.func @transform_7(%arg0: i32) -> (i32, i32) {
    %c0_i32 = arith.constant 0 : i32
    %c0_i32_0 = arith.constant 0 : i32
    %c0_i32_1 = arith.constant 0 : i32
    return %c0_i32, %c0_i32_0 : i32, i32
  }
  func.func @transform_8(%arg0: i32) -> (i32, i32) {
    %c0_i32 = arith.constant 0 : i32
    %c0_i32_0 = arith.constant 0 : i32
    %c0_i32_1 = arith.constant 0 : i32
    return %c0_i32, %c0_i32_0 : i32, i32
  }
  func.func @transform_9(%arg0: i32) -> (i32, i32) {
    %c0_i32 = arith.constant 0 : i32
    %c0_i32_0 = arith.constant 0 : i32
    %c0_i32_1 = arith.constant 0 : i32
    return %c0_i32, %c0_i32_0 : i32, i32
  }
  func.func @transform_10(%arg0: i32) -> (i32, i32) {
    %c0_i32 = arith.constant 0 : i32
    %c0_i32_0 = arith.constant 0 : i32
    %c0_i32_1 = arith.constant 0 : i32
    return %c0_i32, %c0_i32_0 : i32, i32
  }
  func.func @transform_11(%arg0: i32) -> (i32, i32, i32) {
    %c0_i32 = arith.constant 0 : i32
    %c0_i32_0 = arith.constant 0 : i32
    %c0_i32_1 = arith.constant 0 : i32
    return %arg0, %c0_i32, %c0_i32_0 : i32, i32, i32
  }
}

</mosaic_0001>

<llo_original>
// kernel: decoder_stage.4
$region0: #{decoder_stage.4}
  #allocation0 [shape = 'u32[]', space=smem, size = 0x4, offset = 0x4, fixed_abs, tag = 'smem constant byte address 0x4 - core index']
  #allocation1 [shape = 'u32[144,128]{1,0:T(1,128)}', space=vmem, size = 0x12000, scoped, tag = 'internal scratch']
  #allocation2 [shape = 'bf16[8,512]{1,0:T(8,128)(2,1)}', space=vmem, size = 0x2000, scoped, tag = 'scratch operand']
  #allocation3 [shape = 'bf16[16,512]{1,0:T(16,128)(2,1)}', space=vmem, size = 0x4000, scoped, tag = 'scratch operand']
  %s0 = inlined_call_operand.vmem [shape: bf16[2,8,256], index: 0, kind: input, shape index: {}]
  %s1 = inlined_call_operand.vmem [shape: bf16[2,16,256], index: 1, kind: input, shape index: {}]
  %s2 = inlined_call_operand.vmem [shape: f32[1,256], index: 2, kind: input, shape index: {}]
  %s3 = inlined_call_operand.vmem [shape: bf16[3,256], index: 3, kind: input, shape index: {}]
  %s4 = inlined_call_operand.vmem [shape: bf16[9,16,8], index: 4, kind: input, shape index: {}]
  %s5 = inlined_call_operand.vmem [shape: f32[16,1], index: 5, kind: input, shape index: {}]
  %s6 = inlined_call_operand.vmem [shape: bf16[9,16,16], index: 6, kind: input, shape index: {}]
  %s7 = inlined_call_operand.vmem [shape: f32[16,1], index: 7, kind: input, shape index: {}]
  %s8 = inlined_call_operand.vmem [shape: f32[16,1], index: 8, kind: input, shape index: {}]
  %s9 = inlined_call_operand.vmem [shape: f32[16,1], index: 9, kind: input, shape index: {}]
  %s10 = inlined_call_operand.vmem [shape: f32[16,16], index: 10, kind: input, shape index: {}]
  %s11 = inlined_call_operand.vmem [shape: bf16[2,16,256], index: 11, kind: output, shape index: {}]
  %s12 = sld [smem:[#allocation0]]
  $region77: #{decoder_stage.4} parent=0
    _
  %s14 = ssub.s32 1, %s12
  %s15 = scalar_select 0, %s14, %s12
  loop: start=0, step=1, limit=4
  $region2: #{decoder_stage.4} parent=0 // loop_pre_header
    _
  $region3: #{decoder_stage.4} parent=0 // loop_header
    %s17 = sphi 0, %s21
    %p18 = scmp.ge.s32.totalorder %s17, 4
    %s27 = sphi 0, %s29
    %s30 = sphi 0, %s27
    %s31 = sphi 0, %s30
    %s47 = sphi 0, %s31
    %s53 = sphi 0, %s55
    %s56 = sphi 0, %s53
    %s57 = sphi 0, %s56
    %s73 = sphi 0, %s57
    %s77 = sphi 0, %s77
    %s79 = sphi 0, %s77
    %s80 = sphi 0, %s79
    %s94 = sphi 0, %s80
    %s98 = sphi 0, %s98
    %s100 = sphi 0, %s98
    %s101 = sphi 0, %s100
    %s115 = sphi 0, %s101
    %s119 = sphi 0, %s119
    %s121 = sphi 0, %s119
    %s122 = sphi 0, %s121
    %s136 = sphi 0, %s122
    %s140 = sphi 0, %s140
    %s142 = sphi 0, %s140
    %s143 = sphi 0, %s142
    %s157 = sphi 0, %s143
    %s161 = sphi 0, %s161
    %s163 = sphi 0, %s161
    %s164 = sphi 0, %s163
    %s178 = sphi 0, %s164
    %s182 = sphi 0, %s182
    %s184 = sphi 0, %s182
    %s185 = sphi 0, %s184
    %s199 = sphi 0, %s185
    %s203 = sphi 0, %s203
    %s205 = sphi 0, %s203
    %s206 = sphi 0, %s205
    %s220 = sphi 0, %s206
    %s224 = sphi 0, %s224
    %s226 = sphi 0, %s224
    %s227 = sphi 0, %s226
    %s241 = sphi 0, %s227
    %s245 = sphi 0, %s245
    %s247 = sphi 0, %s245
    %s248 = sphi 0, %s247
    %s262 = sphi 0, %s248
    %s268 = sphi 0, %s270
    %s271 = sphi 0, %s268
    %s272 = sphi 0, %s271
    %s288 = sphi 0, %s272
  $region4: #{decoder_stage.4} parent=0 // loop_header_branch
    %20 = sbr.rel (%p18) target = $region8
  $region5: #{decoder_stage.4} parent=0 // loop_body
    %s22 = ssub.s32 %s17, 1
    %s23 = ssub.s32 %s17, 2
    %s24 = sadd.s32 %s17, 1
    %s25 = ssub.s32 %s17, %s24
    %p26 = scmp.eq.s32.totalorder %s25, 0
    %s28 = sadd.s32 %s27, 1
    %s29 = scalar_select %p26, %s27, %s28
    %p32 = pneg %p26
    %p33 = scmp.eq.s32.totalorder %s17, 1
    %p34 = por %p32, %p33
    %p35 = scmp.ne.s32.totalorder %s27, %s30
    %p36 = scmp.eq.s32.totalorder %s17, 0
    %p37 = por %p35, %p36
    %p38 = scmp.ne.s32.totalorder %s27, %s30
    %p39 = scmp.eq.s32.totalorder %s22, 1
    %p40 = por %p38, %p39
    %p41 = scmp.ne.s32.totalorder %s30, %s31
    %p42 = scmp.eq.s32.totalorder %s22, 0
    %p43 = por %p41, %p42
    %p44 = scmp.ne.s32.totalorder %s30, %s31
    %p45 = scmp.eq.s32.totalorder %s23, 1
    %p46 = por %p44, %p45
    %p48 = scmp.ne.s32.totalorder %s31, %s47
    %p49 = scmp.eq.s32.totalorder %s23, 0
    %p50 = por %p48, %p49
    %s51 = ssub.s32 %s17, %s24
    %p52 = scmp.eq.s32.totalorder %s51, 0
    %s54 = sadd.s32 %s53, 1
    %s55 = scalar_select %p52, %s53, %s54
    %p58 = pneg %p52
    %p59 = scmp.eq.s32.totalorder %s17, 1
    %p60 = por %p58, %p59
    %p61 = scmp.ne.s32.totalorder %s53, %s56
    %p62 = scmp.eq.s32.totalorder %s17, 0
    %p63 = por %p61, %p62
    %p64 = scmp.ne.s32.totalorder %s53, %s56
    %p65 = scmp.eq.s32.totalorder %s22, 1
    %p66 = por %p64, %p65
    %p67 = scmp.ne.s32.totalorder %s56, %s57
    %p68 = scmp.eq.s32.totalorder %s22, 0
    %p69 = por %p67, %p68
    %p70 = scmp.ne.s32.totalorder %s56, %s57
    %p71 = scmp.eq.s32.totalorder %s23, 1
    %p72 = por %p70, %p71
    %p74 = scmp.ne.s32.totalorder %s57, %s73
    %p75 = scmp.eq.s32.totalorder %s23, 0
    %p76 = por %p74, %p75
    %s78 = sadd.s32 %s77, 1
    %p81 = scmp.eq.s32.totalorder %s17, 1
    %p82 = scmp.ne.s32.totalorder %s77, %s79
    %p83 = scmp.eq.s32.totalorder %s17, 0
    %p84 = por %p82, %p83
    %p85 = scmp.ne.s32.totalorder %s77, %s79
    %p86 = scmp.eq.s32.totalorder %s22, 1
    %p87 = por %p85, %p86
    %p88 = scmp.ne.s32.totalorder %s79, %s80
    %p89 = scmp.eq.s32.totalorder %s22, 0
    %p90 = por %p88, %p89
    %p91 = scmp.ne.s32.totalorder %s79, %s80
    %p92 = scmp.eq.s32.totalorder %s23, 1
    %p93 = por %p91, %p92
    %p95 = scmp.ne.s32.totalorder %s80, %s94
    %p96 = scmp.eq.s32.totalorder %s23, 0
    %p97 = por %p95, %p96
    %s99 = sadd.s32 %s98, 1
    %p102 = scmp.eq.s32.totalorder %s17, 1
    %p103 = scmp.ne.s32.totalorder %s98, %s100
    %p104 = scmp.eq.s32.totalorder %s17, 0
    %p105 = por %p103, %p104
    %p106 = scmp.ne.s32.totalorder %s98, %s100
    %p107 = scmp.eq.s32.totalorder %s22, 1
    %p108 = por %p106, %p107
    %p109 = scmp.ne.s32.totalorder %s100, %s101
    %p110 = scmp.eq.s32.totalorder %s22, 0
    %p111 = por %p109, %p110
    %p112 = scmp.ne.s32.totalorder %s100, %s101
    %p113 = scmp.eq.s32.totalorder %s23, 1
    %p114 = por %p112, %p113
    %p116 = scmp.ne.s32.totalorder %s101, %s115
    %p117 = scmp.eq.s32.totalorder %s23, 0
    %p118 = por %p116, %p117
    %s120 = sadd.s32 %s119, 1
    %p123 = scmp.eq.s32.totalorder %s17, 1
    %p124 = scmp.ne.s32.totalorder %s119, %s121
    %p125 = scmp.eq.s32.totalorder %s17, 0
    %p126 = por %p124, %p125
    %p127 = scmp.ne.s32.totalorder %s119, %s121
    %p128 = scmp.eq.s32.totalorder %s22, 1
    %p129 = por %p127, %p128
    %p130 = scmp.ne.s32.totalorder %s121, %s122
    %p131 = scmp.eq.s32.totalorder %s22, 0
    %p132 = por %p130, %p131
    %p133 = scmp.ne.s32.totalorder %s121, %s122
    %p134 = scmp.eq.s32.totalorder %s23, 1
    %p135 = por %p133, %p134
    %p137 = scmp.ne.s32.totalorder %s122, %s136
    %p138 = scmp.eq.s32.totalorder %s23, 0
    %p139 = por %p137, %p138
    %s141 = sadd.s32 %s140, 1
    %p144 = scmp.eq.s32.totalorder %s17, 1
    %p145 = scmp.ne.s32.totalorder %s140, %s142
    %p146 = scmp.eq.s32.totalorder %s17, 0
    %p147 = por %p145, %p146
    %p148 = scmp.ne.s32.totalorder %s140, %s142
    %p149 = scmp.eq.s32.totalorder %s22, 1
    %p150 = por %p148, %p149
    %p151 = scmp.ne.s32.totalorder %s142, %s143
    %p152 = scmp.eq.s32.totalorder %s22, 0
    %p153 = por %p151, %p152
    %p154 = scmp.ne.s32.totalorder %s142, %s143
    %p155 = scmp.eq.s32.totalorder %s23, 1
    %p156 = por %p154, %p155
    %p158 = scmp.ne.s32.totalorder %s143, %s157
    %p159 = scmp.eq.s32.totalorder %s23, 0
    %p160 = por %p158, %p159
    %s162 = sadd.s32 %s161, 1
    %p165 = scmp.eq.s32.totalorder %s17, 1
    %p166 = scmp.ne.s32.totalorder %s161, %s163
    %p167 = scmp.eq.s32.totalorder %s17, 0
    %p168 = por %p166, %p167
    %p169 = scmp.ne.s32.totalorder %s161, %s163
    %p170 = scmp.eq.s32.totalorder %s22, 1
    %p171 = por %p169, %p170
    %p172 = scmp.ne.s32.totalorder %s163, %s164
    %p173 = scmp.eq.s32.totalorder %s22, 0
    %p174 = por %p172, %p173
    %p175 = scmp.ne.s32.totalorder %s163, %s164
    %p176 = scmp.eq.s32.totalorder %s23, 1
    %p177 = por %p175, %p176
    %p179 = scmp.ne.s32.totalorder %s164, %s178
    %p180 = scmp.eq.s32.totalorder %s23, 0
    %p181 = por %p179, %p180
    %s183 = sadd.s32 %s182, 1
    %p186 = scmp.eq.s32.totalorder %s17, 1
    %p187 = scmp.ne.s32.totalorder %s182, %s184
    %p188 = scmp.eq.s32.totalorder %s17, 0
    %p189 = por %p187, %p188
    %p190 = scmp.ne.s32.totalorder %s182, %s184
    %p191 = scmp.eq.s32.totalorder %s22, 1
    %p192 = por %p190, %p191
    %p193 = scmp.ne.s32.totalorder %s184, %s185
    %p194 = scmp.eq.s32.totalorder %s22, 0
    %p195 = por %p193, %p194
    %p196 = scmp.ne.s32.totalorder %s184, %s185
    %p197 = scmp.eq.s32.totalorder %s23, 1
    %p198 = por %p196, %p197
    %p200 = scmp.ne.s32.totalorder %s185, %s199
    %p201 = scmp.eq.s32.totalorder %s23, 0
    %p202 = por %p200, %p201
    %s204 = sadd.s32 %s203, 1
    %p207 = scmp.eq.s32.totalorder %s17, 1
    %p208 = scmp.ne.s32.totalorder %s203, %s205
    %p209 = scmp.eq.s32.totalorder %s17, 0
    %p210 = por %p208, %p209
    %p211 = scmp.ne.s32.totalorder %s203, %s205
    %p212 = scmp.eq.s32.totalorder %s22, 1
    %p213 = por %p211, %p212
    %p214 = scmp.ne.s32.totalorder %s205, %s206
    %p215 = scmp.eq.s32.totalorder %s22, 0
    %p216 = por %p214, %p215
    %p217 = scmp.ne.s32.totalorder %s205, %s206
    %p218 = scmp.eq.s32.totalorder %s23, 1
    %p219 = por %p217, %p218
    %p221 = scmp.ne.s32.totalorder %s206, %s220
    %p222 = scmp.eq.s32.totalorder %s23, 0
    %p223 = por %p221, %p222
    %s225 = sadd.s32 %s224, 1
    %p228 = scmp.eq.s32.totalorder %s17, 1
    %p229 = scmp.ne.s32.totalorder %s224, %s226
    %p230 = scmp.eq.s32.totalorder %s17, 0
    %p231 = por %p229, %p230
    %p232 = scmp.ne.s32.totalorder %s224, %s226
    %p233 = scmp.eq.s32.totalorder %s22, 1
    %p234 = por %p232, %p233
    %p235 = scmp.ne.s32.totalorder %s226, %s227
    %p236 = scmp.eq.s32.totalorder %s22, 0
    %p237 = por %p235, %p236
    %p238 = scmp.ne.s32.totalorder %s226, %s227
    %p239 = scmp.eq.s32.totalorder %s23, 1
    %p240 = por %p238, %p239
    %p242 = scmp.ne.s32.totalorder %s227, %s241
    %p243 = scmp.eq.s32.totalorder %s23, 0
    %p244 = por %p242, %p243
    %s246 = sadd.s32 %s245, 1
    %p249 = scmp.eq.s32.totalorder %s17, 1
    %p250 = scmp.ne.s32.totalorder %s245, %s247
    %p251 = scmp.eq.s32.totalorder %s17, 0
    %p252 = por %p250, %p251
    %p253 = scmp.ne.s32.totalorder %s245, %s247
    %p254 = scmp.eq.s32.totalorder %s22, 1
    %p255 = por %p253, %p254
    %p256 = scmp.ne.s32.totalorder %s247, %s248
    %p257 = scmp.eq.s32.totalorder %s22, 0
    %p258 = por %p256, %p257
    %p259 = scmp.ne.s32.totalorder %s247, %s248
    %p260 = scmp.eq.s32.totalorder %s23, 1
    %p261 = por %p259, %p260
    %p263 = scmp.ne.s32.totalorder %s248, %s262
    %p264 = scmp.eq.s32.totalorder %s23, 0
    %p265 = por %p263, %p264
    %s266 = ssub.s32 %s17, %s24
    %p267 = scmp.eq.s32.totalorder %s266, 0
    %s269 = sadd.s32 %s268, 1
    %s270 = scalar_select %p267, %s268, %s269
    %p273 = pneg %p267
    %p274 = scmp.eq.s32.totalorder %s17, 1
    %p275 = por %p273, %p274
    %p276 = scmp.ne.s32.totalorder %s268, %s271
    %p277 = scmp.eq.s32.totalorder %s17, 0
    %p278 = por %p276, %p277
    %p279 = scmp.ne.s32.totalorder %s268, %s271
    %p280 = scmp.eq.s32.totalorder %s22, 1
    %p281 = por %p279, %p280
    %p282 = scmp.ne.s32.totalorder %s271, %s272
    %p283 = scmp.eq.s32.totalorder %s22, 0
    %p284 = por %p282, %p283
    %p285 = scmp.ne.s32.totalorder %s271, %s272
    %p286 = scmp.eq.s32.totalorder %s23, 1
    %p287 = por %p285, %p286
    %p289 = scmp.ne.s32.totalorder %s272, %s288
    %p290 = scmp.eq.s32.totalorder %s23, 0
    %p291 = por %p289, %p290
    %p292 = scmp.le.s32.totalorder 1, %s17
    %p293 = scmp.lt.s32.totalorder %s17, 3
    %p294 = pnand %p292, %p293
    %p295 = pneg %p294
    // Predicated region
    $region9: #{decoder_stage.4} parent=5 // pred_check
      _
    $region10: #{decoder_stage.4} parent=5 // pred_check_branch
      %297 = sbr.rel (%p294) target = $region12
    $region11: #{decoder_stage.4} parent=5 // pred_region
      %s298 = ssub.s32 %s17, 1
      // Predicated region
      $region13: #{decoder_stage.4} parent=11 // pred_check
        %p299 = pneg %p90
      $region14: #{decoder_stage.4} parent=11 // pred_check_branch
        %301 = sbr.rel (%p299) target = $region16
      $region15: #{decoder_stage.4} parent=11 // pred_region
        _
      $region16: #{decoder_stage.4} parent=11 // pred_fallthru
        _
      // Predicated region
      $region17: #{decoder_stage.4} parent=11 // pred_check
        %p302 = pneg %p111
      $region18: #{decoder_stage.4} parent=11 // pred_check_branch
        %304 = sbr.rel (%p302) target = $region20
      $region19: #{decoder_stage.4} parent=11 // pred_region
        _
      $region20: #{decoder_stage.4} parent=11 // pred_fallthru
        _
      // Predicated region
      $region21: #{decoder_stage.4} parent=11 // pred_check
        %p305 = pneg %p132
      $region22: #{decoder_stage.4} parent=11 // pred_check_branch
        %307 = sbr.rel (%p305) target = $region24
      $region23: #{decoder_stage.4} parent=11 // pred_region
        _
      $region24: #{decoder_stage.4} parent=11 // pred_fallthru
        _
      // Predicated region
      $region25: #{decoder_stage.4} parent=11 // pred_check
        %p308 = pneg %p153
      $region26: #{decoder_stage.4} parent=11 // pred_check_branch
        %310 = sbr.rel (%p308) target = $region28
      $region27: #{decoder_stage.4} parent=11 // pred_region
        _
      $region28: #{decoder_stage.4} parent=11 // pred_fallthru
        _
      // Predicated region
      $region29: #{decoder_stage.4} parent=11 // pred_check
        %p311 = pneg %p174
      $region30: #{decoder_stage.4} parent=11 // pred_check_branch
        %313 = sbr.rel (%p311) target = $region32
      $region31: #{decoder_stage.4} parent=11 // pred_region
        _
      $region32: #{decoder_stage.4} parent=11 // pred_fallthru
        _
      // Predicated region
      $region33: #{decoder_stage.4} parent=11 // pred_check
        %p314 = pneg %p195
      $region34: #{decoder_stage.4} parent=11 // pred_check_branch
        %316 = sbr.rel (%p314) target = $region36
      $region35: #{decoder_stage.4} parent=11 // pred_region
        _
      $region36: #{decoder_stage.4} parent=11 // pred_fallthru
        _
      // Predicated region
      $region37: #{decoder_stage.4} parent=11 // pred_check
        %p317 = pneg %p216
      $region38: #{decoder_stage.4} parent=11 // pred_check_branch
        %319 = sbr.rel (%p317) target = $region40
      $region39: #{decoder_stage.4} parent=11 // pred_region
        _
      $region40: #{decoder_stage.4} parent=11 // pred_fallthru
        _
      // Predicated region
      $region41: #{decoder_stage.4} parent=11 // pred_check
        %p320 = pneg %p237
      $region42: #{decoder_stage.4} parent=11 // pred_check_branch
        %322 = sbr.rel (%p320) target = $region44
      $region43: #{decoder_stage.4} parent=11 // pred_region
        _
      $region44: #{decoder_stage.4} parent=11 // pred_fallthru
        _
      // Predicated region
      $region45: #{decoder_stage.4} parent=11 // pred_check
        %p323 = pneg %p258
      $region46: #{decoder_stage.4} parent=11 // pred_check_branch
        %325 = sbr.rel (%p323) target = $region48
      $region47: #{decoder_stage.4} parent=11 // pred_region
        _
      $region48: #{decoder_stage.4} parent=11 // pred_fallthru
        _
    $region12: #{decoder_stage.4} parent=5 // pred_fallthru
      _
    %p326 = scmp.lt.s32.totalorder %s17, 2
    // Predicated region
    $region49: #{decoder_stage.4} parent=5 // pred_check
      %p327 = pneg %p326
    $region50: #{decoder_stage.4} parent=5 // pred_check_branch
      %329 = sbr.rel (%p327) target = $region52
    $region51: #{decoder_stage.4} parent=5 // pred_region
      // Predicated region
      $region53: #{decoder_stage.4} parent=51 // pred_check
        %p330 = pneg %p37
      $region54: #{decoder_stage.4} parent=51 // pred_check_branch
        %332 = sbr.rel (%p330) target = $region56
      $region55: #{decoder_stage.4} parent=51 // pred_region
        %p333 = scmp.lt.s32.totalorder %s17, 1
        %s334 = scalar_select %p333, %s17, 1
        %s335 = smul.addr %s334, 2
        %s336 = smul.addr %s335, 4
        %s337 = scalar_lea.vmem %s0, %s336
      $region56: #{decoder_stage.4} parent=51 // pred_fallthru
        _
      // Predicated region
      $region57: #{decoder_stage.4} parent=51 // pred_check
        %p338 = pneg %p63
      $region58: #{decoder_stage.4} parent=51 // pred_check_branch
        %340 = sbr.rel (%p338) target = $region60
      $region59: #{decoder_stage.4} parent=51 // pred_region
        %p341 = scmp.lt.s32.totalorder %s17, 1
        %s342 = scalar_select %p341, %s17, 1
        %s343 = smul.addr %s342, 4
        %s344 = smul.addr %s343, 4
        %s345 = scalar_lea.vmem %s1, %s344
      $region60: #{decoder_stage.4} parent=51 // pred_fallthru
        _
    $region52: #{decoder_stage.4} parent=5 // pred_fallthru
      _
    %p346 = scmp.le.s32.totalorder 1, %s17
    %p347 = scmp.lt.s32.totalorder %s17, 3
    %p348 = pnand %p346, %p347
    %p349 = pneg %p348
    // Predicated region
    $region61: #{decoder_stage.4} parent=5 // pred_check
      _
    $region62: #{decoder_stage.4} parent=5 // pred_check_branch
      %351 = sbr.rel (%p348) target = $region64
    $region63: #{decoder_stage.4} parent=5 // pred_region
      %s352 = ssub.s32 %s17, 1
      %p353 = scmp.lt.s32.totalorder %s22, 1
      %s354 = scalar_select %p353, %s22, 1
      %s355 = smul.addr %s354, 2
      %s356 = smul.addr %s355, 4
      %s357 = scalar_lea.vmem %s0, %s356
      %p358 = pneg %p43
      %p359 = pneg %p40
      %p360 = scmp.lt.s32.totalorder %s22, 1
      %s361 = scalar_select %p360, %s22, 1
      %s362 = smul.addr %s361, 4
      %s363 = smul.addr %s362, 4
      %s364 = scalar_lea.vmem %s1, %s363
      %p365 = pneg %p69
      %p366 = pneg %p66
      %p367 = pneg %p90
      %p368 = pneg %p87
      %p369 = pneg %p111
      %p370 = pneg %p108
      %p371 = pneg %p132
      %p372 = pneg %p129
      %p373 = pneg %p153
      %p374 = pneg %p150
      %p375 = pneg %p174
      %p376 = pneg %p171
      %p377 = pneg %p195
      %p378 = pneg %p192
      %p379 = pneg %p216
      %p380 = pneg %p213
      %p381 = pneg %p237
      %p382 = pneg %p234
      %p383 = pneg %p258
      %p384 = pneg %p255
      %p385 = pneg %p284
      %p386 = pneg %p281
      %p387 = scmp.lt.s32.totalorder %s22, 1
      %s388 = scalar_select %p387, %s22, 1
      %s389 = smul.addr %s388, 4
      %s390 = smul.addr %s389, 4
      %s391 = scalar_lea.vmem %s11, %s390
      %p392 = scmp.lt.s32.totalorder %s22, 1
      %s393 = scalar_select %p392, %s22, 1
      %s394 = smul.addr %s393, 2
      %s395 = smul.addr %s394, 4
      %s396 = scalar_lea.vmem %s0, %s395
      %p397 = scmp.lt.s32.totalorder %s22, 1
      %s398 = scalar_select %p397, %s22, 1
      %s399 = smul.addr %s398, 4
      %s400 = smul.addr %s399, 4
      %s401 = scalar_lea.vmem %s1, %s400
      %p402 = scmp.lt.s32.totalorder %s22, 1
      %s403 = scalar_select %p402, %s22, 1
      %s404 = smul.addr %s403, 4
      %s405 = smul.addr %s404, 4
      %s406 = scalar_lea.vmem %s11, %s405
      %v408 = vld [vmem:[%s2] sm:$0x3]
      %409 = vst [vmem:[#allocation2] sm:$0xf] 0
      %410 = vst [vmem:[#allocation2 + $0xc] sm:$0xf] 0
      %v411 = vld [vmem:[%s396] sm:$0xff]
      %412 = vst [vmem:[#allocation2 + $0x4] sm:$0xff] %v411
      %v413 = vld [vmem:[#allocation2] sm:$0xff]
      %v414 = vld [vmem:[#allocation2 + $0x8] sm:$0xf]
      %v415 = vld [vmem:[%s3] sm:$0x5]
      %v418 = vunpack.c.l.s4 1983009808
      %v419 = vunpack.c.0.s8 %v418
      %v420 = vlaneseq
      %v421 = vshrl.u32 %v420, 7
      %v422 = vsub.s32 %v419, %v421
      %v423 = vrot.slane %v415, %v422
      %v424 = vcombine.high %v423, %v423
      %v426 = vpack.i.b16 %v423, %v423
      %v428 = vlaneseq
      %v429 = vshrl.u32 %v428, 7
      %v430 = vsub.s32 0, %v429
      %v431 = vrot.slane %v426, %v430
      %v433 = vpack.i.b16 %v424, %v424
      %v435 = vlaneseq
      %v436 = vshrl.u32 %v435, 7
      %v437 = vsub.s32 0, %v436
      %v438 = vrot.slane %v433, %v437
      %v441 = vunpack.c.l.b16 %v431
      %v442 = vunpack.c.l.b16 %v438
      %v443 = vpack.c.b16 %v442, %v441
      %444 = vrot.lane.b32.xlu0 %v443, 111
      %v445 = vpop.permute.xlu0 %444
      %v446 = vrot.slane %v445, 4
      %vm447 = vcmask 908288
      %v448 = vsel %vm447, %v446, %v445
      %v451 = vmul.bf16 %v413, %v448
      %v452 = vmul.bf16 %v414, %v446
      %v453 = vld [vmem:[%s4] sm:$0xf]
      %v454 = vld [vmem:[%s4 + $0x4] sm:$0xf]
      %s455 = scalar_lea.vmem %s4, 8
      %v456 = vld [vmem:[%s455] sm:$0xf]
      %v457 = vld [vmem:[%s455 + $0x4] sm:$0xf]
      %v460 = vunpack.c.l.b16 %v456
      %v461 = vunpack.c.l.b16 %v457
      %v462 = vpack.c.b16 %v461, %v460
      %v465 = vunpack.c.l.b16 %v413
      %v466 = vunpack.c.h.b16 %v413
      %v467 = vunpack.c.l.b16 %v414
      %v468 = vpack.c.b16 %v465, %v465
      %v469 = vpack.c.b16 %v466, %v466
      %v470 = vpack.c.b16 %v467, %v467
      %471 = vrot.lane.b32.xlu0 %v468, 16
      %v472 = vpop.permute.xlu0 %471
      %473 = vrot.lane.b32.xlu0 %v469, 16
      %v474 = vpop.permute.xlu0 %473
      %475 = vrot.lane.b32.xlu0 %v470, 16
      %v476 = vpop.permute.xlu0 %475
      %vm477 = vcmask 130048
      %v478 = vsel %vm477, %v472, %v474
      %v479 = vsel %vm477, %v474, %v476
      %vm480 = vcmask 64512
      %v482 = vsel %vm480, %v462, 0
      %vm484 = vcmask 1043456
      %v486 = vsel %vm484, %v478, 0
      %v489 = vsel %vm484, %v479, 0
      %491 = vmatprep.subr.bf16.mxu0 %v489
      %492 = vmatpush1.bf16.msra.mxu0 %v486
      %493 = vmatprep.subr.bf16.mxu0 0
      %494 = vmatpush1.bf16.msra.mxu0 0
      %495 = vmatprep.subr.bf16.mxu0 0
      %496 = vmatpush1.bf16.msra.mxu0 0
      %497 = vmatprep.subr.bf16.mxu0 0
      %498 = vmatpush1.bf16.msra.mxu0 0
      %499 = vmatprep.subr.bf16.mxu0 0
      %500 = vmatpush1.bf16.msra.mxu0 0
      %501 = vmatprep.subr.bf16.mxu0 0
      %502 = vmatpush1.bf16.msra.mxu0 0
      %503 = vmatprep.subr.bf16.mxu0 0
      %504 = vmatpush1.bf16.msra.mxu0 0
      %505 = vmatprep.subr.bf16.mxu0 0
      %506 = vmatpush1.bf16.msra.mxu0 0
      %507 = vmatprep.subr.bf16.mxu0 0
      %508 = vmatpush1.bf16.msra.mxu0 0
      %509 = vmatprep.subr.bf16.mxu0 0
      %510 = vmatpush1.bf16.msra.mxu0 0
      %511 = vmatprep.subr.bf16.mxu0 0
      %512 = vmatpush1.bf16.msra.mxu0 0
      %513 = vmatprep.subr.bf16.mxu0 0
      %514 = vmatpush1.bf16.msra.mxu0 0
      %515 = vmatprep.subr.bf16.mxu0 0
      %516 = vmatpush1.bf16.msra.mxu0 0
      %517 = vmatprep.subr.bf16.mxu0 0
      %518 = vmatpush1.bf16.msra.mxu0 0
      %519 = vmatprep.subr.bf16.mxu0 0
      %520 = vmatpush1.bf16.msra.mxu0 0
      %521 = vmatprep.subr.bf16.mxu0 0
      %522 = vmatpush1.bf16.msra.mxu0 0
      %523 = vmatprep.mubr.bf16.mxu0 0
      %524 = vmatmul.mubr.bf16.gmra.mrb[0].mxu0 %v482
      %v525 = vpop.f32.mrb[0].mxu0
      %v526 = vadd.f32 0.0, %v525
      %v527 = vpop.f32.mrb[0].mxu0
      %v528 = vadd.f32 0.0, %v527
      %v529 = vpop.f32.mrb[0].mxu0
      %v530 = vadd.f32 0.0, %v529
      %v531 = vpop.f32.mrb[0].mxu0
      %v532 = vadd.f32 0.0, %v531
      %533 = vdwg.mxu0
      %v536 = vunpack.c.l.b16 %v453
      %v537 = vunpack.c.l.b16 %v454
      %v538 = vpack.c.b16 %v537, %v536
      %v541 = vunpack.c.l.b16 %v451
      %v542 = vunpack.c.h.b16 %v451
      %v543 = vunpack.c.l.b16 %v452
      %v544 = vpack.c.b16 %v541, %v541
      %v545 = vpack.c.b16 %v542, %v542
      %v546 = vpack.c.b16 %v543, %v543
      %547 = vrot.lane.b32.xlu0 %v544, 17
      %v548 = vpop.permute.xlu0 %547
      %549 = vrot.lane.b32.xlu0 %v545, 17
      %v550 = vpop.permute.xlu0 %549
      %551 = vrot.lane.b32.xlu0 %v546, 17
      %v552 = vpop.permute.xlu0 %551
      %vm553 = vcmask 138240
      %v554 = vsel %vm553, %v548, %v550
      %v555 = vsel %vm553, %v550, %v552
      %v557 = vsel %vm480, %v538, 0
      %v560 = vsel %vm484, %v554, 0
      %v563 = vsel %vm484, %v555, 0
      %565 = vmatprep.subr.bf16.mxu0 %v563
      %566 = vmatpush1.bf16.msra.mxu0 %v560
      %567 = vmatprep.subr.bf16.mxu0 0
      %568 = vmatpush1.bf16.msra.mxu0 0
      %569 = vmatprep.subr.bf16.mxu0 0
      %570 = vmatpush1.bf16.msra.mxu0 0
      %571 = vmatprep.subr.bf16.mxu0 0
      %572 = vmatpush1.bf16.msra.mxu0 0
      %573 = vmatprep.subr.bf16.mxu0 0
      %574 = vmatpush1.bf16.msra.mxu0 0
      %575 = vmatprep.subr.bf16.mxu0 0
      %576 = vmatpush1.bf16.msra.mxu0 0
      %577 = vmatprep.subr.bf16.mxu0 0
      %578 = vmatpush1.bf16.msra.mxu0 0
      %579 = vmatprep.subr.bf16.mxu0 0
      %580 = vmatpush1.bf16.msra.mxu0 0
      %581 = vmatprep.subr.bf16.mxu0 0
      %582 = vmatpush1.bf16.msra.mxu0 0
      %583 = vmatprep.subr.bf16.mxu0 0
      %584 = vmatpush1.bf16.msra.mxu0 0
      %585 = vmatprep.subr.bf16.mxu0 0
      %586 = vmatpush1.bf16.msra.mxu0 0
      %587 = vmatprep.subr.bf16.mxu0 0
      %588 = vmatpush1.bf16.msra.mxu0 0
      %589 = vmatprep.subr.bf16.mxu0 0
      %590 = vmatpush1.bf16.msra.mxu0 0
      %591 = vmatprep.subr.bf16.mxu0 0
      %592 = vmatpush1.bf16.msra.mxu0 0
      %593 = vmatprep.subr.bf16.mxu0 0
      %594 = vmatpush1.bf16.msra.mxu0 0
      %595 = vmatprep.subr.bf16.mxu0 0
      %596 = vmatpush1.bf16.msra.mxu0 0
      %597 = vmatprep.mubr.bf16.mxu0 0
      %598 = vmatmul.mubr.bf16.gmra.mrb[0].mxu0 %v557
      %v599 = vpop.f32.mrb[0].mxu0
      %v600 = vadd.f32 %v526, %v599
      %v601 = vpop.f32.mrb[0].mxu0
      %v602 = vadd.f32 %v528, %v601
      %v603 = vpop.f32.mrb[0].mxu0
      %v604 = vadd.f32 %v530, %v603
      %v605 = vpop.f32.mrb[0].mxu0
      %v606 = vadd.f32 %v532, %v605
      %607 = vdwg.mxu0
      %v608 = vld [vmem:[%s3] sm:$0xa]
      %v611 = vunpack.c.l.s4 1983009808
      %v612 = vunpack.c.0.s8 %v611
      %v613 = vlaneseq
      %v614 = vshrl.u32 %v613, 7
      %v615 = vsub.s32 %v612, %v614
      %v616 = vrot.slane %v608, %v615
      %v617 = vcombine.high %v616, %v616
      %v619 = vpack.i.b16 %v616, %v616
      %v621 = vlaneseq
      %v622 = vshrl.u32 %v621, 7
      %v623 = vsub.s32 1, %v622
      %v624 = vrot.slane %v619, %v623
      %v626 = vpack.i.b16 %v617, %v617
      %v628 = vlaneseq
      %v629 = vshrl.u32 %v628, 7
      %v630 = vsub.s32 1, %v629
      %v631 = vrot.slane %v626, %v630
      %v634 = vunpack.c.l.b16 %v624
      %v635 = vunpack.c.l.b16 %v631
      %v636 = vpack.c.b16 %v635, %v634
      %637 = vrot.lane.b32.xlu0 %v636, 113
      %v638 = vpop.permute.xlu0 %637
      %v639 = vrot.slane %v638, 4
      %vm640 = vcmask 924672
      %v641 = vsel %vm640, %v639, %v638
      %v644 = vmul.bf16 %v413, %v641
      %v645 = vmul.bf16 %v414, %v639
      %s646 = scalar_lea.vmem %s4, 16
      %v647 = vld [vmem:[%s646] sm:$0xf]
      %v648 = vld [vmem:[%s646 + $0x4] sm:$0xf]
      %v651 = vunpack.c.l.b16 %v647
      %v652 = vunpack.c.l.b16 %v648
      %v653 = vpack.c.b16 %v652, %v651
      %v656 = vunpack.c.l.b16 %v644
      %v657 = vunpack.c.h.b16 %v644
      %v658 = vunpack.c.l.b16 %v645
      %v659 = vpack.c.b16 %v656, %v656
      %v660 = vpack.c.b16 %v657, %v657
      %v661 = vpack.c.b16 %v658, %v658
      %662 = vrot.lane.b32.xlu0 %v659, 15
      %v663 = vpop.permute.xlu0 %662
      %664 = vrot.lane.b32.xlu0 %v660, 15
      %v665 = vpop.permute.xlu0 %664
      %666 = vrot.lane.b32.xlu0 %v661, 15
      %v667 = vpop.permute.xlu0 %666
      %vm668 = vcmask 121856
      %v669 = vsel %vm668, %v663, %v665
      %v670 = vsel %vm668, %v665, %v667
      %v672 = vsel %vm480, %v653, 0
      %v675 = vsel %vm484, %v669, 0
      %v678 = vsel %vm484, %v670, 0
      %680 = vmatprep.subr.bf16.mxu0 %v678
      %681 = vmatpush1.bf16.msra.mxu0 %v675
      %682 = vmatprep.subr.bf16.mxu0 0
      %683 = vmatpush1.bf16.msra.mxu0 0
      %684 = vmatprep.subr.bf16.mxu0 0
      %685 = vmatpush1.bf16.msra.mxu0 0
      %686 = vmatprep.subr.bf16.mxu0 0
      %687 = vmatpush1.bf16.msra.mxu0 0
      %688 = vmatprep.subr.bf16.mxu0 0
      %689 = vmatpush1.bf16.msra.mxu0 0
      %690 = vmatprep.subr.bf16.mxu0 0
      %691 = vmatpush1.bf16.msra.mxu0 0
      %692 = vmatprep.subr.bf16.mxu0 0
      %693 = vmatpush1.bf16.msra.mxu0 0
      %694 = vmatprep.subr.bf16.mxu0 0
      %695 = vmatpush1.bf16.msra.mxu0 0
      %696 = vmatprep.subr.bf16.mxu0 0
      %697 = vmatpush1.bf16.msra.mxu0 0
      %698 = vmatprep.subr.bf16.mxu0 0
      %699 = vmatpush1.bf16.msra.mxu0 0
      %700 = vmatprep.subr.bf16.mxu0 0
      %701 = vmatpush1.bf16.msra.mxu0 0
      %702 = vmatprep.subr.bf16.mxu0 0
      %703 = vmatpush1.bf16.msra.mxu0 0
      %704 = vmatprep.subr.bf16.mxu0 0
      %705 = vmatpush1.bf16.msra.mxu0 0
      %706 = vmatprep.subr.bf16.mxu0 0
      %707 = vmatpush1.bf16.msra.mxu0 0
      %708 = vmatprep.subr.bf16.mxu0 0
      %709 = vmatpush1.bf16.msra.mxu0 0
      %710 = vmatprep.subr.bf16.mxu0 0
      %711 = vmatpush1.bf16.msra.mxu0 0
      %712 = vmatprep.mubr.bf16.mxu0 0
      %713 = vmatmul.mubr.bf16.gmra.mrb[0].mxu0 %v672
      %v714 = vpop.f32.mrb[0].mxu0
      %v715 = vadd.f32 0.0, %v714
      %v716 = vpop.f32.mrb[0].mxu0
      %v717 = vadd.f32 0.0, %v716
      %v718 = vpop.f32.mrb[0].mxu0
      %v719 = vadd.f32 0.0, %v718
      %v720 = vpop.f32.mrb[0].mxu0
      %v721 = vadd.f32 0.0, %v720
      %722 = vdwg.mxu0
      %v723 = vadd.f32 %v600, %v715
      %v724 = vadd.f32 %v602, %v717
      %v725 = vadd.f32 %v604, %v719
      %v726 = vadd.f32 %v606, %v721
      %v727 = vld [vmem:[#allocation2] sm:$0xff]
      %v728 = vld [vmem:[#allocation2 + $0x8] sm:$0xf]
      %729 = vrot.lane.b32.xlu0 %v443, 127
      %v730 = vpop.permute.xlu0 %729
      %v731 = vrot.slane %v730, 4
      %vm732 = vcmask 1039360
      %v733 = vsel %vm732, %v731, %v730
      %v736 = vmul.bf16 %v727, %v733
      %v737 = vmul.bf16 %v728, %v731
      %s738 = scalar_lea.vmem %s4, 24
      %v739 = vld [vmem:[%s738] sm:$0xf]
      %v740 = vld [vmem:[%s738 + $0x4] sm:$0xf]
      %v743 = vunpack.c.l.b16 %v739
      %v744 = vunpack.c.l.b16 %v740
      %v745 = vpack.c.b16 %v744, %v743
      %v748 = vunpack.c.l.b16 %v736
      %v749 = vunpack.c.h.b16 %v736
      %v750 = vunpack.c.l.b16 %v737
      %v751 = vpack.c.b16 %v748, %v748
      %v752 = vpack.c.b16 %v749, %v749
      %v753 = vpack.c.b16 %v750, %v750
      %754 = vrot.lane.b32.xlu0 %v751, 1
      %v755 = vpop.permute.xlu0 %754
      %756 = vrot.lane.b32.xlu0 %v752, 1
      %v757 = vpop.permute.xlu0 %756
      %758 = vrot.lane.b32.xlu0 %v753, 1
      %v759 = vpop.permute.xlu0 %758
      %vm760 = vcmask 7168
      %v761 = vsel %vm760, %v755, %v757
      %v762 = vsel %vm760, %v757, %v759
      %v764 = vsel %vm480, %v745, 0
      %v767 = vsel %vm484, %v761, 0
      %v770 = vsel %vm484, %v762, 0
      %772 = vmatprep.subr.bf16.mxu0 %v770
      %773 = vmatpush1.bf16.msra.mxu0 %v767
      %774 = vmatprep.subr.bf16.mxu0 0
      %775 = vmatpush1.bf16.msra.mxu0 0
      %776 = vmatprep.subr.bf16.mxu0 0
      %777 = vmatpush1.bf16.msra.mxu0 0
      %778 = vmatprep.subr.bf16.mxu0 0
      %779 = vmatpush1.bf16.msra.mxu0 0
      %780 = vmatprep.subr.bf16.mxu0 0
      %781 = vmatpush1.bf16.msra.mxu0 0
      %782 = vmatprep.subr.bf16.mxu0 0
      %783 = vmatpush1.bf16.msra.mxu0 0
      %784 = vmatprep.subr.bf16.mxu0 0
      %785 = vmatpush1.bf16.msra.mxu0 0
      %786 = vmatprep.subr.bf16.mxu0 0
      %787 = vmatpush1.bf16.msra.mxu0 0
      %788 = vmatprep.subr.bf16.mxu0 0
      %789 = vmatpush1.bf16.msra.mxu0 0
      %790 = vmatprep.subr.bf16.mxu0 0
      %791 = vmatpush1.bf16.msra.mxu0 0
      %792 = vmatprep.subr.bf16.mxu0 0
      %793 = vmatpush1.bf16.msra.mxu0 0
      %794 = vmatprep.subr.bf16.mxu0 0
      %795 = vmatpush1.bf16.msra.mxu0 0
      %796 = vmatprep.subr.bf16.mxu0 0
      %797 = vmatpush1.bf16.msra.mxu0 0
      %798 = vmatprep.subr.bf16.mxu0 0
      %799 = vmatpush1.bf16.msra.mxu0 0
      %800 = vmatprep.subr.bf16.mxu0 0
      %801 = vmatpush1.bf16.msra.mxu0 0
      %802 = vmatprep.subr.bf16.mxu0 0
      %803 = vmatpush1.bf16.msra.mxu0 0
      %804 = vmatprep.mubr.bf16.mxu0 0
      %805 = vmatmul.mubr.bf16.gmra.mrb[0].mxu0 %v764
      %v806 = vpop.f32.mrb[0].mxu0
      %v807 = vadd.f32 0.0, %v806
      %v808 = vpop.f32.mrb[0].mxu0
      %v809 = vadd.f32 0.0, %v808
      %v810 = vpop.f32.mrb[0].mxu0
      %v811 = vadd.f32 0.0, %v810
      %v812 = vpop.f32.mrb[0].mxu0
      %v813 = vadd.f32 0.0, %v812
      %814 = vdwg.mxu0
      %v815 = vadd.f32 %v723, %v807
      %v816 = vadd.f32 %v724, %v809
      %v817 = vadd.f32 %v725, %v811
      %v818 = vadd.f32 %v726, %v813
      %v819 = vld [vmem:[#allocation2 + $0x4] sm:$0xff]
      %s820 = scalar_lea.vmem %s4, 32
      %v821 = vld [vmem:[%s820] sm:$0xf]
      %v822 = vld [vmem:[%s820 + $0x4] sm:$0xf]
      %v825 = vunpack.c.l.b16 %v821
      %v826 = vunpack.c.l.b16 %v822
      %v827 = vpack.c.b16 %v826, %v825
      %v829 = vunpack.c.l.b16 %v819
      %v830 = vunpack.c.h.b16 %v819
      %v831 = vpack.c.b16 %v829, %v829
      %v832 = vpack.c.b16 %v830, %v830
      %v834 = vsel %vm480, %v827, 0
      %v837 = vsel %vm484, %v831, 0
      %v840 = vsel %vm484, %v832, 0
      %842 = vmatprep.subr.bf16.mxu0 %v840
      %843 = vmatpush1.bf16.msra.mxu0 %v837
      %844 = vmatprep.subr.bf16.mxu0 0
      %845 = vmatpush1.bf16.msra.mxu0 0
      %846 = vmatprep.subr.bf16.mxu0 0
      %847 = vmatpush1.bf16.msra.mxu0 0
      %848 = vmatprep.subr.bf16.mxu0 0
      %849 = vmatpush1.bf16.msra.mxu0 0
      %850 = vmatprep.subr.bf16.mxu0 0
      %851 = vmatpush1.bf16.msra.mxu0 0
      %852 = vmatprep.subr.bf16.mxu0 0
      %853 = vmatpush1.bf16.msra.mxu0 0
      %854 = vmatprep.subr.bf16.mxu0 0
      %855 = vmatpush1.bf16.msra.mxu0 0
      %856 = vmatprep.subr.bf16.mxu0 0
      %857 = vmatpush1.bf16.msra.mxu0 0
      %858 = vmatprep.subr.bf16.mxu0 0
      %859 = vmatpush1.bf16.msra.mxu0 0
      %860 = vmatprep.subr.bf16.mxu0 0
      %861 = vmatpush1.bf16.msra.mxu0 0
      %862 = vmatprep.subr.bf16.mxu0 0
      %863 = vmatpush1.bf16.msra.mxu0 0
      %864 = vmatprep.subr.bf16.mxu0 0
      %865 = vmatpush1.bf16.msra.mxu0 0
      %866 = vmatprep.subr.bf16.mxu0 0
      %867 = vmatpush1.bf16.msra.mxu0 0
      %868 = vmatprep.subr.bf16.mxu0 0
      %869 = vmatpush1.bf16.msra.mxu0 0
      %870 = vmatprep.subr.bf16.mxu0 0
      %871 = vmatpush1.bf16.msra.mxu0 0
      %872 = vmatprep.subr.bf16.mxu0 0
      %873 = vmatpush1.bf16.msra.mxu0 0
      %874 = vmatprep.mubr.bf16.mxu0 0
      %875 = vmatmul.mubr.bf16.gmra.mrb[0].mxu0 %v834
      %v876 = vpop.f32.mrb[0].mxu0
      %v877 = vadd.f32 0.0, %v876
      %v878 = vpop.f32.mrb[0].mxu0
      %v879 = vadd.f32 0.0, %v878
      %v880 = vpop.f32.mrb[0].mxu0
      %v881 = vadd.f32 0.0, %v880
      %v882 = vpop.f32.mrb[0].mxu0
      %v883 = vadd.f32 0.0, %v882
      %884 = vdwg.mxu0
      %v885 = vadd.f32 %v815, %v877
      %v886 = vadd.f32 %v816, %v879
      %v887 = vadd.f32 %v817, %v881
      %v888 = vadd.f32 %v818, %v883
      %v889 = vld [vmem:[#allocation2 + $0x4] sm:$0xff]
      %v890 = vld [vmem:[#allocation2 + $0xc] sm:$0xf]
      %891 = vrot.lane.b32.xlu0 %v636, 1
      %v892 = vpop.permute.xlu0 %891
      %v893 = vrot.slane %v892, 4
      %v894 = vsel %vm760, %v893, %v892
      %v897 = vmul.bf16 %v889, %v894
      %v898 = vmul.bf16 %v890, %v893
      %s899 = scalar_lea.vmem %s4, 40
      %v900 = vld [vmem:[%s899] sm:$0xf]
      %v901 = vld [vmem:[%s899 + $0x4] sm:$0xf]
      %v904 = vunpack.c.l.b16 %v900
      %v905 = vunpack.c.l.b16 %v901
      %v906 = vpack.c.b16 %v905, %v904
      %v909 = vunpack.c.l.b16 %v897
      %v910 = vunpack.c.h.b16 %v897
      %v911 = vunpack.c.l.b16 %v898
      %v912 = vpack.c.b16 %v909, %v909
      %v913 = vpack.c.b16 %v910, %v910
      %v914 = vpack.c.b16 %v911, %v911
      %915 = vrot.lane.b32.xlu0 %v912, 127
      %v916 = vpop.permute.xlu0 %915
      %917 = vrot.lane.b32.xlu0 %v913, 127
      %v918 = vpop.permute.xlu0 %917
      %919 = vrot.lane.b32.xlu0 %v914, 127
      %v920 = vpop.permute.xlu0 %919
      %v921 = vsel %vm732, %v916, %v918
      %v922 = vsel %vm732, %v918, %v920
      %v924 = vsel %vm480, %v906, 0
      %v927 = vsel %vm484, %v921, 0
      %v930 = vsel %vm484, %v922, 0
      %932 = vmatprep.subr.bf16.mxu0 %v930
      %933 = vmatpush1.bf16.msra.mxu0 %v927
      %934 = vmatprep.subr.bf16.mxu0 0
      %935 = vmatpush1.bf16.msra.mxu0 0
      %936 = vmatprep.subr.bf16.mxu0 0
      %937 = vmatpush1.bf16.msra.mxu0 0
      %938 = vmatprep.subr.bf16.mxu0 0
      %939 = vmatpush1.bf16.msra.mxu0 0
      %940 = vmatprep.subr.bf16.mxu0 0
      %941 = vmatpush1.bf16.msra.mxu0 0
      %942 = vmatprep.subr.bf16.mxu0 0
      %943 = vmatpush1.bf16.msra.mxu0 0
      %944 = vmatprep.subr.bf16.mxu0 0
      %945 = vmatpush1.bf16.msra.mxu0 0
      %946 = vmatprep.subr.bf16.mxu0 0
      %947 = vmatpush1.bf16.msra.mxu0 0
      %948 = vmatprep.subr.bf16.mxu0 0
      %949 = vmatpush1.bf16.msra.mxu0 0
      %950 = vmatprep.subr.bf16.mxu0 0
      %951 = vmatpush1.bf16.msra.mxu0 0
      %952 = vmatprep.subr.bf16.mxu0 0
      %953 = vmatpush1.bf16.msra.mxu0 0
      %954 = vmatprep.subr.bf16.mxu0 0
      %955 = vmatpush1.bf16.msra.mxu0 0
      %956 = vmatprep.subr.bf16.mxu0 0
      %957 = vmatpush1.bf16.msra.mxu0 0
      %958 = vmatprep.subr.bf16.mxu0 0
      %959 = vmatpush1.bf16.msra.mxu0 0
      %960 = vmatprep.subr.bf16.mxu0 0
      %961 = vmatpush1.bf16.msra.mxu0 0
      %962 = vmatprep.subr.bf16.mxu0 0
      %963 = vmatpush1.bf16.msra.mxu0 0
      %964 = vmatprep.mubr.bf16.mxu0 0
      %965 = vmatmul.mubr.bf16.gmra.mrb[0].mxu0 %v924
      %v966 = vpop.f32.mrb[0].mxu0
      %v967 = vadd.f32 0.0, %v966
      %v968 = vpop.f32.mrb[0].mxu0
      %v969 = vadd.f32 0.0, %v968
      %v970 = vpop.f32.mrb[0].mxu0
      %v971 = vadd.f32 0.0, %v970
      %v972 = vpop.f32.mrb[0].mxu0
      %v973 = vadd.f32 0.0, %v972
      %974 = vdwg.mxu0
      %v975 = vadd.f32 %v885, %v967
      %v976 = vadd.f32 %v886, %v969
      %v977 = vadd.f32 %v887, %v971
      %v978 = vadd.f32 %v888, %v973
      %979 = vrot.lane.b32.xlu0 %v443, 15
      %v980 = vpop.permute.xlu0 %979
      %v981 = vrot.slane %v980, 4
      %v982 = vsel %vm668, %v981, %v980
      %v985 = vmul.bf16 %v889, %v982
      %v986 = vmul.bf16 %v890, %v981
      %s987 = scalar_lea.vmem %s4, 48
      %v988 = vld [vmem:[%s987] sm:$0xf]
      %v989 = vld [vmem:[%s987 + $0x4] sm:$0xf]
      %v992 = vunpack.c.l.b16 %v988
      %v993 = vunpack.c.l.b16 %v989
      %v994 = vpack.c.b16 %v993, %v992
      %v997 = vunpack.c.l.b16 %v985
      %v998 = vunpack.c.h.b16 %v985
      %v999 = vunpack.c.l.b16 %v986
      %v1000 = vpack.c.b16 %v997, %v997
      %v1001 = vpack.c.b16 %v998, %v998
      %v1002 = vpack.c.b16 %v999, %v999
      %1003 = vrot.lane.b32.xlu0 %v1000, 113
      %v1004 = vpop.permute.xlu0 %1003
      %1005 = vrot.lane.b32.xlu0 %v1001, 113
      %v1006 = vpop.permute.xlu0 %1005
      %1007 = vrot.lane.b32.xlu0 %v1002, 113
      %v1008 = vpop.permute.xlu0 %1007
      %v1009 = vsel %vm640, %v1004, %v1006
      %v1010 = vsel %vm640, %v1006, %v1008
      %v1012 = vsel %vm480, %v994, 0
      %v1015 = vsel %vm484, %v1009, 0
      %v1018 = vsel %vm484, %v1010, 0
      %1020 = vmatprep.subr.bf16.mxu0 %v1018
      %1021 = vmatpush1.bf16.msra.mxu0 %v1015
      %1022 = vmatprep.subr.bf16.mxu0 0
      %1023 = vmatpush1.bf16.msra.mxu0 0
      %1024 = vmatprep.subr.bf16.mxu0 0
      %1025 = vmatpush1.bf16.msra.mxu0 0
      %1026 = vmatprep.subr.bf16.mxu0 0
      %1027 = vmatpush1.bf16.msra.mxu0 0
      %1028 = vmatprep.subr.bf16.mxu0 0
      %1029 = vmatpush1.bf16.msra.mxu0 0
      %1030 = vmatprep.subr.bf16.mxu0 0
      %1031 = vmatpush1.bf16.msra.mxu0 0
      %1032 = vmatprep.subr.bf16.mxu0 0
      %1033 = vmatpush1.bf16.msra.mxu0 0
      %1034 = vmatprep.subr.bf16.mxu0 0
      %1035 = vmatpush1.bf16.msra.mxu0 0
      %1036 = vmatprep.subr.bf16.mxu0 0
      %1037 = vmatpush1.bf16.msra.mxu0 0
      %1038 = vmatprep.subr.bf16.mxu0 0
      %1039 = vmatpush1.bf16.msra.mxu0 0
      %1040 = vmatprep.subr.bf16.mxu0 0
      %1041 = vmatpush1.bf16.msra.mxu0 0
      %1042 = vmatprep.subr.bf16.mxu0 0
      %1043 = vmatpush1.bf16.msra.mxu0 0
      %1044 = vmatprep.subr.bf16.mxu0 0
      %1045 = vmatpush1.bf16.msra.mxu0 0
      %1046 = vmatprep.subr.bf16.mxu0 0
      %1047 = vmatpush1.bf16.msra.mxu0 0
      %1048 = vmatprep.subr.bf16.mxu0 0
      %1049 = vmatpush1.bf16.msra.mxu0 0
      %1050 = vmatprep.subr.bf16.mxu0 0
      %1051 = vmatpush1.bf16.msra.mxu0 0
      %1052 = vmatprep.mubr.bf16.mxu0 0
      %1053 = vmatmul.mubr.bf16.gmra.mrb[0].mxu0 %v1012
      %v1054 = vpop.f32.mrb[0].mxu0
      %v1055 = vadd.f32 0.0, %v1054
      %v1056 = vpop.f32.mrb[0].mxu0
      %v1057 = vadd.f32 0.0, %v1056
      %v1058 = vpop.f32.mrb[0].mxu0
      %v1059 = vadd.f32 0.0, %v1058
      %v1060 = vpop.f32.mrb[0].mxu0
      %v1061 = vadd.f32 0.0, %v1060
      %1062 = vdwg.mxu0
      %v1063 = vadd.f32 %v975, %v1055
      %v1064 = vadd.f32 %v976, %v1057
      %v1065 = vadd.f32 %v977, %v1059
      %v1066 = vadd.f32 %v978, %v1061
      %s1067 = scalar_lea.vmem %s4, 56
      %v1068 = vld [vmem:[%s1067] sm:$0xf]
      %v1069 = vld [vmem:[%s1067 + $0x4] sm:$0xf]
      %v1072 = vunpack.c.l.b16 %v1068
      %v1073 = vunpack.c.l.b16 %v1069
      %v1074 = vpack.c.b16 %v1073, %v1072
      %v1077 = vunpack.c.l.b16 %v889
      %v1078 = vunpack.c.h.b16 %v889
      %v1079 = vunpack.c.l.b16 %v890
      %v1080 = vpack.c.b16 %v1077, %v1077
      %v1081 = vpack.c.b16 %v1078, %v1078
      %v1082 = vpack.c.b16 %v1079, %v1079
      %1083 = vrot.lane.b32.xlu0 %v1080, 112
      %v1084 = vpop.permute.xlu0 %1083
      %1085 = vrot.lane.b32.xlu0 %v1081, 112
      %v1086 = vpop.permute.xlu0 %1085
      %1087 = vrot.lane.b32.xlu0 %v1082, 112
      %v1088 = vpop.permute.xlu0 %1087
      %vm1089 = vcmask 916480
      %v1090 = vsel %vm1089, %v1084, %v1086
      %v1091 = vsel %vm1089, %v1086, %v1088
      %v1093 = vsel %vm480, %v1074, 0
      %v1096 = vsel %vm484, %v1090, 0
      %v1099 = vsel %vm484, %v1091, 0
      %1101 = vmatprep.subr.bf16.mxu0 %v1099
      %1102 = vmatpush1.bf16.msra.mxu0 %v1096
      %1103 = vmatprep.subr.bf16.mxu0 0
      %1104 = vmatpush1.bf16.msra.mxu0 0
      %1105 = vmatprep.subr.bf16.mxu0 0
      %1106 = vmatpush1.bf16.msra.mxu0 0
      %1107 = vmatprep.subr.bf16.mxu0 0
      %1108 = vmatpush1.bf16.msra.mxu0 0
      %1109 = vmatprep.subr.bf16.mxu0 0
      %1110 = vmatpush1.bf16.msra.mxu0 0
      %1111 = vmatprep.subr.bf16.mxu0 0
      %1112 = vmatpush1.bf16.msra.mxu0 0
      %1113 = vmatprep.subr.bf16.mxu0 0
      %1114 = vmatpush1.bf16.msra.mxu0 0
      %1115 = vmatprep.subr.bf16.mxu0 0
      %1116 = vmatpush1.bf16.msra.mxu0 0
      %1117 = vmatprep.subr.bf16.mxu0 0
      %1118 = vmatpush1.bf16.msra.mxu0 0
      %1119 = vmatprep.subr.bf16.mxu0 0
      %1120 = vmatpush1.bf16.msra.mxu0 0
      %1121 = vmatprep.subr.bf16.mxu0 0
      %1122 = vmatpush1.bf16.msra.mxu0 0
      %1123 = vmatprep.subr.bf16.mxu0 0
      %1124 = vmatpush1.bf16.msra.mxu0 0
      %1125 = vmatprep.subr.bf16.mxu0 0
      %1126 = vmatpush1.bf16.msra.mxu0 0
      %1127 = vmatprep.subr.bf16.mxu0 0
      %1128 = vmatpush1.bf16.msra.mxu0 0
      %1129 = vmatprep.subr.bf16.mxu0 0
      %1130 = vmatpush1.bf16.msra.mxu0 0
      %1131 = vmatprep.subr.bf16.mxu0 0
      %1132 = vmatpush1.bf16.msra.mxu0 0
      %1133 = vmatprep.mubr.bf16.mxu0 0
      %1134 = vmatmul.mubr.bf16.gmra.mrb[0].mxu0 %v1093
      %v1135 = vpop.f32.mrb[0].mxu0
      %v1136 = vadd.f32 0.0, %v1135
      %v1137 = vpop.f32.mrb[0].mxu0
      %v1138 = vadd.f32 0.0, %v1137
      %v1139 = vpop.f32.mrb[0].mxu0
      %v1140 = vadd.f32 0.0, %v1139
      %v1141 = vpop.f32.mrb[0].mxu0
      %v1142 = vadd.f32 0.0, %v1141
      %1143 = vdwg.mxu0
      %v1144 = vadd.f32 %v1063, %v1136
      %v1145 = vadd.f32 %v1064, %v1138
      %v1146 = vadd.f32 %v1065, %v1140
      %v1147 = vadd.f32 %v1066, %v1142
      %1148 = vrot.lane.b32.xlu0 %v636, 17
      %v1149 = vpop.permute.xlu0 %1148
      %v1150 = vrot.slane %v1149, 4
      %v1151 = vsel %vm553, %v1150, %v1149
      %v1154 = vmul.bf16 %v889, %v1151
      %v1155 = vmul.bf16 %v890, %v1150
      %s1156 = scalar_lea.vmem %s4, 64
      %v1157 = vld [vmem:[%s1156] sm:$0xf]
      %v1158 = vld [vmem:[%s1156 + $0x4] sm:$0xf]
      %v1161 = vunpack.c.l.b16 %v1157
      %v1162 = vunpack.c.l.b16 %v1158
      %v1163 = vpack.c.b16 %v1162, %v1161
      %v1166 = vunpack.c.l.b16 %v1154
      %v1167 = vunpack.c.h.b16 %v1154
      %v1168 = vunpack.c.l.b16 %v1155
      %v1169 = vpack.c.b16 %v1166, %v1166
      %v1170 = vpack.c.b16 %v1167, %v1167
      %v1171 = vpack.c.b16 %v1168, %v1168
      %1172 = vrot.lane.b32.xlu0 %v1169, 111
      %v1173 = vpop.permute.xlu0 %1172
      %1174 = vrot.lane.b32.xlu0 %v1170, 111
      %v1175 = vpop.permute.xlu0 %1174
      %1176 = vrot.lane.b32.xlu0 %v1171, 111
      %v1177 = vpop.permute.xlu0 %1176
      %v1178 = vsel %vm447, %v1173, %v1175
      %v1179 = vsel %vm447, %v1175, %v1177
      %v1181 = vsel %vm480, %v1163, 0
      %v1184 = vsel %vm484, %v1178, 0
      %v1187 = vsel %vm484, %v1179, 0
      %1189 = vmatprep.subr.bf16.mxu0 %v1187
      %1190 = vmatpush1.bf16.msra.mxu0 %v1184
      %1191 = vmatprep.subr.bf16.mxu0 0
      %1192 = vmatpush1.bf16.msra.mxu0 0
      %1193 = vmatprep.subr.bf16.mxu0 0
      %1194 = vmatpush1.bf16.msra.mxu0 0
      %1195 = vmatprep.subr.bf16.mxu0 0
      %1196 = vmatpush1.bf16.msra.mxu0 0
      %1197 = vmatprep.subr.bf16.mxu0 0
      %1198 = vmatpush1.bf16.msra.mxu0 0
      %1199 = vmatprep.subr.bf16.mxu0 0
      %1200 = vmatpush1.bf16.msra.mxu0 0
      %1201 = vmatprep.subr.bf16.mxu0 0
      %1202 = vmatpush1.bf16.msra.mxu0 0
      %1203 = vmatprep.subr.bf16.mxu0 0
      %1204 = vmatpush1.bf16.msra.mxu0 0
      %1205 = vmatprep.subr.bf16.mxu0 0
      %1206 = vmatpush1.bf16.msra.mxu0 0
      %1207 = vmatprep.subr.bf16.mxu0 0
      %1208 = vmatpush1.bf16.msra.mxu0 0
      %1209 = vmatprep.subr.bf16.mxu0 0
      %1210 = vmatpush1.bf16.msra.mxu0 0
      %1211 = vmatprep.subr.bf16.mxu0 0
      %1212 = vmatpush1.bf16.msra.mxu0 0
      %1213 = vmatprep.subr.bf16.mxu0 0
      %1214 = vmatpush1.bf16.msra.mxu0 0
      %1215 = vmatprep.subr.bf16.mxu0 0
      %1216 = vmatpush1.bf16.msra.mxu0 0
      %1217 = vmatprep.subr.bf16.mxu0 0
      %1218 = vmatpush1.bf16.msra.mxu0 0
      %1219 = vmatprep.subr.bf16.mxu0 0
      %1220 = vmatpush1.bf16.msra.mxu0 0
      %1221 = vmatprep.mubr.bf16.mxu0 0
      %1222 = vmatmul.mubr.bf16.gmra.mrb[0].mxu0 %v1181
      %v1223 = vpop.f32.mrb[0].mxu0
      %v1224 = vadd.f32 0.0, %v1223
      %v1225 = vpop.f32.mrb[0].mxu0
      %v1226 = vadd.f32 0.0, %v1225
      %v1227 = vpop.f32.mrb[0].mxu0
      %v1228 = vadd.f32 0.0, %v1227
      %v1229 = vpop.f32.mrb[0].mxu0
      %v1230 = vadd.f32 0.0, %v1229
      %1231 = vdwg.mxu0
      %v1232 = vadd.f32 %v1144, %v1224
      %v1233 = vadd.f32 %v1145, %v1226
      %v1234 = vadd.f32 %v1146, %v1228
      %v1235 = vadd.f32 %v1147, %v1230
      %v1236 = vld [vmem:[%s5] sm:$0xff]
      %v1237 = vld [vmem:[%s5 + $0x8] sm:$0xff]
      %1239 = vset.pattern.permute.xlu0 0
      %1240 = vperm.xlu0 %1239, %v1236
      %v1241 = vpop.permute.xlu0 %1240
      %1244 = vset.pattern.permute.xlu0 0
      %1245 = vperm.xlu0 %1244, %v1237
      %v1246 = vpop.permute.xlu0 %1245
      %v1248 = vadd.f32 %v1232, %v1241
      %v1249 = vadd.f32 %v1233, %v1241
      %v1250 = vadd.f32 %v1234, %v1246
      %v1251 = vadd.f32 %v1235, %v1246
      %v1252 = vxor.u32 %v1248, 2147483648
      %v1253 = vxor.u32 %v1249, 2147483648
      %v1254 = vxor.u32 %v1250, 2147483648
      %v1255 = vxor.u32 %v1251, 2147483648
      %v1256 = vmul.f32 %v1252, 1.442695
      %v1257 = vpow.pop %v1256
      %v1258 = vmul.f32 %v1253, 1.442695
      %v1259 = vpow.pop %v1258
      %v1260 = vmul.f32 %v1254, 1.442695
      %v1261 = vpow.pop %v1260
      %v1262 = vmul.f32 %v1255, 1.442695
      %v1263 = vpow.pop %v1262
      %v1264 = vadd.f32 %v1257, 1.0
      %v1265 = vadd.f32 %v1259, 1.0
      %v1266 = vadd.f32 %v1261, 1.0
      %v1267 = vadd.f32 %v1263, 1.0
      %v1268 = vrcp.pop %v1264
      %v1269 = vmul.f32 1.0, %v1268
      %v1270 = vrcp.pop %v1265
      %v1271 = vmul.f32 1.0, %v1270
      %v1272 = vrcp.pop %v1266
      %v1273 = vmul.f32 1.0, %v1272
      %v1274 = vrcp.pop %v1267
      %v1275 = vmul.f32 1.0, %v1274
      %v1276 = vmul.f32 %v1248, %v1269
      %v1277 = vmul.f32 %v1249, %v1271
      %v1278 = vmul.f32 %v1250, %v1273
      %v1279 = vmul.f32 %v1251, %v1275
      %v1281 = vlaneseq
      %v1282 = vshrl.u32 %v1281, 7
      %v1283 = vsub.s32 0, %v1282
      %v1284 = vrot.slane %v408, %v1283
      %v1285 = vlaneseq
      %v1286 = vshrl.u32 %v1285, 7
      %v1287 = vsub.s32 1, %v1286
      %v1288 = vrot.slane %v408, %v1287
      %v1291 = vmul.f32 %v1276, %v1284
      %v1292 = vmul.f32 %v1277, %v1288
      %v1293 = vmul.f32 %v1278, %v1284
      %v1294 = vmul.f32 %v1279, %v1288
      %1295 = vst [vmem:[#allocation3] sm:$0xff] 0
      %1296 = vst [vmem:[#allocation3 + $0x18] sm:$0xff] 0
      %v1297 = vpack.c.bf16 %v1293, %v1291
      %v1298 = vpack.c.bf16 %v1294, %v1292
      %1299 = vst [vmem:[#allocation3 + $0x8] sm:$0xff] %v1297
      %1300 = vst [vmem:[#allocation3 + $0x10] sm:$0xff] %v1298
      %v1301 = vld [vmem:[#allocation3] sm:$0xff]
      %v1302 = vld [vmem:[#allocation3 + $0x8] sm:$0xff]
      %v1303 = vld [vmem:[#allocation3 + $0x10] sm:$0xff]
      %v1304 = vld [vmem:[%s3] sm:$0x5]
      %v1307 = vunpack.c.l.s4 1983009808
      %v1308 = vunpack.c.0.s8 %v1307
      %v1309 = vlaneseq
      %v1310 = vshrl.u32 %v1309, 7
      %v1311 = vsub.s32 %v1308, %v1310
      %v1312 = vrot.slane %v1304, %v1311
      %v1313 = vcombine.high %v1312, %v1312
      %v1315 = vpack.i.b16 %v1312, %v1312
      %v1317 = vlaneseq
      %v1318 = vshrl.u32 %v1317, 7
      %v1319 = vsub.s32 0, %v1318
      %v1320 = vrot.slane %v1315, %v1319
      %v1322 = vpack.i.b16 %v1313, %v1313
      %v1324 = vlaneseq
      %v1325 = vshrl.u32 %v1324, 7
      %v1326 = vsub.s32 0, %v1325
      %v1327 = vrot.slane %v1322, %v1326
      %1330 = vrot.lane.b32.xlu0 %v1320, 111
      %v1331 = vpop.permute.xlu0 %1330
      %1332 = vrot.lane.b32.xlu0 %v1327, 111
      %v1333 = vpop.permute.xlu0 %1332
      %v1334 = vsel %vm447, %v1331, %v1333
      %v1338 = vmul.bf16 %v1301, %v1331
      %v1339 = vmul.bf16 %v1302, %v1334
      %v1340 = vmul.bf16 %v1303, %v1333
      %v1341 = vld [vmem:[%s6] sm:$0xf]
      %v1342 = vld [vmem:[%s6 + $0x4] sm:$0xf]
      %s1343 = scalar_lea.vmem %s6, 8
      %v1344 = vld [vmem:[%s1343] sm:$0xf]
      %v1345 = vld [vmem:[%s1343 + $0x4] sm:$0xf]
      %v1348 = vunpack.c.l.b16 %v1344
      %v1349 = vunpack.c.l.b16 %v1345
      %v1350 = vpack.c.b16 %v1349, %v1348
      %1354 = vrot.lane.b32.xlu0 %v1301, 16
      %v1355 = vpop.permute.xlu0 %1354
      %1356 = vrot.lane.b32.xlu0 %v1302, 16
      %v1357 = vpop.permute.xlu0 %1356
      %1358 = vrot.lane.b32.xlu0 %v1303, 16
      %v1359 = vpop.permute.xlu0 %1358
      %v1360 = vsel %vm477, %v1355, %v1357
      %v1361 = vsel %vm477, %v1357, %v1359
      %vm1364 = vcmask 130048
      %v1366 = vsel %vm1364, %v1350, 0
      %1368 = vmatprep.subr.bf16.mxu0 %v1361
      %1369 = vmatpush1.bf16.msra.mxu0 %v1360
      %1370 = vmatprep.subr.bf16.mxu0 0
      %1371 = vmatpush1.bf16.msra.mxu0 0
      %1372 = vmatprep.subr.bf16.mxu0 0
      %1373 = vmatpush1.bf16.msra.mxu0 0
      %1374 = vmatprep.subr.bf16.mxu0 0
      %1375 = vmatpush1.bf16.msra.mxu0 0
      %1376 = vmatprep.subr.bf16.mxu0 0
      %1377 = vmatpush1.bf16.msra.mxu0 0
      %1378 = vmatprep.subr.bf16.mxu0 0
      %1379 = vmatpush1.bf16.msra.mxu0 0
      %1380 = vmatprep.subr.bf16.mxu0 0
      %1381 = vmatpush1.bf16.msra.mxu0 0
      %1382 = vmatprep.subr.bf16.mxu0 0
      %1383 = vmatpush1.bf16.msra.mxu0 0
      %1384 = vmatprep.subr.bf16.mxu0 0
      %1385 = vmatpush1.bf16.msra.mxu0 0
      %1386 = vmatprep.subr.bf16.mxu0 0
      %1387 = vmatpush1.bf16.msra.mxu0 0
      %1388 = vmatprep.subr.bf16.mxu0 0
      %1389 = vmatpush1.bf16.msra.mxu0 0
      %1390 = vmatprep.subr.bf16.mxu0 0
      %1391 = vmatpush1.bf16.msra.mxu0 0
      %1392 = vmatprep.subr.bf16.mxu0 0
      %1393 = vmatpush1.bf16.msra.mxu0 0
      %1394 = vmatprep.subr.bf16.mxu0 0
      %1395 = vmatpush1.bf16.msra.mxu0 0
      %1396 = vmatprep.subr.bf16.mxu0 0
      %1397 = vmatpush1.bf16.msra.mxu0 0
      %1398 = vmatprep.subr.bf16.mxu0 0
      %1399 = vmatpush1.bf16.msra.mxu0 0
      %1400 = vmatprep.mubr.bf16.mxu0 0
      %1401 = vmatmul.mubr.bf16.gmra.mrb[0].mxu0 %v1366
      %v1402 = vpop.f32.mrb[0].mxu0
      %v1403 = vadd.f32 0.0, %v1402
      %v1404 = vpop.f32.mrb[0].mxu0
      %v1405 = vadd.f32 0.0, %v1404
      %v1406 = vpop.f32.mrb[0].mxu0
      %v1407 = vadd.f32 0.0, %v1406
      %v1408 = vpop.f32.mrb[0].mxu0
      %v1409 = vadd.f32 0.0, %v1408
      %1410 = vdwg.mxu0
      %v1413 = vunpack.c.l.b16 %v1341
      %v1414 = vunpack.c.l.b16 %v1342
      %v1415 = vpack.c.b16 %v1414, %v1413
      %1419 = vrot.lane.b32.xlu0 %v1338, 17
      %v1420 = vpop.permute.xlu0 %1419
      %1421 = vrot.lane.b32.xlu0 %v1339, 17
      %v1422 = vpop.permute.xlu0 %1421
      %1423 = vrot.lane.b32.xlu0 %v1340, 17
      %v1424 = vpop.permute.xlu0 %1423
      %v1425 = vsel %vm553, %v1420, %v1422
      %v1426 = vsel %vm553, %v1422, %v1424
      %v1430 = vsel %vm1364, %v1415, 0
      %1432 = vmatprep.subr.bf16.mxu0 %v1426
      %1433 = vmatpush1.bf16.msra.mxu0 %v1425
      %1434 = vmatprep.subr.bf16.mxu0 0
      %1435 = vmatpush1.bf16.msra.mxu0 0
      %1436 = vmatprep.subr.bf16.mxu0 0
      %1437 = vmatpush1.bf16.msra.mxu0 0
      %1438 = vmatprep.subr.bf16.mxu0 0
      %1439 = vmatpush1.bf16.msra.mxu0 0
      %1440 = vmatprep.subr.bf16.mxu0 0
      %1441 = vmatpush1.bf16.msra.mxu0 0
      %1442 = vmatprep.subr.bf16.mxu0 0
      %1443 = vmatpush1.bf16.msra.mxu0 0
      %1444 = vmatprep.subr.bf16.mxu0 0
      %1445 = vmatpush1.bf16.msra.mxu0 0
      %1446 = vmatprep.subr.bf16.mxu0 0
      %1447 = vmatpush1.bf16.msra.mxu0 0
      %1448 = vmatprep.subr.bf16.mxu0 0
      %1449 = vmatpush1.bf16.msra.mxu0 0
      %1450 = vmatprep.subr.bf16.mxu0 0
      %1451 = vmatpush1.bf16.msra.mxu0 0
      %1452 = vmatprep.subr.bf16.mxu0 0
      %1453 = vmatpush1.bf16.msra.mxu0 0
      %1454 = vmatprep.subr.bf16.mxu0 0
      %1455 = vmatpush1.bf16.msra.mxu0 0
      %1456 = vmatprep.subr.bf16.mxu0 0
      %1457 = vmatpush1.bf16.msra.mxu0 0
      %1458 = vmatprep.subr.bf16.mxu0 0
      %1459 = vmatpush1.bf16.msra.mxu0 0
      %1460 = vmatprep.subr.bf16.mxu0 0
      %1461 = vmatpush1.bf16.msra.mxu0 0
      %1462 = vmatprep.subr.bf16.mxu0 0
      %1463 = vmatpush1.bf16.msra.mxu0 0
      %1464 = vmatprep.mubr.bf16.mxu0 0
      %1465 = vmatmul.mubr.bf16.gmra.mrb[0].mxu0 %v1430
      %v1466 = vpop.f32.mrb[0].mxu0
      %v1467 = vadd.f32 %v1403, %v1466
      %v1468 = vpop.f32.mrb[0].mxu0
      %v1469 = vadd.f32 %v1405, %v1468
      %v1470 = vpop.f32.mrb[0].mxu0
      %v1471 = vadd.f32 %v1407, %v1470
      %v1472 = vpop.f32.mrb[0].mxu0
      %v1473 = vadd.f32 %v1409, %v1472
      %1474 = vdwg.mxu0
      %v1475 = vld [vmem:[%s3] sm:$0xa]
      %v1478 = vunpack.c.l.s4 1983009808
      %v1479 = vunpack.c.0.s8 %v1478
      %v1480 = vlaneseq
      %v1481 = vshrl.u32 %v1480, 7
      %v1482 = vsub.s32 %v1479, %v1481
      %v1483 = vrot.slane %v1475, %v1482
      %v1484 = vcombine.high %v1483, %v1483
      %v1486 = vpack.i.b16 %v1483, %v1483
      %v1488 = vlaneseq
      %v1489 = vshrl.u32 %v1488, 7
      %v1490 = vsub.s32 1, %v1489
      %v1491 = vrot.slane %v1486, %v1490
      %v1493 = vpack.i.b16 %v1484, %v1484
      %v1495 = vlaneseq
      %v1496 = vshrl.u32 %v1495, 7
      %v1497 = vsub.s32 1, %v1496
      %v1498 = vrot.slane %v1493, %v1497
      %1501 = vrot.lane.b32.xlu0 %v1491, 113
      %v1502 = vpop.permute.xlu0 %1501
      %1503 = vrot.lane.b32.xlu0 %v1498, 113
      %v1504 = vpop.permute.xlu0 %1503
      %v1505 = vsel %vm640, %v1502, %v1504
      %v1509 = vmul.bf16 %v1301, %v1502
      %v1510 = vmul.bf16 %v1302, %v1505
      %v1511 = vmul.bf16 %v1303, %v1504
      %s1512 = scalar_lea.vmem %s6, 16
      %v1513 = vld [vmem:[%s1512] sm:$0xf]
      %v1514 = vld [vmem:[%s1512 + $0x4] sm:$0xf]
      %v1517 = vunpack.c.l.b16 %v1513
      %v1518 = vunpack.c.l.b16 %v1514
      %v1519 = vpack.c.b16 %v1518, %v1517
      %1523 = vrot.lane.b32.xlu0 %v1509, 15
      %v1524 = vpop.permute.xlu0 %1523
      %1525 = vrot.lane.b32.xlu0 %v1510, 15
      %v1526 = vpop.permute.xlu0 %1525
      %1527 = vrot.lane.b32.xlu0 %v1511, 15
      %v1528 = vpop.permute.xlu0 %1527
      %v1529 = vsel %vm668, %v1524, %v1526
      %v1530 = vsel %vm668, %v1526, %v1528
      %v1534 = vsel %vm1364, %v1519, 0
      %1536 = vmatprep.subr.bf16.mxu0 %v1530
      %1537 = vmatpush1.bf16.msra.mxu0 %v1529
      %1538 = vmatprep.subr.bf16.mxu0 0
      %1539 = vmatpush1.bf16.msra.mxu0 0
      %1540 = vmatprep.subr.bf16.mxu0 0
      %1541 = vmatpush1.bf16.msra.mxu0 0
      %1542 = vmatprep.subr.bf16.mxu0 0
      %1543 = vmatpush1.bf16.msra.mxu0 0
      %1544 = vmatprep.subr.bf16.mxu0 0
      %1545 = vmatpush1.bf16.msra.mxu0 0
      %1546 = vmatprep.subr.bf16.mxu0 0
      %1547 = vmatpush1.bf16.msra.mxu0 0
      %1548 = vmatprep.subr.bf16.mxu0 0
      %1549 = vmatpush1.bf16.msra.mxu0 0
      %1550 = vmatprep.subr.bf16.mxu0 0
      %1551 = vmatpush1.bf16.msra.mxu0 0
      %1552 = vmatprep.subr.bf16.mxu0 0
      %1553 = vmatpush1.bf16.msra.mxu0 0
      %1554 = vmatprep.subr.bf16.mxu0 0
      %1555 = vmatpush1.bf16.msra.mxu0 0
      %1556 = vmatprep.subr.bf16.mxu0 0
      %1557 = vmatpush1.bf16.msra.mxu0 0
      %1558 = vmatprep.subr.bf16.mxu0 0
      %1559 = vmatpush1.bf16.msra.mxu0 0
      %1560 = vmatprep.subr.bf16.mxu0 0
      %1561 = vmatpush1.bf16.msra.mxu0 0
      %1562 = vmatprep.subr.bf16.mxu0 0
      %1563 = vmatpush1.bf16.msra.mxu0 0
      %1564 = vmatprep.subr.bf16.mxu0 0
      %1565 = vmatpush1.bf16.msra.mxu0 0
      %1566 = vmatprep.subr.bf16.mxu0 0
      %1567 = vmatpush1.bf16.msra.mxu0 0
      %1568 = vmatprep.mubr.bf16.mxu0 0
      %1569 = vmatmul.mubr.bf16.gmra.mrb[0].mxu0 %v1534
      %v1570 = vpop.f32.mrb[0].mxu0
      %v1571 = vadd.f32 0.0, %v1570
      %v1572 = vpop.f32.mrb[0].mxu0
      %v1573 = vadd.f32 0.0, %v1572
      %v1574 = vpop.f32.mrb[0].mxu0
      %v1575 = vadd.f32 0.0, %v1574
      %v1576 = vpop.f32.mrb[0].mxu0
      %v1577 = vadd.f32 0.0, %v1576
      %1578 = vdwg.mxu0
      %v1579 = vadd.f32 %v1467, %v1571
      %v1580 = vadd.f32 %v1469, %v1573
      %v1581 = vadd.f32 %v1471, %v1575
      %v1582 = vadd.f32 %v1473, %v1577
      %v1583 = vld [vmem:[#allocation3] sm:$0xff]
      %v1584 = vld [vmem:[#allocation3 + $0x8] sm:$0xff]
      %v1585 = vld [vmem:[#allocation3 + $0x10] sm:$0xff]
      %1586 = vrot.lane.b32.xlu0 %v1320, 127
      %v1587 = vpop.permute.xlu0 %1586
      %1588 = vrot.lane.b32.xlu0 %v1327, 127
      %v1589 = vpop.permute.xlu0 %1588
      %v1590 = vsel %vm732, %v1587, %v1589
      %v1594 = vmul.bf16 %v1583, %v1587
      %v1595 = vmul.bf16 %v1584, %v1590
      %v1596 = vmul.bf16 %v1585, %v1589
      %s1597 = scalar_lea.vmem %s6, 24
      %v1598 = vld [vmem:[%s1597] sm:$0xf]
      %v1599 = vld [vmem:[%s1597 + $0x4] sm:$0xf]
      %v1602 = vunpack.c.l.b16 %v1598
      %v1603 = vunpack.c.l.b16 %v1599
      %v1604 = vpack.c.b16 %v1603, %v1602
      %1608 = vrot.lane.b32.xlu0 %v1594, 1
      %v1609 = vpop.permute.xlu0 %1608
      %1610 = vrot.lane.b32.xlu0 %v1595, 1
      %v1611 = vpop.permute.xlu0 %1610
      %1612 = vrot.lane.b32.xlu0 %v1596, 1
      %v1613 = vpop.permute.xlu0 %1612
      %v1614 = vsel %vm760, %v1609, %v1611
      %v1615 = vsel %vm760, %v1611, %v1613
      %v1619 = vsel %vm1364, %v1604, 0
      %1621 = vmatprep.subr.bf16.mxu0 %v1615
      %1622 = vmatpush1.bf16.msra.mxu0 %v1614
      %1623 = vmatprep.subr.bf16.mxu0 0
      %1624 = vmatpush1.bf16.msra.mxu0 0
      %1625 = vmatprep.subr.bf16.mxu0 0
      %1626 = vmatpush1.bf16.msra.mxu0 0
      %1627 = vmatprep.subr.bf16.mxu0 0
      %1628 = vmatpush1.bf16.msra.mxu0 0
      %1629 = vmatprep.subr.bf16.mxu0 0
      %1630 = vmatpush1.bf16.msra.mxu0 0
      %1631 = vmatprep.subr.bf16.mxu0 0
      %1632 = vmatpush1.bf16.msra.mxu0 0
      %1633 = vmatprep.subr.bf16.mxu0 0
      %1634 = vmatpush1.bf16.msra.mxu0 0
      %1635 = vmatprep.subr.bf16.mxu0 0
      %1636 = vmatpush1.bf16.msra.mxu0 0
      %1637 = vmatprep.subr.bf16.mxu0 0
      %1638 = vmatpush1.bf16.msra.mxu0 0
      %1639 = vmatprep.subr.bf16.mxu0 0
      %1640 = vmatpush1.bf16.msra.mxu0 0
      %1641 = vmatprep.subr.bf16.mxu0 0
      %1642 = vmatpush1.bf16.msra.mxu0 0
      %1643 = vmatprep.subr.bf16.mxu0 0
      %1644 = vmatpush1.bf16.msra.mxu0 0
      %1645 = vmatprep.subr.bf16.mxu0 0
      %1646 = vmatpush1.bf16.msra.mxu0 0
      %1647 = vmatprep.subr.bf16.mxu0 0
      %1648 = vmatpush1.bf16.msra.mxu0 0
      %1649 = vmatprep.subr.bf16.mxu0 0
      %1650 = vmatpush1.bf16.msra.mxu0 0
      %1651 = vmatprep.subr.bf16.mxu0 0
      %1652 = vmatpush1.bf16.msra.mxu0 0
      %1653 = vmatprep.mubr.bf16.mxu0 0
      %1654 = vmatmul.mubr.bf16.gmra.mrb[0].mxu0 %v1619
      %v1655 = vpop.f32.mrb[0].mxu0
      %v1656 = vadd.f32 0.0, %v1655
      %v1657 = vpop.f32.mrb[0].mxu0
      %v1658 = vadd.f32 0.0, %v1657
      %v1659 = vpop.f32.mrb[0].mxu0
      %v1660 = vadd.f32 0.0, %v1659
      %v1661 = vpop.f32.mrb[0].mxu0
      %v1662 = vadd.f32 0.0, %v1661
      %1663 = vdwg.mxu0
      %v1664 = vadd.f32 %v1579, %v1656
      %v1665 = vadd.f32 %v1580, %v1658
      %v1666 = vadd.f32 %v1581, %v1660
      %v1667 = vadd.f32 %v1582, %v1662
      %s1668 = scalar_lea.vmem %s6, 32
      %v1669 = vld [vmem:[%s1668] sm:$0xf]
      %v1670 = vld [vmem:[%s1668 + $0x4] sm:$0xf]
      %v1673 = vunpack.c.l.b16 %v1669
      %v1674 = vunpack.c.l.b16 %v1670
      %v1675 = vpack.c.b16 %v1674, %v1673
      %v1677 = vsel %vm1364, %v1675, 0
      %1679 = vmatprep.subr.bf16.mxu0 %v1585
      %1680 = vmatpush1.bf16.msra.mxu0 %v1584
      %1681 = vmatprep.subr.bf16.mxu0 0
      %1682 = vmatpush1.bf16.msra.mxu0 0
      %1683 = vmatprep.subr.bf16.mxu0 0
      %1684 = vmatpush1.bf16.msra.mxu0 0
      %1685 = vmatprep.subr.bf16.mxu0 0
      %1686 = vmatpush1.bf16.msra.mxu0 0
      %1687 = vmatprep.subr.bf16.mxu0 0
      %1688 = vmatpush1.bf16.msra.mxu0 0
      %1689 = vmatprep.subr.bf16.mxu0 0
      %1690 = vmatpush1.bf16.msra.mxu0 0
      %1691 = vmatprep.subr.bf16.mxu0 0
      %1692 = vmatpush1.bf16.msra.mxu0 0
      %1693 = vmatprep.subr.bf16.mxu0 0
      %1694 = vmatpush1.bf16.msra.mxu0 0
      %1695 = vmatprep.subr.bf16.mxu0 0
      %1696 = vmatpush1.bf16.msra.mxu0 0
      %1697 = vmatprep.subr.bf16.mxu0 0
      %1698 = vmatpush1.bf16.msra.mxu0 0
      %1699 = vmatprep.subr.bf16.mxu0 0
      %1700 = vmatpush1.bf16.msra.mxu0 0
      %1701 = vmatprep.subr.bf16.mxu0 0
      %1702 = vmatpush1.bf16.msra.mxu0 0
      %1703 = vmatprep.subr.bf16.mxu0 0
      %1704 = vmatpush1.bf16.msra.mxu0 0
      %1705 = vmatprep.subr.bf16.mxu0 0
      %1706 = vmatpush1.bf16.msra.mxu0 0
      %1707 = vmatprep.subr.bf16.mxu0 0
      %1708 = vmatpush1.bf16.msra.mxu0 0
      %1709 = vmatprep.subr.bf16.mxu0 0
      %1710 = vmatpush1.bf16.msra.mxu0 0
      %1711 = vmatprep.mubr.bf16.mxu0 0
      %1712 = vmatmul.mubr.bf16.gmra.mrb[0].mxu0 %v1677
      %v1713 = vpop.f32.mrb[0].mxu0
      %v1714 = vadd.f32 0.0, %v1713
      %v1715 = vpop.f32.mrb[0].mxu0
      %v1716 = vadd.f32 0.0, %v1715
      %v1717 = vpop.f32.mrb[0].mxu0
      %v1718 = vadd.f32 0.0, %v1717
      %v1719 = vpop.f32.mrb[0].mxu0
      %v1720 = vadd.f32 0.0, %v1719
      %1721 = vdwg.mxu0
      %v1722 = vadd.f32 %v1664, %v1714
      %v1723 = vadd.f32 %v1665, %v1716
      %v1724 = vadd.f32 %v1666, %v1718
      %v1725 = vadd.f32 %v1667, %v1720
      %v1726 = vld [vmem:[#allocation3 + $0x8] sm:$0xff]
      %v1727 = vld [vmem:[#allocation3 + $0x10] sm:$0xff]
      %v1728 = vld [vmem:[#allocation3 + $0x18] sm:$0xff]
      %1729 = vrot.lane.b32.xlu0 %v1491, 1
      %v1730 = vpop.permute.xlu0 %1729
      %1731 = vrot.lane.b32.xlu0 %v1498, 1
      %v1732 = vpop.permute.xlu0 %1731
      %v1733 = vsel %vm760, %v1730, %v1732
      %v1737 = vmul.bf16 %v1726, %v1730
      %v1738 = vmul.bf16 %v1727, %v1733
      %v1739 = vmul.bf16 %v1728, %v1732
      %s1740 = scalar_lea.vmem %s6, 40
      %v1741 = vld [vmem:[%s1740] sm:$0xf]
      %v1742 = vld [vmem:[%s1740 + $0x4] sm:$0xf]
      %v1745 = vunpack.c.l.b16 %v1741
      %v1746 = vunpack.c.l.b16 %v1742
      %v1747 = vpack.c.b16 %v1746, %v1745
      %1751 = vrot.lane.b32.xlu0 %v1737, 127
      %v1752 = vpop.permute.xlu0 %1751
      %1753 = vrot.lane.b32.xlu0 %v1738, 127
      %v1754 = vpop.permute.xlu0 %1753
      %1755 = vrot.lane.b32.xlu0 %v1739, 127
      %v1756 = vpop.permute.xlu0 %1755
      %v1757 = vsel %vm732, %v1752, %v1754
      %v1758 = vsel %vm732, %v1754, %v1756
      %v1762 = vsel %vm1364, %v1747, 0
      %1764 = vmatprep.subr.bf16.mxu0 %v1758
      %1765 = vmatpush1.bf16.msra.mxu0 %v1757
      %1766 = vmatprep.subr.bf16.mxu0 0
      %1767 = vmatpush1.bf16.msra.mxu0 0
      %1768 = vmatprep.subr.bf16.mxu0 0
      %1769 = vmatpush1.bf16.msra.mxu0 0
      %1770 = vmatprep.subr.bf16.mxu0 0
      %1771 = vmatpush1.bf16.msra.mxu0 0
      %1772 = vmatprep.subr.bf16.mxu0 0
      %1773 = vmatpush1.bf16.msra.mxu0 0
      %1774 = vmatprep.subr.bf16.mxu0 0
      %1775 = vmatpush1.bf16.msra.mxu0 0
      %1776 = vmatprep.subr.bf16.mxu0 0
      %1777 = vmatpush1.bf16.msra.mxu0 0
      %1778 = vmatprep.subr.bf16.mxu0 0
      %1779 = vmatpush1.bf16.msra.mxu0 0
      %1780 = vmatprep.subr.bf16.mxu0 0
      %1781 = vmatpush1.bf16.msra.mxu0 0
      %1782 = vmatprep.subr.bf16.mxu0 0
      %1783 = vmatpush1.bf16.msra.mxu0 0
      %1784 = vmatprep.subr.bf16.mxu0 0
      %1785 = vmatpush1.bf16.msra.mxu0 0
      %1786 = vmatprep.subr.bf16.mxu0 0
      %1787 = vmatpush1.bf16.msra.mxu0 0
      %1788 = vmatprep.subr.bf16.mxu0 0
      %1789 = vmatpush1.bf16.msra.mxu0 0
      %1790 = vmatprep.subr.bf16.mxu0 0
      %1791 = vmatpush1.bf16.msra.mxu0 0
      %1792 = vmatprep.subr.bf16.mxu0 0
      %1793 = vmatpush1.bf16.msra.mxu0 0
      %1794 = vmatprep.subr.bf16.mxu0 0
      %1795 = vmatpush1.bf16.msra.mxu0 0
      %1796 = vmatprep.mubr.bf16.mxu0 0
      %1797 = vmatmul.mubr.bf16.gmra.mrb[0].mxu0 %v1762
      %v1798 = vpop.f32.mrb[0].mxu0
      %v1799 = vadd.f32 0.0, %v1798
      %v1800 = vpop.f32.mrb[0].mxu0
      %v1801 = vadd.f32 0.0, %v1800
      %v1802 = vpop.f32.mrb[0].mxu0
      %v1803 = vadd.f32 0.0, %v1802
      %v1804 = vpop.f32.mrb[0].mxu0
      %v1805 = vadd.f32 0.0, %v1804
      %1806 = vdwg.mxu0
      %v1807 = vadd.f32 %v1722, %v1799
      %v1808 = vadd.f32 %v1723, %v1801
      %v1809 = vadd.f32 %v1724, %v1803
      %v1810 = vadd.f32 %v1725, %v1805
      %1811 = vrot.lane.b32.xlu0 %v1320, 15
      %v1812 = vpop.permute.xlu0 %1811
      %1813 = vrot.lane.b32.xlu0 %v1327, 15
      %v1814 = vpop.permute.xlu0 %1813
      %v1815 = vsel %vm668, %v1812, %v1814
      %v1819 = vmul.bf16 %v1726, %v1812
      %v1820 = vmul.bf16 %v1727, %v1815
      %v1821 = vmul.bf16 %v1728, %v1814
      %s1822 = scalar_lea.vmem %s6, 48
      %v1823 = vld [vmem:[%s1822] sm:$0xf]
      %v1824 = vld [vmem:[%s1822 + $0x4] sm:$0xf]
      %v1827 = vunpack.c.l.b16 %v1823
      %v1828 = vunpack.c.l.b16 %v1824
      %v1829 = vpack.c.b16 %v1828, %v1827
      %1833 = vrot.lane.b32.xlu0 %v1819, 113
      %v1834 = vpop.permute.xlu0 %1833
      %1835 = vrot.lane.b32.xlu0 %v1820, 113
      %v1836 = vpop.permute.xlu0 %1835
      %1837 = vrot.lane.b32.xlu0 %v1821, 113
      %v1838 = vpop.permute.xlu0 %1837
      %v1839 = vsel %vm640, %v1834, %v1836
      %v1840 = vsel %vm640, %v1836, %v1838
      %v1844 = vsel %vm1364, %v1829, 0
      %1846 = vmatprep.subr.bf16.mxu0 %v1840
      %1847 = vmatpush1.bf16.msra.mxu0 %v1839
      %1848 = vmatprep.subr.bf16.mxu0 0
      %1849 = vmatpush1.bf16.msra.mxu0 0
      %1850 = vmatprep.subr.bf16.mxu0 0
      %1851 = vmatpush1.bf16.msra.mxu0 0
      %1852 = vmatprep.subr.bf16.mxu0 0
      %1853 = vmatpush1.bf16.msra.mxu0 0
      %1854 = vmatprep.subr.bf16.mxu0 0
      %1855 = vmatpush1.bf16.msra.mxu0 0
      %1856 = vmatprep.subr.bf16.mxu0 0
      %1857 = vmatpush1.bf16.msra.mxu0 0
      %1858 = vmatprep.subr.bf16.mxu0 0
      %1859 = vmatpush1.bf16.msra.mxu0 0
      %1860 = vmatprep.subr.bf16.mxu0 0
      %1861 = vmatpush1.bf16.msra.mxu0 0
      %1862 = vmatprep.subr.bf16.mxu0 0
      %1863 = vmatpush1.bf16.msra.mxu0 0
      %1864 = vmatprep.subr.bf16.mxu0 0
      %1865 = vmatpush1.bf16.msra.mxu0 0
      %1866 = vmatprep.subr.bf16.mxu0 0
      %1867 = vmatpush1.bf16.msra.mxu0 0
      %1868 = vmatprep.subr.bf16.mxu0 0
      %1869 = vmatpush1.bf16.msra.mxu0 0
      %1870 = vmatprep.subr.bf16.mxu0 0
      %1871 = vmatpush1.bf16.msra.mxu0 0
      %1872 = vmatprep.subr.bf16.mxu0 0
      %1873 = vmatpush1.bf16.msra.mxu0 0
      %1874 = vmatprep.subr.bf16.mxu0 0
      %1875 = vmatpush1.bf16.msra.mxu0 0
      %1876 = vmatprep.subr.bf16.mxu0 0
      %1877 = vmatpush1.bf16.msra.mxu0 0
      %1878 = vmatprep.mubr.bf16.mxu0 0
      %1879 = vmatmul.mubr.bf16.gmra.mrb[0].mxu0 %v1844
      %v1880 = vpop.f32.mrb[0].mxu0
      %v1881 = vadd.f32 0.0, %v1880
      %v1882 = vpop.f32.mrb[0].mxu0
      %v1883 = vadd.f32 0.0, %v1882
      %v1884 = vpop.f32.mrb[0].mxu0
      %v1885 = vadd.f32 0.0, %v1884
      %v1886 = vpop.f32.mrb[0].mxu0
      %v1887 = vadd.f32 0.0, %v1886
      %1888 = vdwg.mxu0
      %v1889 = vadd.f32 %v1807, %v1881
      %v1890 = vadd.f32 %v1808, %v1883
      %v1891 = vadd.f32 %v1809, %v1885
      %v1892 = vadd.f32 %v1810, %v1887
      %s1893 = scalar_lea.vmem %s6, 56
      %v1894 = vld [vmem:[%s1893] sm:$0xf]
      %v1895 = vld [vmem:[%s1893 + $0x4] sm:$0xf]
      %v1898 = vunpack.c.l.b16 %v1894
      %v1899 = vunpack.c.l.b16 %v1895
      %v1900 = vpack.c.b16 %v1899, %v1898
      %1904 = vrot.lane.b32.xlu0 %v1726, 112
      %v1905 = vpop.permute.xlu0 %1904
      %1906 = vrot.lane.b32.xlu0 %v1727, 112
      %v1907 = vpop.permute.xlu0 %1906
      %1908 = vrot.lane.b32.xlu0 %v1728, 112
      %v1909 = vpop.permute.xlu0 %1908
      %v1910 = vsel %vm1089, %v1905, %v1907
      %v1911 = vsel %vm1089, %v1907, %v1909
      %v1915 = vsel %vm1364, %v1900, 0
      %1917 = vmatprep.subr.bf16.mxu0 %v1911
      %1918 = vmatpush1.bf16.msra.mxu0 %v1910
      %1919 = vmatprep.subr.bf16.mxu0 0
      %1920 = vmatpush1.bf16.msra.mxu0 0
      %1921 = vmatprep.subr.bf16.mxu0 0
      %1922 = vmatpush1.bf16.msra.mxu0 0
      %1923 = vmatprep.subr.bf16.mxu0 0
      %1924 = vmatpush1.bf16.msra.mxu0 0
      %1925 = vmatprep.subr.bf16.mxu0 0
      %1926 = vmatpush1.bf16.msra.mxu0 0
      %1927 = vmatprep.subr.bf16.mxu0 0
      %1928 = vmatpush1.bf16.msra.mxu0 0
      %1929 = vmatprep.subr.bf16.mxu0 0
      %1930 = vmatpush1.bf16.msra.mxu0 0
      %1931 = vmatprep.subr.bf16.mxu0 0
      %1932 = vmatpush1.bf16.msra.mxu0 0
      %1933 = vmatprep.subr.bf16.mxu0 0
      %1934 = vmatpush1.bf16.msra.mxu0 0
      %1935 = vmatprep.subr.bf16.mxu0 0
      %1936 = vmatpush1.bf16.msra.mxu0 0
      %1937 = vmatprep.subr.bf16.mxu0 0
      %1938 = vmatpush1.bf16.msra.mxu0 0
      %1939 = vmatprep.subr.bf16.mxu0 0
      %1940 = vmatpush1.bf16.msra.mxu0 0
      %1941 = vmatprep.subr.bf16.mxu0 0
      %1942 = vmatpush1.bf16.msra.mxu0 0
      %1943 = vmatprep.subr.bf16.mxu0 0
      %1944 = vmatpush1.bf16.msra.mxu0 0
      %1945 = vmatprep.subr.bf16.mxu0 0
      %1946 = vmatpush1.bf16.msra.mxu0 0
      %1947 = vmatprep.subr.bf16.mxu0 0
      %1948 = vmatpush1.bf16.msra.mxu0 0
      %1949 = vmatprep.mubr.bf16.mxu0 0
      %1950 = vmatmul.mubr.bf16.gmra.mrb[0].mxu0 %v1915
      %v1951 = vpop.f32.mrb[0].mxu0
      %v1952 = vadd.f32 0.0, %v1951
      %v1953 = vpop.f32.mrb[0].mxu0
      %v1954 = vadd.f32 0.0, %v1953
      %v1955 = vpop.f32.mrb[0].mxu0
      %v1956 = vadd.f32 0.0, %v1955
      %v1957 = vpop.f32.mrb[0].mxu0
      %v1958 = vadd.f32 0.0, %v1957
      %1959 = vdwg.mxu0
      %v1960 = vadd.f32 %v1889, %v1952
      %v1961 = vadd.f32 %v1890, %v1954
      %v1962 = vadd.f32 %v1891, %v1956
      %v1963 = vadd.f32 %v1892, %v1958
      %1964 = vrot.lane.b32.xlu0 %v1491, 17
      %v1965 = vpop.permute.xlu0 %1964
      %1966 = vrot.lane.b32.xlu0 %v1498, 17
      %v1967 = vpop.permute.xlu0 %1966
      %v1968 = vsel %vm553, %v1965, %v1967
      %v1972 = vmul.bf16 %v1726, %v1965
      %v1973 = vmul.bf16 %v1727, %v1968
      %v1974 = vmul.bf16 %v1728, %v1967
      %s1975 = scalar_lea.vmem %s6, 64
      %v1976 = vld [vmem:[%s1975] sm:$0xf]
      %v1977 = vld [vmem:[%s1975 + $0x4] sm:$0xf]
      %v1980 = vunpack.c.l.b16 %v1976
      %v1981 = vunpack.c.l.b16 %v1977
      %v1982 = vpack.c.b16 %v1981, %v1980
      %1986 = vrot.lane.b32.xlu0 %v1972, 111
      %v1987 = vpop.permute.xlu0 %1986
      %1988 = vrot.lane.b32.xlu0 %v1973, 111
      %v1989 = vpop.permute.xlu0 %1988
      %1990 = vrot.lane.b32.xlu0 %v1974, 111
      %v1991 = vpop.permute.xlu0 %1990
      %v1992 = vsel %vm447, %v1987, %v1989
      %v1993 = vsel %vm447, %v1989, %v1991
      %v1997 = vsel %vm1364, %v1982, 0
      %1999 = vmatprep.subr.bf16.mxu0 %v1993
      %2000 = vmatpush1.bf16.msra.mxu0 %v1992
      %2001 = vmatprep.subr.bf16.mxu0 0
      %2002 = vmatpush1.bf16.msra.mxu0 0
      %2003 = vmatprep.subr.bf16.mxu0 0
      %2004 = vmatpush1.bf16.msra.mxu0 0
      %2005 = vmatprep.subr.bf16.mxu0 0
      %2006 = vmatpush1.bf16.msra.mxu0 0
      %2007 = vmatprep.subr.bf16.mxu0 0
      %2008 = vmatpush1.bf16.msra.mxu0 0
      %2009 = vmatprep.subr.bf16.mxu0 0
      %2010 = vmatpush1.bf16.msra.mxu0 0
      %2011 = vmatprep.subr.bf16.mxu0 0
      %2012 = vmatpush1.bf16.msra.mxu0 0
      %2013 = vmatprep.subr.bf16.mxu0 0
      %2014 = vmatpush1.bf16.msra.mxu0 0
      %2015 = vmatprep.subr.bf16.mxu0 0
      %2016 = vmatpush1.bf16.msra.mxu0 0
      %2017 = vmatprep.subr.bf16.mxu0 0
      %2018 = vmatpush1.bf16.msra.mxu0 0
      %2019 = vmatprep.subr.bf16.mxu0 0
      %2020 = vmatpush1.bf16.msra.mxu0 0
      %2021 = vmatprep.subr.bf16.mxu0 0
      %2022 = vmatpush1.bf16.msra.mxu0 0
      %2023 = vmatprep.subr.bf16.mxu0 0
      %2024 = vmatpush1.bf16.msra.mxu0 0
      %2025 = vmatprep.subr.bf16.mxu0 0
      %2026 = vmatpush1.bf16.msra.mxu0 0
      %2027 = vmatprep.subr.bf16.mxu0 0
      %2028 = vmatpush1.bf16.msra.mxu0 0
      %2029 = vmatprep.subr.bf16.mxu0 0
      %2030 = vmatpush1.bf16.msra.mxu0 0
      %2031 = vmatprep.mubr.bf16.mxu0 0
      %2032 = vmatmul.mubr.bf16.gmra.mrb[0].mxu0 %v1997
      %v2033 = vpop.f32.mrb[0].mxu0
      %v2034 = vadd.f32 0.0, %v2033
      %v2035 = vpop.f32.mrb[0].mxu0
      %v2036 = vadd.f32 0.0, %v2035
      %v2037 = vpop.f32.mrb[0].mxu0
      %v2038 = vadd.f32 0.0, %v2037
      %v2039 = vpop.f32.mrb[0].mxu0
      %v2040 = vadd.f32 0.0, %v2039
      %2041 = vdwg.mxu0
      %v2042 = vadd.f32 %v1960, %v2034
      %v2043 = vadd.f32 %v1961, %v2036
      %v2044 = vadd.f32 %v1962, %v2038
      %v2045 = vadd.f32 %v1963, %v2040
      %v2046 = vld [vmem:[%s7] sm:$0xff]
      %v2047 = vld [vmem:[%s7 + $0x8] sm:$0xff]
      %2049 = vset.pattern.permute.xlu0 0
      %2050 = vperm.xlu0 %2049, %v2046
      %v2051 = vpop.permute.xlu0 %2050
      %2054 = vset.pattern.permute.xlu0 0
      %2055 = vperm.xlu0 %2054, %v2047
      %v2056 = vpop.permute.xlu0 %2055
      %v2058 = vadd.f32 %v2042, %v2051
      %v2059 = vadd.f32 %v2043, %v2051
      %v2060 = vadd.f32 %v2044, %v2056
      %v2061 = vadd.f32 %v2045, %v2056
      %v2062 = vld [vmem:[%s10] sm:$0xff]
      %v2063 = vld [vmem:[%s10 + $0x8] sm:$0xff]
      %v2064 = vld [vmem:[%s8] sm:$0xff]
      %v2065 = vld [vmem:[%s8 + $0x8] sm:$0xff]
      %v2066 = vld [vmem:[%s9] sm:$0xff]
      %v2067 = vld [vmem:[%s9 + $0x8] sm:$0xff]
      %v2068 = vmul.f32 %v2058, %v1284
      %v2069 = vmul.f32 %v2059, %v1288
      %v2070 = vmul.f32 %v2060, %v1284
      %v2071 = vmul.f32 %v2061, %v1288
      %v2072 = vadd.f32 %v2068, %v2069
      %2073 = vadd.xlane.f32.xlu0 %v2072
      %v2074 = vpop.xlane.xlu0 %2073
      %v2075 = vadd.f32 %v2070, %v2071
      %2076 = vadd.xlane.f32.xlu0 %v2075
      %v2077 = vpop.xlane.xlu0 %2076
      %v2078 = vmul.f32 %v2068, %v2068
      %v2079 = vmul.f32 %v2069, %v2069
      %v2080 = vmul.f32 %v2070, %v2070
      %v2081 = vmul.f32 %v2071, %v2071
      %v2082 = vadd.f32 %v2078, %v2079
      %2083 = vadd.xlane.f32.xlu0 %v2082
      %v2084 = vpop.xlane.xlu0 %2083
      %v2085 = vadd.f32 %v2080, %v2081
      %2086 = vadd.xlane.f32.xlu0 %v2085
      %v2087 = vpop.xlane.xlu0 %2086
      %v2089 = vsel %vm1364, %v2062, 0
      %v2092 = vsel %vm1364, %v2063, 0
      %2094 = vmatprep.subr.mxu0 0.0
      %2095 = vmatpush1.msra.mxu0 %v2074
      %2096 = vmatprep.subr.mxu0 0.0
      %2097 = vmatpush1.msra.mxu0 %v2077
      %2098 = vmatprep.subr.mxu0 0.0
      %2099 = vmatpush1.msra.mxu0 0.0
      %2100 = vmatprep.subr.mxu0 0.0
      %2101 = vmatpush1.msra.mxu0 0.0
      %2102 = vmatprep.subr.mxu0 0.0
      %2103 = vmatpush1.msra.mxu0 0.0
      %2104 = vmatprep.subr.mxu0 0.0
      %2105 = vmatpush1.msra.mxu0 0.0
      %2106 = vmatprep.subr.mxu0 0.0
      %2107 = vmatpush1.msra.mxu0 0.0
      %2108 = vmatprep.subr.mxu0 0.0
      %2109 = vmatpush1.msra.mxu0 0.0
      %2110 = vmatprep.subr.mxu0 0.0
      %2111 = vmatpush1.msra.mxu0 0.0
      %2112 = vmatprep.subr.mxu0 0.0
      %2113 = vmatpush1.msra.mxu0 0.0
      %2114 = vmatprep.subr.mxu0 0.0
      %2115 = vmatpush1.msra.mxu0 0.0
      %2116 = vmatprep.subr.mxu0 0.0
      %2117 = vmatpush1.msra.mxu0 0.0
      %2118 = vmatprep.subr.mxu0 0.0
      %2119 = vmatpush1.msra.mxu0 0.0
      %2120 = vmatprep.subr.mxu0 0.0
      %2121 = vmatpush1.msra.mxu0 0.0
      %2122 = vmatprep.subr.mxu0 0.0
      %2123 = vmatpush1.msra.mxu0 0.0
      %2124 = vmatprep.subr.mxu0 0.0
      %2125 = vmatpush1.msra.mxu0 0.0
      %2126 = vmatprep.subr.mxu0 0.0
      %2127 = vmatpush1.msra.mxu0 0.0
      %2128 = vmatprep.subr.mxu0 0.0
      %2129 = vmatpush1.msra.mxu0 0.0
      %2130 = vmatprep.subr.mxu0 0.0
      %2131 = vmatpush1.msra.mxu0 0.0
      %2132 = vmatprep.subr.mxu0 0.0
      %2133 = vmatpush1.msra.mxu0 0.0
      %2134 = vmatprep.subr.mxu0 0.0
      %2135 = vmatpush1.msra.mxu0 0.0
      %2136 = vmatprep.subr.mxu0 0.0
      %2137 = vmatpush1.msra.mxu0 0.0
      %2138 = vmatprep.subr.mxu0 0.0
      %2139 = vmatpush1.msra.mxu0 0.0
      %2140 = vmatprep.subr.mxu0 0.0
      %2141 = vmatpush1.msra.mxu0 0.0
      %2142 = vmatprep.subr.mxu0 0.0
      %2143 = vmatpush1.msra.mxu0 0.0
      %2144 = vmatprep.subr.mxu0 0.0
      %2145 = vmatpush1.msra.mxu0 0.0
      %2146 = vmatprep.subr.mxu0 0.0
      %2147 = vmatpush1.msra.mxu0 0.0
      %2148 = vmatprep.subr.mxu0 0.0
      %2149 = vmatpush1.msra.mxu0 0.0
      %2150 = vmatprep.subr.mxu0 0.0
      %2151 = vmatpush1.msra.mxu0 0.0
      %2152 = vmatprep.subr.mxu0 0.0
      %2153 = vmatpush1.msra.mxu0 0.0
      %2154 = vmatprep.subr.mxu0 0.0
      %2155 = vmatpush1.msra.mxu0 0.0
      %2156 = vmatprep.subr.mxu0 0.0
      %2157 = vmatpush1.msra.mxu0 0.0
      %2158 = vmatprep.mubr.f32.mxu0 0.0
      %2159 = vmatmul.mubr.f32.gmra.mrb[0].mxu0 %v2089
      %v2160 = vpop.f32.mrb[0].mxu0
      %v2161 = vadd.f32 0.0, %v2160
      %v2162 = vpop.f32.mrb[0].mxu0
      %2163 = vmatprep.mubr.f32.mxu0 0.0
      %2164 = vmatmul.mubr.f32.gmra.mrb[0].mxu0 %v2092
      %v2165 = vpop.f32.mrb[0].mxu0
      %v2166 = vadd.f32 0.0, %v2165
      %v2167 = vpop.f32.mrb[0].mxu0
      %2168 = vdwg.mxu0
      %v2169 = vrcp.pop 512.0
      %v2170 = vmul.f32 %v2161, %v2169
      %v2171 = vmul.f32 %v2166, %v2169
      %2172 = vmatprep.subr.mxu0 0.0
      %2173 = vmatpush1.msra.mxu0 %v2084
      %2174 = vmatprep.subr.mxu0 0.0
      %2175 = vmatpush1.msra.mxu0 %v2087
      %2176 = vmatprep.subr.mxu0 0.0
      %2177 = vmatpush1.msra.mxu0 0.0
      %2178 = vmatprep.subr.mxu0 0.0
      %2179 = vmatpush1.msra.mxu0 0.0
      %2180 = vmatprep.subr.mxu0 0.0
      %2181 = vmatpush1.msra.mxu0 0.0
      %2182 = vmatprep.subr.mxu0 0.0
      %2183 = vmatpush1.msra.mxu0 0.0
      %2184 = vmatprep.subr.mxu0 0.0
      %2185 = vmatpush1.msra.mxu0 0.0
      %2186 = vmatprep.subr.mxu0 0.0
      %2187 = vmatpush1.msra.mxu0 0.0
      %2188 = vmatprep.subr.mxu0 0.0
      %2189 = vmatpush1.msra.mxu0 0.0
      %2190 = vmatprep.subr.mxu0 0.0
      %2191 = vmatpush1.msra.mxu0 0.0
      %2192 = vmatprep.subr.mxu0 0.0
      %2193 = vmatpush1.msra.mxu0 0.0
      %2194 = vmatprep.subr.mxu0 0.0
      %2195 = vmatpush1.msra.mxu0 0.0
      %2196 = vmatprep.subr.mxu0 0.0
      %2197 = vmatpush1.msra.mxu0 0.0
      %2198 = vmatprep.subr.mxu0 0.0
      %2199 = vmatpush1.msra.mxu0 0.0
      %2200 = vmatprep.subr.mxu0 0.0
      %2201 = vmatpush1.msra.mxu0 0.0
      %2202 = vmatprep.subr.mxu0 0.0
      %2203 = vmatpush1.msra.mxu0 0.0
      %2204 = vmatprep.subr.mxu0 0.0
      %2205 = vmatpush1.msra.mxu0 0.0
      %2206 = vmatprep.subr.mxu0 0.0
      %2207 = vmatpush1.msra.mxu0 0.0
      %2208 = vmatprep.subr.mxu0 0.0
      %2209 = vmatpush1.msra.mxu0 0.0
      %2210 = vmatprep.subr.mxu0 0.0
      %2211 = vmatpush1.msra.mxu0 0.0
      %2212 = vmatprep.subr.mxu0 0.0
      %2213 = vmatpush1.msra.mxu0 0.0
      %2214 = vmatprep.subr.mxu0 0.0
      %2215 = vmatpush1.msra.mxu0 0.0
      %2216 = vmatprep.subr.mxu0 0.0
      %2217 = vmatpush1.msra.mxu0 0.0
      %2218 = vmatprep.subr.mxu0 0.0
      %2219 = vmatpush1.msra.mxu0 0.0
      %2220 = vmatprep.subr.mxu0 0.0
      %2221 = vmatpush1.msra.mxu0 0.0
      %2222 = vmatprep.subr.mxu0 0.0
      %2223 = vmatpush1.msra.mxu0 0.0
      %2224 = vmatprep.subr.mxu0 0.0
      %2225 = vmatpush1.msra.mxu0 0.0
      %2226 = vmatprep.subr.mxu0 0.0
      %2227 = vmatpush1.msra.mxu0 0.0
      %2228 = vmatprep.subr.mxu0 0.0
      %2229 = vmatpush1.msra.mxu0 0.0
      %2230 = vmatprep.subr.mxu0 0.0
      %2231 = vmatpush1.msra.mxu0 0.0
      %2232 = vmatprep.subr.mxu0 0.0
      %2233 = vmatpush1.msra.mxu0 0.0
      %2234 = vmatprep.subr.mxu0 0.0
      %2235 = vmatpush1.msra.mxu0 0.0
      %2236 = vmatprep.mubr.f32.mxu0 0.0
      %2237 = vmatmul.mubr.f32.gmra.mrb[0].mxu0 %v2089
      %v2238 = vpop.f32.mrb[0].mxu0
      %v2239 = vadd.f32 0.0, %v2238
      %v2240 = vpop.f32.mrb[0].mxu0
      %2241 = vmatprep.mubr.f32.mxu0 0.0
      %2242 = vmatmul.mubr.f32.gmra.mrb[0].mxu0 %v2092
      %v2243 = vpop.f32.mrb[0].mxu0
      %v2244 = vadd.f32 0.0, %v2243
      %v2245 = vpop.f32.mrb[0].mxu0
      %2246 = vdwg.mxu0
      %v2247 = vmul.f32 %v2239, %v2169
      %v2248 = vmul.f32 %v2244, %v2169
      %v2249 = vmul.f32 %v2170, %v2170
      %v2250 = vmul.f32 %v2171, %v2171
      %v2251 = vsub.f32 %v2247, %v2249
      %v2252 = vsub.f32 %v2248, %v2250
      %v2253 = vmax.f32 %v2251, 0.0
      %v2254 = vmax.f32 %v2252, 0.0
      %v2255 = vadd.f32 %v2253, 1e-05
      %v2256 = vadd.f32 %v2254, 1e-05
      %v2257 = vrsqrt.pop %v2255
      %v2258 = vrsqrt.pop %v2256
      %2260 = vset.pattern.permute.xlu0 0
      %2261 = vperm.xlu0 %2260, %v2170
      %v2262 = vpop.permute.xlu0 %2261
      %2265 = vset.pattern.permute.xlu0 0
      %2266 = vperm.xlu0 %2265, %v2171
      %v2267 = vpop.permute.xlu0 %2266
      %v2269 = vsub.f32 %v2058, %v2262
      %v2270 = vsub.f32 %v2059, %v2262
      %v2271 = vsub.f32 %v2060, %v2267
      %v2272 = vsub.f32 %v2061, %v2267
      %2274 = vset.pattern.permute.xlu0 0
      %2275 = vperm.xlu0 %2274, %v2257
      %v2276 = vpop.permute.xlu0 %2275
      %2279 = vset.pattern.permute.xlu0 0
      %2280 = vperm.xlu0 %2279, %v2258
      %v2281 = vpop.permute.xlu0 %2280
      %v2283 = vmul.f32 %v2269, %v2276
      %v2284 = vmul.f32 %v2270, %v2276
      %v2285 = vmul.f32 %v2271, %v2281
      %v2286 = vmul.f32 %v2272, %v2281
      %2288 = vset.pattern.permute.xlu0 0
      %2289 = vperm.xlu0 %2288, %v2064
      %v2290 = vpop.permute.xlu0 %2289
      %2293 = vset.pattern.permute.xlu0 0
      %2294 = vperm.xlu0 %2293, %v2065
      %v2295 = vpop.permute.xlu0 %2294
      %v2297 = vmul.f32 %v2283, %v2290
      %v2298 = vmul.f32 %v2284, %v2290
      %v2299 = vmul.f32 %v2285, %v2295
      %v2300 = vmul.f32 %v2286, %v2295
      %2302 = vset.pattern.permute.xlu0 0
      %2303 = vperm.xlu0 %2302, %v2066
      %v2304 = vpop.permute.xlu0 %2303
      %2307 = vset.pattern.permute.xlu0 0
      %2308 = vperm.xlu0 %2307, %v2067
      %v2309 = vpop.permute.xlu0 %2308
      %v2311 = vadd.f32 %v2297, %v2304
      %v2312 = vadd.f32 %v2298, %v2304
      %v2313 = vadd.f32 %v2299, %v2309
      %v2314 = vadd.f32 %v2300, %v2309
      %v2315 = vxor.u32 %v2311, 2147483648
      %v2316 = vxor.u32 %v2312, 2147483648
      %v2317 = vxor.u32 %v2313, 2147483648
      %v2318 = vxor.u32 %v2314, 2147483648
      %v2319 = vmul.f32 %v2315, 1.442695
      %v2320 = vpow.pop %v2319
      %v2321 = vmul.f32 %v2316, 1.442695
      %v2322 = vpow.pop %v2321
      %v2323 = vmul.f32 %v2317, 1.442695
      %v2324 = vpow.pop %v2323
      %v2325 = vmul.f32 %v2318, 1.442695
      %v2326 = vpow.pop %v2325
      %v2327 = vadd.f32 %v2320, 1.0
      %v2328 = vadd.f32 %v2322, 1.0
      %v2329 = vadd.f32 %v2324, 1.0
      %v2330 = vadd.f32 %v2326, 1.0
      %v2331 = vrcp.pop %v2327
      %v2332 = vmul.f32 1.0, %v2331
      %v2333 = vrcp.pop %v2328
      %v2334 = vmul.f32 1.0, %v2333
      %v2335 = vrcp.pop %v2329
      %v2336 = vmul.f32 1.0, %v2335
      %v2337 = vrcp.pop %v2330
      %v2338 = vmul.f32 1.0, %v2337
      %v2339 = vmul.f32 %v2311, %v2332
      %v2340 = vmul.f32 %v2312, %v2334
      %v2341 = vmul.f32 %v2313, %v2336
      %v2342 = vmul.f32 %v2314, %v2338
      %v2343 = vmul.f32 %v2339, %v1284
      %v2344 = vmul.f32 %v2340, %v1288
      %v2345 = vmul.f32 %v2341, %v1284
      %v2346 = vmul.f32 %v2342, %v1288
      %v2347 = vld [vmem:[%s401] sm:$0xff]
      %v2348 = vld [vmem:[%s401 + $0x8] sm:$0xff]
      %v2349 = vunpack.c.l.bf16 %v2347
      %v2350 = vunpack.c.h.bf16 %v2347
      %v2351 = vunpack.c.l.bf16 %v2348
      %v2352 = vunpack.c.h.bf16 %v2348
      %v2353 = vadd.f32 %v2343, %v2349
      %v2354 = vadd.f32 %v2344, %v2350
      %v2355 = vadd.f32 %v2345, %v2351
      %v2356 = vadd.f32 %v2346, %v2352
      %v2357 = vpack.c.bf16 %v2355, %v2353
      %v2358 = vpack.c.bf16 %v2356, %v2354
      %v2361 = vunpack.c.l.b16 %v2357
      %v2362 = vunpack.c.l.b16 %v2358
      %v2363 = vunpack.c.h.b16 %v2357
      %v2364 = vunpack.c.h.b16 %v2358
      %v2365 = vpack.c.b16 %v2362, %v2361
      %v2366 = vpack.c.b16 %v2364, %v2363
      %2369 = vst [vmem:[%s406] sm:$0xff] %v2365
      %2370 = vst [vmem:[%s406 + $0x8] sm:$0xff] %v2366
      %p2371 = scmp.lt.s32.totalorder %s22, 1
      %s2372 = scalar_select %p2371, %s22, 1
      %s2373 = smul.addr %s2372, 4
      %s2374 = smul.addr %s2373, 4
      %s2375 = scalar_lea.vmem %s11, %s2374
      // Predicated region
      $region65: #{decoder_stage.4} parent=63 // pred_check
        %p2376 = pneg %p281
      $region66: #{decoder_stage.4} parent=63 // pred_check_branch
        %2378 = sbr.rel (%p2376) target = $region68
      $region67: #{decoder_stage.4} parent=63 // pred_region
        _
      $region68: #{decoder_stage.4} parent=63 // pred_fallthru
        _
    $region64: #{decoder_stage.4} parent=5 // pred_fallthru
      _
    %p2379 = scmp.le.s32.totalorder 2, %s17
    // Predicated region
    $region69: #{decoder_stage.4} parent=5 // pred_check
      %p2380 = pneg %p2379
    $region70: #{decoder_stage.4} parent=5 // pred_check_branch
      %2382 = sbr.rel (%p2380) target = $region72
    $region71: #{decoder_stage.4} parent=5 // pred_region
      %s2383 = ssub.s32 %s17, 2
      // Predicated region
      $region73: #{decoder_stage.4} parent=71 // pred_check
        %p2384 = pneg %p287
      $region74: #{decoder_stage.4} parent=71 // pred_check_branch
        %2386 = sbr.rel (%p2384) target = $region76
      $region75: #{decoder_stage.4} parent=71 // pred_region
        %p2387 = scmp.lt.s32.totalorder %s23, 1
        %s2388 = scalar_select %p2387, %s23, 1
        %s2389 = smul.addr %s2388, 4
        %s2390 = smul.addr %s2389, 4
        %s2391 = scalar_lea.vmem %s11, %s2390
      $region76: #{decoder_stage.4} parent=71 // pred_fallthru
        _
    $region72: #{decoder_stage.4} parent=5 // pred_fallthru
      _
  $region6: #{decoder_stage.4} parent=0 // loop_footer
    %s21 = sadd.s32 1, %s17
  $region7: #{decoder_stage.4} parent=0 // loop_footer_branch
    %16 = sbr.rel target = $region3
  $region8: #{decoder_stage.4} parent=0 // loop_exit
    _

// kernel: decoder_stage.5
$region0: #{decoder_stage.5}
  #allocation0 [shape = 'u32[]', space=smem, size = 0x4, offset = 0x4, fixed_abs, tag = 'smem constant byte address 0x4 - core index']
  #allocation1 [shape = 'u32[144,128]{1,0:T(1,128)}', space=vmem, size = 0x12000, scoped, tag = 'internal scratch']
  #allocation2 [shape = 'bf16[16,512]{1,0:T(16,128)(2,1)}', space=vmem, size = 0x4000, scoped, tag = 'scratch operand']
  %s0 = inlined_call_operand.vmem [shape: bf16[2,16,256], index: 0, kind: input, shape index: {}]
  %s1 = inlined_call_operand.vmem [shape: f32[1,256], index: 1, kind: input, shape index: {}]
  %s2 = inlined_call_operand.vmem [shape: bf16[3,256], index: 2, kind: input, shape index: {}]
  %s3 = inlined_call_operand.vmem [shape: bf16[9,16,16], index: 3, kind: input, shape index: {}]
  %s4 = inlined_call_operand.vmem [shape: f32[16,1], index: 4, kind: input, shape index: {}]
  %s5 = inlined_call_operand.vmem [shape: f32[16,1], index: 5, kind: input, shape index: {}]
  %s6 = inlined_call_operand.vmem [shape: f32[16,1], index: 6, kind: input, shape index: {}]
  %s7 = inlined_call_operand.vmem [shape: bf16[9,16,16], index: 7, kind: input, shape index: {}]
  %s8 = inlined_call_operand.vmem [shape: f32[16,1], index: 8, kind: input, shape index: {}]
  %s9 = inlined_call_operand.vmem [shape: f32[16,1], index: 9, kind: input, shape index: {}]
  %s10 = inlined_call_operand.vmem [shape: f32[16,1], index: 10, kind: input, shape index: {}]
  %s11 = inlined_call_operand.vmem [shape: f32[16,16], index: 11, kind: input, shape index: {}]
  %s12 = inlined_call_operand.vmem [shape: bf16[2,16,256], index: 12, kind: output, shape index: {}]
  %s13 = sld [smem:[#allocation0]]
  $region81: #{decoder_stage.5} parent=0
    _
  %s15 = ssub.s32 1, %s13
  %s16 = scalar_select 0, %s15, %s13
  loop: start=0, step=1, limit=4
  $region2: #{decoder_stage.5} parent=0 // loop_pre_header
    _
  $region3: #{decoder_stage.5} parent=0 // loop_header
    %s18 = sphi 0, %s22
    %p19 = scmp.ge.s32.totalorder %s18, 4
    %s28 = sphi 0, %s30
    %s31 = sphi 0, %s28
    %s32 = sphi 0, %s31
    %s48 = sphi 0, %s32
    %s52 = sphi 0, %s52
    %s54 = sphi 0, %s52
    %s55 = sphi 0, %s54
    %s69 = sphi 0, %s55
    %s73 = sphi 0, %s73
    %s75 = sphi 0, %s73
    %s76 = sphi 0, %s75
    %s90 = sphi 0, %s76
    %s94 = sphi 0, %s94
    %s96 = sphi 0, %s94
    %s97 = sphi 0, %s96
    %s111 = sphi 0, %s97
    %s115 = sphi 0, %s115
    %s117 = sphi 0, %s115
    %s118 = sphi 0, %s117
    %s132 = sphi 0, %s118
    %s136 = sphi 0, %s136
    %s138 = sphi 0, %s136
    %s139 = sphi 0, %s138
    %s153 = sphi 0, %s139
    %s157 = sphi 0, %s157
    %s159 = sphi 0, %s157
    %s160 = sphi 0, %s159
    %s174 = sphi 0, %s160
    %s178 = sphi 0, %s178
    %s180 = sphi 0, %s178
    %s181 = sphi 0, %s180
    %s195 = sphi 0, %s181
    %s199 = sphi 0, %s199
    %s201 = sphi 0, %s199
    %s202 = sphi 0, %s201
    %s216 = sphi 0, %s202
    %s220 = sphi 0, %s220
    %s222 = sphi 0, %s220
    %s223 = sphi 0, %s222
    %s237 = sphi 0, %s223
    %s241 = sphi 0, %s241
    %s243 = sphi 0, %s241
    %s244 = sphi 0, %s243
    %s258 = sphi 0, %s244
    %s262 = sphi 0, %s262
    %s264 = sphi 0, %s262
    %s265 = sphi 0, %s264
    %s279 = sphi 0, %s265
    %s285 = sphi 0, %s287
    %s288 = sphi 0, %s285
    %s289 = sphi 0, %s288
    %s305 = sphi 0, %s289
  $region4: #{decoder_stage.5} parent=0 // loop_header_branch
    %21 = sbr.rel (%p19) target = $region8
  $region5: #{decoder_stage.5} parent=0 // loop_body
    %s23 = ssub.s32 %s18, 1
    %s24 = ssub.s32 %s18, 2
    %s25 = sadd.s32 %s18, 1
    %s26 = ssub.s32 %s18, %s25
    %p27 = scmp.eq.s32.totalorder %s26, 0
    %s29 = sadd.s32 %s28, 1
    %s30 = scalar_select %p27, %s28, %s29
    %p33 = pneg %p27
    %p34 = scmp.eq.s32.totalorder %s18, 1
    %p35 = por %p33, %p34
    %p36 = scmp.ne.s32.totalorder %s28, %s31
    %p37 = scmp.eq.s32.totalorder %s18, 0
    %p38 = por %p36, %p37
    %p39 = scmp.ne.s32.totalorder %s28, %s31
    %p40 = scmp.eq.s32.totalorder %s23, 1
    %p41 = por %p39, %p40
    %p42 = scmp.ne.s32.totalorder %s31, %s32
    %p43 = scmp.eq.s32.totalorder %s23, 0
    %p44 = por %p42, %p43
    %p45 = scmp.ne.s32.totalorder %s31, %s32
    %p46 = scmp.eq.s32.totalorder %s24, 1
    %p47 = por %p45, %p46
    %p49 = scmp.ne.s32.totalorder %s32, %s48
    %p50 = scmp.eq.s32.totalorder %s24, 0
    %p51 = por %p49, %p50
    %s53 = sadd.s32 %s52, 1
    %p56 = scmp.eq.s32.totalorder %s18, 1
    %p57 = scmp.ne.s32.totalorder %s52, %s54
    %p58 = scmp.eq.s32.totalorder %s18, 0
    %p59 = por %p57, %p58
    %p60 = scmp.ne.s32.totalorder %s52, %s54
    %p61 = scmp.eq.s32.totalorder %s23, 1
    %p62 = por %p60, %p61
    %p63 = scmp.ne.s32.totalorder %s54, %s55
    %p64 = scmp.eq.s32.totalorder %s23, 0
    %p65 = por %p63, %p64
    %p66 = scmp.ne.s32.totalorder %s54, %s55
    %p67 = scmp.eq.s32.totalorder %s24, 1
    %p68 = por %p66, %p67
    %p70 = scmp.ne.s32.totalorder %s55, %s69
    %p71 = scmp.eq.s32.totalorder %s24, 0
    %p72 = por %p70, %p71
    %s74 = sadd.s32 %s73, 1
    %p77 = scmp.eq.s32.totalorder %s18, 1
    %p78 = scmp.ne.s32.totalorder %s73, %s75
    %p79 = scmp.eq.s32.totalorder %s18, 0
    %p80 = por %p78, %p79
    %p81 = scmp.ne.s32.totalorder %s73, %s75
    %p82 = scmp.eq.s32.totalorder %s23, 1
    %p83 = por %p81, %p82
    %p84 = scmp.ne.s32.totalorder %s75, %s76
    %p85 = scmp.eq.s32.totalorder %s23, 0
    %p86 = por %p84, %p85
    %p87 = scmp.ne.s32.totalorder %s75, %s76
    %p88 = scmp.eq.s32.totalorder %s24, 1
    %p89 = por %p87, %p88
    %p91 = scmp.ne.s32.totalorder %s76, %s90
    %p92 = scmp.eq.s32.totalorder %s24, 0
    %p93 = por %p91, %p92
    %s95 = sadd.s32 %s94, 1
    %p98 = scmp.eq.s32.totalorder %s18, 1
    %p99 = scmp.ne.s32.totalorder %s94, %s96
    %p100 = scmp.eq.s32.totalorder %s18, 0
    %p101 = por %p99, %p100
    %p102 = scmp.ne.s32.totalorder %s94, %s96
    %p103 = scmp.eq.s32.totalorder %s23, 1
    %p104 = por %p102, %p103
    %p105 = scmp.ne.s32.totalorder %s96, %s97
    %p106 = scmp.eq.s32.totalorder %s23, 0
    %p107 = por %p105, %p106
    %p108 = scmp.ne.s32.totalorder %s96, %s97
    %p109 = scmp.eq.s32.totalorder %s24, 1
    %p110 = por %p108, %p109
    %p112 = scmp.ne.s32.totalorder %s97, %s111
    %p113 = scmp.eq.s32.totalorder %s24, 0
    %p114 = por %p112, %p113
    %s116 = sadd.s32 %s115, 1
    %p119 = scmp.eq.s32.totalorder %s18, 1
    %p120 = scmp.ne.s32.totalorder %s115, %s117
    %p121 = scmp.eq.s32.totalorder %s18, 0
    %p122 = por %p120, %p121
    %p123 = scmp.ne.s32.totalorder %s115, %s117
    %p124 = scmp.eq.s32.totalorder %s23, 1
    %p125 = por %p123, %p124
    %p126 = scmp.ne.s32.totalorder %s117, %s118
    %p127 = scmp.eq.s32.totalorder %s23, 0
    %p128 = por %p126, %p127
    %p129 = scmp.ne.s32.totalorder %s117, %s118
    %p130 = scmp.eq.s32.totalorder %s24, 1
    %p131 = por %p129, %p130
    %p133 = scmp.ne.s32.totalorder %s118, %s132
    %p134 = scmp.eq.s32.totalorder %s24, 0
    %p135 = por %p133, %p134
    %s137 = sadd.s32 %s136, 1
    %p140 = scmp.eq.s32.totalorder %s18, 1
    %p141 = scmp.ne.s32.totalorder %s136, %s138
    %p142 = scmp.eq.s32.totalorder %s18, 0
    %p143 = por %p141, %p142
    %p144 = scmp.ne.s32.totalorder %s136, %s138
    %p145 = scmp.eq.s32.totalorder %s23, 1
    %p146 = por %p144, %p145
    %p147 = scmp.ne.s32.totalorder %s138, %s139
    %p148 = scmp.eq.s32.totalorder %s23, 0
    %p149 = por %p147, %p148
    %p150 = scmp.ne.s32.totalorder %s138, %s139
    %p151 = scmp.eq.s32.totalorder %s24, 1
    %p152 = por %p150, %p151
    %p154 = scmp.ne.s32.totalorder %s139, %s153
    %p155 = scmp.eq.s32.totalorder %s24, 0
    %p156 = por %p154, %p155
    %s158 = sadd.s32 %s157, 1
    %p161 = scmp.eq.s32.totalorder %s18, 1
    %p162 = scmp.ne.s32.totalorder %s157, %s159
    %p163 = scmp.eq.s32.totalorder %s18, 0
    %p164 = por %p162, %p163
    %p165 = scmp.ne.s32.totalorder %s157, %s159
    %p166 = scmp.eq.s32.totalorder %s23, 1
    %p167 = por %p165, %p166
    %p168 = scmp.ne.s32.totalorder %s159, %s160
    %p169 = scmp.eq.s32.totalorder %s23, 0
    %p170 = por %p168, %p169
    %p171 = scmp.ne.s32.totalorder %s159, %s160
    %p172 = scmp.eq.s32.totalorder %s24, 1
    %p173 = por %p171, %p172
    %p175 = scmp.ne.s32.totalorder %s160, %s174
    %p176 = scmp.eq.s32.totalorder %s24, 0
    %p177 = por %p175, %p176
    %s179 = sadd.s32 %s178, 1
    %p182 = scmp.eq.s32.totalorder %s18, 1
    %p183 = scmp.ne.s32.totalorder %s178, %s180
    %p184 = scmp.eq.s32.totalorder %s18, 0
    %p185 = por %p183, %p184
    %p186 = scmp.ne.s32.totalorder %s178, %s180
    %p187 = scmp.eq.s32.totalorder %s23, 1
    %p188 = por %p186, %p187
    %p189 = scmp.ne.s32.totalorder %s180, %s181
    %p190 = scmp.eq.s32.totalorder %s23, 0
    %p191 = por %p189, %p190
    %p192 = scmp.ne.s32.totalorder %s180, %s181
    %p193 = scmp.eq.s32.totalorder %s24, 1
    %p194 = por %p192, %p193
    %p196 = scmp.ne.s32.totalorder %s181, %s195
    %p197 = scmp.eq.s32.totalorder %s24, 0
    %p198 = por %p196, %p197
    %s200 = sadd.s32 %s199, 1
    %p203 = scmp.eq.s32.totalorder %s18, 1
    %p204 = scmp.ne.s32.totalorder %s199, %s201
    %p205 = scmp.eq.s32.totalorder %s18, 0
    %p206 = por %p204, %p205
    %p207 = scmp.ne.s32.totalorder %s199, %s201
    %p208 = scmp.eq.s32.totalorder %s23, 1
    %p209 = por %p207, %p208
    %p210 = scmp.ne.s32.totalorder %s201, %s202
    %p211 = scmp.eq.s32.totalorder %s23, 0
    %p212 = por %p210, %p211
    %p213 = scmp.ne.s32.totalorder %s201, %s202
    %p214 = scmp.eq.s32.totalorder %s24, 1
    %p215 = por %p213, %p214
    %p217 = scmp.ne.s32.totalorder %s202, %s216
    %p218 = scmp.eq.s32.totalorder %s24, 0
    %p219 = por %p217, %p218
    %s221 = sadd.s32 %s220, 1
    %p224 = scmp.eq.s32.totalorder %s18, 1
    %p225 = scmp.ne.s32.totalorder %s220, %s222
    %p226 = scmp.eq.s32.totalorder %s18, 0
    %p227 = por %p225, %p226
    %p228 = scmp.ne.s32.totalorder %s220, %s222
    %p229 = scmp.eq.s32.totalorder %s23, 1
    %p230 = por %p228, %p229
    %p231 = scmp.ne.s32.totalorder %s222, %s223
    %p232 = scmp.eq.s32.totalorder %s23, 0
    %p233 = por %p231, %p232
    %p234 = scmp.ne.s32.totalorder %s222, %s223
    %p235 = scmp.eq.s32.totalorder %s24, 1
    %p236 = por %p234, %p235
    %p238 = scmp.ne.s32.totalorder %s223, %s237
    %p239 = scmp.eq.s32.totalorder %s24, 0
    %p240 = por %p238, %p239
    %s242 = sadd.s32 %s241, 1
    %p245 = scmp.eq.s32.totalorder %s18, 1
    %p246 = scmp.ne.s32.totalorder %s241, %s243
    %p247 = scmp.eq.s32.totalorder %s18, 0
    %p248 = por %p246, %p247
    %p249 = scmp.ne.s32.totalorder %s241, %s243
    %p250 = scmp.eq.s32.totalorder %s23, 1
    %p251 = por %p249, %p250
    %p252 = scmp.ne.s32.totalorder %s243, %s244
    %p253 = scmp.eq.s32.totalorder %s23, 0
    %p254 = por %p252, %p253
    %p255 = scmp.ne.s32.totalorder %s243, %s244
    %p256 = scmp.eq.s32.totalorder %s24, 1
    %p257 = por %p255, %p256
    %p259 = scmp.ne.s32.totalorder %s244, %s258
    %p260 = scmp.eq.s32.totalorder %s24, 0
    %p261 = por %p259, %p260
    %s263 = sadd.s32 %s262, 1
    %p266 = scmp.eq.s32.totalorder %s18, 1
    %p267 = scmp.ne.s32.totalorder %s262, %s264
    %p268 = scmp.eq.s32.totalorder %s18, 0
    %p269 = por %p267, %p268
    %p270 = scmp.ne.s32.totalorder %s262, %s264
    %p271 = scmp.eq.s32.totalorder %s23, 1
    %p272 = por %p270, %p271
    %p273 = scmp.ne.s32.totalorder %s264, %s265
    %p274 = scmp.eq.s32.totalorder %s23, 0
    %p275 = por %p273, %p274
    %p276 = scmp.ne.s32.totalorder %s264, %s265
    %p277 = scmp.eq.s32.totalorder %s24, 1
    %p278 = por %p276, %p277
    %p280 = scmp.ne.s32.totalorder %s265, %s279
    %p281 = scmp.eq.s32.totalorder %s24, 0
    %p282 = por %p280, %p281
    %s283 = ssub.s32 %s18, %s25
    %p284 = scmp.eq.s32.totalorder %s283, 0
    %s286 = sadd.s32 %s285, 1
    %s287 = scalar_select %p284, %s285, %s286
    %p290 = pneg %p284
    %p291 = scmp.eq.s32.totalorder %s18, 1
    %p292 = por %p290, %p291
    %p293 = scmp.ne.s32.totalorder %s285, %s288
    %p294 = scmp.eq.s32.totalorder %s18, 0
    %p295 = por %p293, %p294
    %p296 = scmp.ne.s32.totalorder %s285, %s288
    %p297 = scmp.eq.s32.totalorder %s23, 1
    %p298 = por %p296, %p297
    %p299 = scmp.ne.s32.totalorder %s288, %s289
    %p300 = scmp.eq.s32.totalorder %s23, 0
    %p301 = por %p299, %p300
    %p302 = scmp.ne.s32.totalorder %s288, %s289
    %p303 = scmp.eq.s32.totalorder %s24, 1
    %p304 = por %p302, %p303
    %p306 = scmp.ne.s32.totalorder %s289, %s305
    %p307 = scmp.eq.s32.totalorder %s24, 0
    %p308 = por %p306, %p307
    %p309 = scmp.le.s32.totalorder 1, %s18
    %p310 = scmp.lt.s32.totalorder %s18, 3
    %p311 = pnand %p309, %p310
    %p312 = pneg %p311
    // Predicated region
    $region9: #{decoder_stage.5} parent=5 // pred_check
      _
    $region10: #{decoder_stage.5} parent=5 // pred_check_branch
      %314 = sbr.rel (%p311) target = $region12
    $region11: #{decoder_stage.5} parent=5 // pred_region
      %s315 = ssub.s32 %s18, 1
      // Predicated region
      $region13: #{decoder_stage.5} parent=11 // pred_check
        %p316 = pneg %p65
      $region14: #{decoder_stage.5} parent=11 // pred_check_branch
        %318 = sbr.rel (%p316) target = $region16
      $region15: #{decoder_stage.5} parent=11 // pred_region
        _
      $region16: #{decoder_stage.5} parent=11 // pred_fallthru
        _
      // Predicated region
      $region17: #{decoder_stage.5} parent=11 // pred_check
        %p319 = pneg %p86
      $region18: #{decoder_stage.5} parent=11 // pred_check_branch
        %321 = sbr.rel (%p319) target = $region20
      $region19: #{decoder_stage.5} parent=11 // pred_region
        _
      $region20: #{decoder_stage.5} parent=11 // pred_fallthru
        _
      // Predicated region
      $region21: #{decoder_stage.5} parent=11 // pred_check
        %p322 = pneg %p107
      $region22: #{decoder_stage.5} parent=11 // pred_check_branch
        %324 = sbr.rel (%p322) target = $region24
      $region23: #{decoder_stage.5} parent=11 // pred_region
        _
      $region24: #{decoder_stage.5} parent=11 // pred_fallthru
        _
      // Predicated region
      $region25: #{decoder_stage.5} parent=11 // pred_check
        %p325 = pneg %p128
      $region26: #{decoder_stage.5} parent=11 // pred_check_branch
        %327 = sbr.rel (%p325) target = $region28
      $region27: #{decoder_stage.5} parent=11 // pred_region
        _
      $region28: #{decoder_stage.5} parent=11 // pred_fallthru
        _
      // Predicated region
      $region29: #{decoder_stage.5} parent=11 // pred_check
        %p328 = pneg %p149
      $region30: #{decoder_stage.5} parent=11 // pred_check_branch
        %330 = sbr.rel (%p328) target = $region32
      $region31: #{decoder_stage.5} parent=11 // pred_region
        _
      $region32: #{decoder_stage.5} parent=11 // pred_fallthru
        _
      // Predicated region
      $region33: #{decoder_stage.5} parent=11 // pred_check
        %p331 = pneg %p170
      $region34: #{decoder_stage.5} parent=11 // pred_check_branch
        %333 = sbr.rel (%p331) target = $region36
      $region35: #{decoder_stage.5} parent=11 // pred_region
        _
      $region36: #{decoder_stage.5} parent=11 // pred_fallthru
        _
      // Predicated region
      $region37: #{decoder_stage.5} parent=11 // pred_check
        %p334 = pneg %p191
      $region38: #{decoder_stage.5} parent=11 // pred_check_branch
        %336 = sbr.rel (%p334) target = $region40
      $region39: #{decoder_stage.5} parent=11 // pred_region
        _
      $region40: #{decoder_stage.5} parent=11 // pred_fallthru
        _
      // Predicated region
      $region41: #{decoder_stage.5} parent=11 // pred_check
        %p337 = pneg %p212
      $region42: #{decoder_stage.5} parent=11 // pred_check_branch
        %339 = sbr.rel (%p337) target = $region44
      $region43: #{decoder_stage.5} parent=11 // pred_region
        _
      $region44: #{decoder_stage.5} parent=11 // pred_fallthru
        _
      // Predicated region
      $region45: #{decoder_stage.5} parent=11 // pred_check
        %p340 = pneg %p233
      $region46: #{decoder_stage.5} parent=11 // pred_check_branch
        %342 = sbr.rel (%p340) target = $region48
      $region47: #{decoder_stage.5} parent=11 // pred_region
        _
      $region48: #{decoder_stage.5} parent=11 // pred_fallthru
        _
      // Predicated region
      $region49: #{decoder_stage.5} parent=11 // pred_check
        %p343 = pneg %p254
      $region50: #{decoder_stage.5} parent=11 // pred_check_branch
        %345 = sbr.rel (%p343) target = $region52
      $region51: #{decoder_stage.5} parent=11 // pred_region
        _
      $region52: #{decoder_stage.5} parent=11 // pred_fallthru
        _
      // Predicated region
      $region53: #{decoder_stage.5} parent=11 // pred_check
        %p346 = pneg %p275
      $region54: #{decoder_stage.5} parent=11 // pred_check_branch
        %348 = sbr.rel (%p346) target = $region56
      $region55: #{decoder_stage.5} parent=11 // pred_region
        _
      $region56: #{decoder_stage.5} parent=11 // pred_fallthru
        _
    $region12: #{decoder_stage.5} parent=5 // pred_fallthru
      _
    %p349 = scmp.lt.s32.totalorder %s18, 2
    // Predicated region
    $region57: #{decoder_stage.5} parent=5 // pred_check
      %p350 = pneg %p349
    $region58: #{decoder_stage.5} parent=5 // pred_check_branch
      %352 = sbr.rel (%p350) target = $region60
    $region59: #{decoder_stage.5} parent=5 // pred_region
      // Predicated region
      $region61: #{decoder_stage.5} parent=59 // pred_check
        %p353 = pneg %p38
      $region62: #{decoder_stage.5} parent=59 // pred_check_branch
        %355 = sbr.rel (%p353) target = $region64
      $region63: #{decoder_stage.5} parent=59 // pred_region
        %p356 = scmp.lt.s32.totalorder %s18, 1
        %s357 = scalar_select %p356, %s18, 1
        %s358 = smul.addr %s357, 4
        %s359 = smul.addr %s358, 4
        %s360 = scalar_lea.vmem %s0, %s359
      $region64: #{decoder_stage.5} parent=59 // pred_fallthru
        _
    $region60: #{decoder_stage.5} parent=5 // pred_fallthru
      _
    %p361 = scmp.le.s32.totalorder 1, %s18
    %p362 = scmp.lt.s32.totalorder %s18, 3
    %p363 = pnand %p361, %p362
    %p364 = pneg %p363
    // Predicated region
    $region65: #{decoder_stage.5} parent=5 // pred_check
      _
    $region66: #{decoder_stage.5} parent=5 // pred_check_branch
      %366 = sbr.rel (%p363) target = $region68
    $region67: #{decoder_stage.5} parent=5 // pred_region
      %s367 = ssub.s32 %s18, 1
      %p368 = scmp.lt.s32.totalorder %s23, 1
      %s369 = scalar_select %p368, %s23, 1
      %s370 = smul.addr %s369, 4
      %s371 = smul.addr %s370, 4
      %s372 = scalar_lea.vmem %s0, %s371
      %p373 = pneg %p44
      %p374 = pneg %p41
      %p375 = pneg %p65
      %p376 = pneg %p62
      %p377 = pneg %p86
      %p378 = pneg %p83
      %p379 = pneg %p107
      %p380 = pneg %p104
      %p381 = pneg %p128
      %p382 = pneg %p125
      %p383 = pneg %p149
      %p384 = pneg %p146
      %p385 = pneg %p170
      %p386 = pneg %p167
      %p387 = pneg %p191
      %p388 = pneg %p188
      %p389 = pneg %p212
      %p390 = pneg %p209
      %p391 = pneg %p233
      %p392 = pneg %p230
      %p393 = pneg %p254
      %p394 = pneg %p251
      %p395 = pneg %p275
      %p396 = pneg %p272
      %p397 = pneg %p301
      %p398 = pneg %p298
      %p399 = scmp.lt.s32.totalorder %s23, 1
      %s400 = scalar_select %p399, %s23, 1
      %s401 = smul.addr %s400, 4
      %s402 = smul.addr %s401, 4
      %s403 = scalar_lea.vmem %s12, %s402
      %p404 = scmp.lt.s32.totalorder %s23, 1
      %s405 = scalar_select %p404, %s23, 1
      %s406 = smul.addr %s405, 4
      %s407 = smul.addr %s406, 4
      %s408 = scalar_lea.vmem %s0, %s407
      %p409 = scmp.lt.s32.totalorder %s23, 1
      %s410 = scalar_select %p409, %s23, 1
      %s411 = smul.addr %s410, 4
      %s412 = smul.addr %s411, 4
      %s413 = scalar_lea.vmem %s12, %s412
      %v415 = vld [vmem:[%s1] sm:$0x3]
      %v416 = vld [vmem:[%s11] sm:$0xff]
      %v417 = vld [vmem:[%s11 + $0x8] sm:$0xff]
      %418 = vst [vmem:[#allocation2] sm:$0xff] 0
      %419 = vst [vmem:[#allocation2 + $0x18] sm:$0xff] 0
      %v420 = vld [vmem:[%s408] sm:$0xff]
      %v421 = vld [vmem:[%s408 + $0x8] sm:$0xff]
      %v424 = vunpack.c.l.b16 %v420
      %v425 = vunpack.c.h.b16 %v420
      %v426 = vunpack.c.l.b16 %v421
      %v427 = vunpack.c.h.b16 %v421
      %v428 = vpack.c.b16 %v426, %v424
      %v429 = vpack.c.b16 %v427, %v425
      %432 = vst [vmem:[#allocation2 + $0x8] sm:$0xff] %v428
      %433 = vst [vmem:[#allocation2 + $0x10] sm:$0xff] %v429
      %v434 = vld [vmem:[#allocation2] sm:$0xff]
      %v435 = vld [vmem:[#allocation2 + $0x8] sm:$0xff]
      %v436 = vld [vmem:[#allocation2 + $0x10] sm:$0xff]
      %v437 = vld [vmem:[%s2] sm:$0x5]
      %v440 = vunpack.c.l.s4 1983009808
      %v441 = vunpack.c.0.s8 %v440
      %v442 = vlaneseq
      %v443 = vshrl.u32 %v442, 7
      %v444 = vsub.s32 %v441, %v443
      %v445 = vrot.slane %v437, %v444
      %v446 = vcombine.high %v445, %v445
      %v448 = vpack.i.b16 %v445, %v445
      %v450 = vlaneseq
      %v451 = vshrl.u32 %v450, 7
      %v452 = vsub.s32 0, %v451
      %v453 = vrot.slane %v448, %v452
      %v455 = vpack.i.b16 %v446, %v446
      %v457 = vlaneseq
      %v458 = vshrl.u32 %v457, 7
      %v459 = vsub.s32 0, %v458
      %v460 = vrot.slane %v455, %v459
      %463 = vrot.lane.b32.xlu0 %v453, 111
      %v464 = vpop.permute.xlu0 %463
      %465 = vrot.lane.b32.xlu0 %v460, 111
      %v466 = vpop.permute.xlu0 %465
      %vm467 = vcmask 908288
      %v468 = vsel %vm467, %v464, %v466
      %v472 = vmul.bf16 %v434, %v464
      %v473 = vmul.bf16 %v435, %v468
      %v474 = vmul.bf16 %v436, %v466
      %v475 = vld [vmem:[%s3] sm:$0xf]
      %v476 = vld [vmem:[%s3 + $0x4] sm:$0xf]
      %s477 = scalar_lea.vmem %s3, 8
      %v478 = vld [vmem:[%s477] sm:$0xf]
      %v479 = vld [vmem:[%s477 + $0x4] sm:$0xf]
      %v482 = vunpack.c.l.b16 %v478
      %v483 = vunpack.c.l.b16 %v479
      %v484 = vpack.c.b16 %v483, %v482
      %488 = vrot.lane.b32.xlu0 %v434, 16
      %v489 = vpop.permute.xlu0 %488
      %490 = vrot.lane.b32.xlu0 %v435, 16
      %v491 = vpop.permute.xlu0 %490
      %492 = vrot.lane.b32.xlu0 %v436, 16
      %v493 = vpop.permute.xlu0 %492
      %vm494 = vcmask 130048
      %v495 = vsel %vm494, %v489, %v491
      %v496 = vsel %vm494, %v491, %v493
      %vm499 = vcmask 130048
      %v501 = vsel %vm499, %v484, 0
      %503 = vmatprep.subr.bf16.mxu0 %v496
      %504 = vmatpush1.bf16.msra.mxu0 %v495
      %505 = vmatprep.subr.bf16.mxu0 0
      %506 = vmatpush1.bf16.msra.mxu0 0
      %507 = vmatprep.subr.bf16.mxu0 0
      %508 = vmatpush1.bf16.msra.mxu0 0
      %509 = vmatprep.subr.bf16.mxu0 0
      %510 = vmatpush1.bf16.msra.mxu0 0
      %511 = vmatprep.subr.bf16.mxu0 0
      %512 = vmatpush1.bf16.msra.mxu0 0
      %513 = vmatprep.subr.bf16.mxu0 0
      %514 = vmatpush1.bf16.msra.mxu0 0
      %515 = vmatprep.subr.bf16.mxu0 0
      %516 = vmatpush1.bf16.msra.mxu0 0
      %517 = vmatprep.subr.bf16.mxu0 0
      %518 = vmatpush1.bf16.msra.mxu0 0
      %519 = vmatprep.subr.bf16.mxu0 0
      %520 = vmatpush1.bf16.msra.mxu0 0
      %521 = vmatprep.subr.bf16.mxu0 0
      %522 = vmatpush1.bf16.msra.mxu0 0
      %523 = vmatprep.subr.bf16.mxu0 0
      %524 = vmatpush1.bf16.msra.mxu0 0
      %525 = vmatprep.subr.bf16.mxu0 0
      %526 = vmatpush1.bf16.msra.mxu0 0
      %527 = vmatprep.subr.bf16.mxu0 0
      %528 = vmatpush1.bf16.msra.mxu0 0
      %529 = vmatprep.subr.bf16.mxu0 0
      %530 = vmatpush1.bf16.msra.mxu0 0
      %531 = vmatprep.subr.bf16.mxu0 0
      %532 = vmatpush1.bf16.msra.mxu0 0
      %533 = vmatprep.subr.bf16.mxu0 0
      %534 = vmatpush1.bf16.msra.mxu0 0
      %535 = vmatprep.mubr.bf16.mxu0 0
      %536 = vmatmul.mubr.bf16.gmra.mrb[0].mxu0 %v501
      %v537 = vpop.f32.mrb[0].mxu0
      %v538 = vadd.f32 0.0, %v537
      %v539 = vpop.f32.mrb[0].mxu0
      %v540 = vadd.f32 0.0, %v539
      %v541 = vpop.f32.mrb[0].mxu0
      %v542 = vadd.f32 0.0, %v541
      %v543 = vpop.f32.mrb[0].mxu0
      %v544 = vadd.f32 0.0, %v543
      %545 = vdwg.mxu0
      %v548 = vunpack.c.l.b16 %v475
      %v549 = vunpack.c.l.b16 %v476
      %v550 = vpack.c.b16 %v549, %v548
      %554 = vrot.lane.b32.xlu0 %v472, 17
      %v555 = vpop.permute.xlu0 %554
      %556 = vrot.lane.b32.xlu0 %v473, 17
      %v557 = vpop.permute.xlu0 %556
      %558 = vrot.lane.b32.xlu0 %v474, 17
      %v559 = vpop.permute.xlu0 %558
      %vm560 = vcmask 138240
      %v561 = vsel %vm560, %v555, %v557
      %v562 = vsel %vm560, %v557, %v559
      %v566 = vsel %vm499, %v550, 0
      %568 = vmatprep.subr.bf16.mxu0 %v562
      %569 = vmatpush1.bf16.msra.mxu0 %v561
      %570 = vmatprep.subr.bf16.mxu0 0
      %571 = vmatpush1.bf16.msra.mxu0 0
      %572 = vmatprep.subr.bf16.mxu0 0
      %573 = vmatpush1.bf16.msra.mxu0 0
      %574 = vmatprep.subr.bf16.mxu0 0
      %575 = vmatpush1.bf16.msra.mxu0 0
      %576 = vmatprep.subr.bf16.mxu0 0
      %577 = vmatpush1.bf16.msra.mxu0 0
      %578 = vmatprep.subr.bf16.mxu0 0
      %579 = vmatpush1.bf16.msra.mxu0 0
      %580 = vmatprep.subr.bf16.mxu0 0
      %581 = vmatpush1.bf16.msra.mxu0 0
      %582 = vmatprep.subr.bf16.mxu0 0
      %583 = vmatpush1.bf16.msra.mxu0 0
      %584 = vmatprep.subr.bf16.mxu0 0
      %585 = vmatpush1.bf16.msra.mxu0 0
      %586 = vmatprep.subr.bf16.mxu0 0
      %587 = vmatpush1.bf16.msra.mxu0 0
      %588 = vmatprep.subr.bf16.mxu0 0
      %589 = vmatpush1.bf16.msra.mxu0 0
      %590 = vmatprep.subr.bf16.mxu0 0
      %591 = vmatpush1.bf16.msra.mxu0 0
      %592 = vmatprep.subr.bf16.mxu0 0
      %593 = vmatpush1.bf16.msra.mxu0 0
      %594 = vmatprep.subr.bf16.mxu0 0
      %595 = vmatpush1.bf16.msra.mxu0 0
      %596 = vmatprep.subr.bf16.mxu0 0
      %597 = vmatpush1.bf16.msra.mxu0 0
      %598 = vmatprep.subr.bf16.mxu0 0
      %599 = vmatpush1.bf16.msra.mxu0 0
      %600 = vmatprep.mubr.bf16.mxu0 0
      %601 = vmatmul.mubr.bf16.gmra.mrb[0].mxu0 %v566
      %v602 = vpop.f32.mrb[0].mxu0
      %v603 = vadd.f32 %v538, %v602
      %v604 = vpop.f32.mrb[0].mxu0
      %v605 = vadd.f32 %v540, %v604
      %v606 = vpop.f32.mrb[0].mxu0
      %v607 = vadd.f32 %v542, %v606
      %v608 = vpop.f32.mrb[0].mxu0
      %v609 = vadd.f32 %v544, %v608
      %610 = vdwg.mxu0
      %v611 = vld [vmem:[%s2] sm:$0xa]
      %v614 = vunpack.c.l.s4 1983009808
      %v615 = vunpack.c.0.s8 %v614
      %v616 = vlaneseq
      %v617 = vshrl.u32 %v616, 7
      %v618 = vsub.s32 %v615, %v617
      %v619 = vrot.slane %v611, %v618
      %v620 = vcombine.high %v619, %v619
      %v622 = vpack.i.b16 %v619, %v619
      %v624 = vlaneseq
      %v625 = vshrl.u32 %v624, 7
      %v626 = vsub.s32 1, %v625
      %v627 = vrot.slane %v622, %v626
      %v629 = vpack.i.b16 %v620, %v620
      %v631 = vlaneseq
      %v632 = vshrl.u32 %v631, 7
      %v633 = vsub.s32 1, %v632
      %v634 = vrot.slane %v629, %v633
      %637 = vrot.lane.b32.xlu0 %v627, 113
      %v638 = vpop.permute.xlu0 %637
      %639 = vrot.lane.b32.xlu0 %v634, 113
      %v640 = vpop.permute.xlu0 %639
      %vm641 = vcmask 924672
      %v642 = vsel %vm641, %v638, %v640
      %v646 = vmul.bf16 %v434, %v638
      %v647 = vmul.bf16 %v435, %v642
      %v648 = vmul.bf16 %v436, %v640
      %s649 = scalar_lea.vmem %s3, 16
      %v650 = vld [vmem:[%s649] sm:$0xf]
      %v651 = vld [vmem:[%s649 + $0x4] sm:$0xf]
      %v654 = vunpack.c.l.b16 %v650
      %v655 = vunpack.c.l.b16 %v651
      %v656 = vpack.c.b16 %v655, %v654
      %660 = vrot.lane.b32.xlu0 %v646, 15
      %v661 = vpop.permute.xlu0 %660
      %662 = vrot.lane.b32.xlu0 %v647, 15
      %v663 = vpop.permute.xlu0 %662
      %664 = vrot.lane.b32.xlu0 %v648, 15
      %v665 = vpop.permute.xlu0 %664
      %vm666 = vcmask 121856
      %v667 = vsel %vm666, %v661, %v663
      %v668 = vsel %vm666, %v663, %v665
      %v672 = vsel %vm499, %v656, 0
      %674 = vmatprep.subr.bf16.mxu0 %v668
      %675 = vmatpush1.bf16.msra.mxu0 %v667
      %676 = vmatprep.subr.bf16.mxu0 0
      %677 = vmatpush1.bf16.msra.mxu0 0
      %678 = vmatprep.subr.bf16.mxu0 0
      %679 = vmatpush1.bf16.msra.mxu0 0
      %680 = vmatprep.subr.bf16.mxu0 0
      %681 = vmatpush1.bf16.msra.mxu0 0
      %682 = vmatprep.subr.bf16.mxu0 0
      %683 = vmatpush1.bf16.msra.mxu0 0
      %684 = vmatprep.subr.bf16.mxu0 0
      %685 = vmatpush1.bf16.msra.mxu0 0
      %686 = vmatprep.subr.bf16.mxu0 0
      %687 = vmatpush1.bf16.msra.mxu0 0
      %688 = vmatprep.subr.bf16.mxu0 0
      %689 = vmatpush1.bf16.msra.mxu0 0
      %690 = vmatprep.subr.bf16.mxu0 0
      %691 = vmatpush1.bf16.msra.mxu0 0
      %692 = vmatprep.subr.bf16.mxu0 0
      %693 = vmatpush1.bf16.msra.mxu0 0
      %694 = vmatprep.subr.bf16.mxu0 0
      %695 = vmatpush1.bf16.msra.mxu0 0
      %696 = vmatprep.subr.bf16.mxu0 0
      %697 = vmatpush1.bf16.msra.mxu0 0
      %698 = vmatprep.subr.bf16.mxu0 0
      %699 = vmatpush1.bf16.msra.mxu0 0
      %700 = vmatprep.subr.bf16.mxu0 0
      %701 = vmatpush1.bf16.msra.mxu0 0
      %702 = vmatprep.subr.bf16.mxu0 0
      %703 = vmatpush1.bf16.msra.mxu0 0
      %704 = vmatprep.subr.bf16.mxu0 0
      %705 = vmatpush1.bf16.msra.mxu0 0
      %706 = vmatprep.mubr.bf16.mxu0 0
      %707 = vmatmul.mubr.bf16.gmra.mrb[0].mxu0 %v672
      %v708 = vpop.f32.mrb[0].mxu0
      %v709 = vadd.f32 0.0, %v708
      %v710 = vpop.f32.mrb[0].mxu0
      %v711 = vadd.f32 0.0, %v710
      %v712 = vpop.f32.mrb[0].mxu0
      %v713 = vadd.f32 0.0, %v712
      %v714 = vpop.f32.mrb[0].mxu0
      %v715 = vadd.f32 0.0, %v714
      %716 = vdwg.mxu0
      %v717 = vadd.f32 %v603, %v709
      %v718 = vadd.f32 %v605, %v711
      %v719 = vadd.f32 %v607, %v713
      %v720 = vadd.f32 %v609, %v715
      %v721 = vld [vmem:[#allocation2] sm:$0xff]
      %v722 = vld [vmem:[#allocation2 + $0x8] sm:$0xff]
      %v723 = vld [vmem:[#allocation2 + $0x10] sm:$0xff]
      %724 = vrot.lane.b32.xlu0 %v453, 127
      %v725 = vpop.permute.xlu0 %724
      %726 = vrot.lane.b32.xlu0 %v460, 127
      %v727 = vpop.permute.xlu0 %726
      %vm728 = vcmask 1039360
      %v729 = vsel %vm728, %v725, %v727
      %v733 = vmul.bf16 %v721, %v725
      %v734 = vmul.bf16 %v722, %v729
      %v735 = vmul.bf16 %v723, %v727
      %s736 = scalar_lea.vmem %s3, 24
      %v737 = vld [vmem:[%s736] sm:$0xf]
      %v738 = vld [vmem:[%s736 + $0x4] sm:$0xf]
      %v741 = vunpack.c.l.b16 %v737
      %v742 = vunpack.c.l.b16 %v738
      %v743 = vpack.c.b16 %v742, %v741
      %747 = vrot.lane.b32.xlu0 %v733, 1
      %v748 = vpop.permute.xlu0 %747
      %749 = vrot.lane.b32.xlu0 %v734, 1
      %v750 = vpop.permute.xlu0 %749
      %751 = vrot.lane.b32.xlu0 %v735, 1
      %v752 = vpop.permute.xlu0 %751
      %vm753 = vcmask 7168
      %v754 = vsel %vm753, %v748, %v750
      %v755 = vsel %vm753, %v750, %v752
      %v759 = vsel %vm499, %v743, 0
      %761 = vmatprep.subr.bf16.mxu0 %v755
      %762 = vmatpush1.bf16.msra.mxu0 %v754
      %763 = vmatprep.subr.bf16.mxu0 0
      %764 = vmatpush1.bf16.msra.mxu0 0
      %765 = vmatprep.subr.bf16.mxu0 0
      %766 = vmatpush1.bf16.msra.mxu0 0
      %767 = vmatprep.subr.bf16.mxu0 0
      %768 = vmatpush1.bf16.msra.mxu0 0
      %769 = vmatprep.subr.bf16.mxu0 0
      %770 = vmatpush1.bf16.msra.mxu0 0
      %771 = vmatprep.subr.bf16.mxu0 0
      %772 = vmatpush1.bf16.msra.mxu0 0
      %773 = vmatprep.subr.bf16.mxu0 0
      %774 = vmatpush1.bf16.msra.mxu0 0
      %775 = vmatprep.subr.bf16.mxu0 0
      %776 = vmatpush1.bf16.msra.mxu0 0
      %777 = vmatprep.subr.bf16.mxu0 0
      %778 = vmatpush1.bf16.msra.mxu0 0
      %779 = vmatprep.subr.bf16.mxu0 0
      %780 = vmatpush1.bf16.msra.mxu0 0
      %781 = vmatprep.subr.bf16.mxu0 0
      %782 = vmatpush1.bf16.msra.mxu0 0
      %783 = vmatprep.subr.bf16.mxu0 0
      %784 = vmatpush1.bf16.msra.mxu0 0
      %785 = vmatprep.subr.bf16.mxu0 0
      %786 = vmatpush1.bf16.msra.mxu0 0
      %787 = vmatprep.subr.bf16.mxu0 0
      %788 = vmatpush1.bf16.msra.mxu0 0
      %789 = vmatprep.subr.bf16.mxu0 0
      %790 = vmatpush1.bf16.msra.mxu0 0
      %791 = vmatprep.subr.bf16.mxu0 0
      %792 = vmatpush1.bf16.msra.mxu0 0
      %793 = vmatprep.mubr.bf16.mxu0 0
      %794 = vmatmul.mubr.bf16.gmra.mrb[0].mxu0 %v759
      %v795 = vpop.f32.mrb[0].mxu0
      %v796 = vadd.f32 0.0, %v795
      %v797 = vpop.f32.mrb[0].mxu0
      %v798 = vadd.f32 0.0, %v797
      %v799 = vpop.f32.mrb[0].mxu0
      %v800 = vadd.f32 0.0, %v799
      %v801 = vpop.f32.mrb[0].mxu0
      %v802 = vadd.f32 0.0, %v801
      %803 = vdwg.mxu0
      %v804 = vadd.f32 %v717, %v796
      %v805 = vadd.f32 %v718, %v798
      %v806 = vadd.f32 %v719, %v800
      %v807 = vadd.f32 %v720, %v802
      %s808 = scalar_lea.vmem %s3, 32
      %v809 = vld [vmem:[%s808] sm:$0xf]
      %v810 = vld [vmem:[%s808 + $0x4] sm:$0xf]
      %v813 = vunpack.c.l.b16 %v809
      %v814 = vunpack.c.l.b16 %v810
      %v815 = vpack.c.b16 %v814, %v813
      %v817 = vsel %vm499, %v815, 0
      %819 = vmatprep.subr.bf16.mxu0 %v723
      %820 = vmatpush1.bf16.msra.mxu0 %v722
      %821 = vmatprep.subr.bf16.mxu0 0
      %822 = vmatpush1.bf16.msra.mxu0 0
      %823 = vmatprep.subr.bf16.mxu0 0
      %824 = vmatpush1.bf16.msra.mxu0 0
      %825 = vmatprep.subr.bf16.mxu0 0
      %826 = vmatpush1.bf16.msra.mxu0 0
      %827 = vmatprep.subr.bf16.mxu0 0
      %828 = vmatpush1.bf16.msra.mxu0 0
      %829 = vmatprep.subr.bf16.mxu0 0
      %830 = vmatpush1.bf16.msra.mxu0 0
      %831 = vmatprep.subr.bf16.mxu0 0
      %832 = vmatpush1.bf16.msra.mxu0 0
      %833 = vmatprep.subr.bf16.mxu0 0
      %834 = vmatpush1.bf16.msra.mxu0 0
      %835 = vmatprep.subr.bf16.mxu0 0
      %836 = vmatpush1.bf16.msra.mxu0 0
      %837 = vmatprep.subr.bf16.mxu0 0
      %838 = vmatpush1.bf16.msra.mxu0 0
      %839 = vmatprep.subr.bf16.mxu0 0
      %840 = vmatpush1.bf16.msra.mxu0 0
      %841 = vmatprep.subr.bf16.mxu0 0
      %842 = vmatpush1.bf16.msra.mxu0 0
      %843 = vmatprep.subr.bf16.mxu0 0
      %844 = vmatpush1.bf16.msra.mxu0 0
      %845 = vmatprep.subr.bf16.mxu0 0
      %846 = vmatpush1.bf16.msra.mxu0 0
      %847 = vmatprep.subr.bf16.mxu0 0
      %848 = vmatpush1.bf16.msra.mxu0 0
      %849 = vmatprep.subr.bf16.mxu0 0
      %850 = vmatpush1.bf16.msra.mxu0 0
      %851 = vmatprep.mubr.bf16.mxu0 0
      %852 = vmatmul.mubr.bf16.gmra.mrb[0].mxu0 %v817
      %v853 = vpop.f32.mrb[0].mxu0
      %v854 = vadd.f32 0.0, %v853
      %v855 = vpop.f32.mrb[0].mxu0
      %v856 = vadd.f32 0.0, %v855
      %v857 = vpop.f32.mrb[0].mxu0
      %v858 = vadd.f32 0.0, %v857
      %v859 = vpop.f32.mrb[0].mxu0
      %v860 = vadd.f32 0.0, %v859
      %861 = vdwg.mxu0
      %v862 = vadd.f32 %v804, %v854
      %v863 = vadd.f32 %v805, %v856
      %v864 = vadd.f32 %v806, %v858
      %v865 = vadd.f32 %v807, %v860
      %v866 = vld [vmem:[#allocation2 + $0x8] sm:$0xff]
      %v867 = vld [vmem:[#allocation2 + $0x10] sm:$0xff]
      %v868 = vld [vmem:[#allocation2 + $0x18] sm:$0xff]
      %869 = vrot.lane.b32.xlu0 %v627, 1
      %v870 = vpop.permute.xlu0 %869
      %871 = vrot.lane.b32.xlu0 %v634, 1
      %v872 = vpop.permute.xlu0 %871
      %v873 = vsel %vm753, %v870, %v872
      %v877 = vmul.bf16 %v866, %v870
      %v878 = vmul.bf16 %v867, %v873
      %v879 = vmul.bf16 %v868, %v872
      %s880 = scalar_lea.vmem %s3, 40
      %v881 = vld [vmem:[%s880] sm:$0xf]
      %v882 = vld [vmem:[%s880 + $0x4] sm:$0xf]
      %v885 = vunpack.c.l.b16 %v881
      %v886 = vunpack.c.l.b16 %v882
      %v887 = vpack.c.b16 %v886, %v885
      %891 = vrot.lane.b32.xlu0 %v877, 127
      %v892 = vpop.permute.xlu0 %891
      %893 = vrot.lane.b32.xlu0 %v878, 127
      %v894 = vpop.permute.xlu0 %893
      %895 = vrot.lane.b32.xlu0 %v879, 127
      %v896 = vpop.permute.xlu0 %895
      %v897 = vsel %vm728, %v892, %v894
      %v898 = vsel %vm728, %v894, %v896
      %v902 = vsel %vm499, %v887, 0
      %904 = vmatprep.subr.bf16.mxu0 %v898
      %905 = vmatpush1.bf16.msra.mxu0 %v897
      %906 = vmatprep.subr.bf16.mxu0 0
      %907 = vmatpush1.bf16.msra.mxu0 0
      %908 = vmatprep.subr.bf16.mxu0 0
      %909 = vmatpush1.bf16.msra.mxu0 0
      %910 = vmatprep.subr.bf16.mxu0 0
      %911 = vmatpush1.bf16.msra.mxu0 0
      %912 = vmatprep.subr.bf16.mxu0 0
      %913 = vmatpush1.bf16.msra.mxu0 0
      %914 = vmatprep.subr.bf16.mxu0 0
      %915 = vmatpush1.bf16.msra.mxu0 0
      %916 = vmatprep.subr.bf16.mxu0 0
      %917 = vmatpush1.bf16.msra.mxu0 0
      %918 = vmatprep.subr.bf16.mxu0 0
      %919 = vmatpush1.bf16.msra.mxu0 0
      %920 = vmatprep.subr.bf16.mxu0 0
      %921 = vmatpush1.bf16.msra.mxu0 0
      %922 = vmatprep.subr.bf16.mxu0 0
      %923 = vmatpush1.bf16.msra.mxu0 0
      %924 = vmatprep.subr.bf16.mxu0 0
      %925 = vmatpush1.bf16.msra.mxu0 0
      %926 = vmatprep.subr.bf16.mxu0 0
      %927 = vmatpush1.bf16.msra.mxu0 0
      %928 = vmatprep.subr.bf16.mxu0 0
      %929 = vmatpush1.bf16.msra.mxu0 0
      %930 = vmatprep.subr.bf16.mxu0 0
      %931 = vmatpush1.bf16.msra.mxu0 0
      %932 = vmatprep.subr.bf16.mxu0 0
      %933 = vmatpush1.bf16.msra.mxu0 0
      %934 = vmatprep.subr.bf16.mxu0 0
      %935 = vmatpush1.bf16.msra.mxu0 0
      %936 = vmatprep.mubr.bf16.mxu0 0
      %937 = vmatmul.mubr.bf16.gmra.mrb[0].mxu0 %v902
      %v938 = vpop.f32.mrb[0].mxu0
      %v939 = vadd.f32 0.0, %v938
      %v940 = vpop.f32.mrb[0].mxu0
      %v941 = vadd.f32 0.0, %v940
      %v942 = vpop.f32.mrb[0].mxu0
      %v943 = vadd.f32 0.0, %v942
      %v944 = vpop.f32.mrb[0].mxu0
      %v945 = vadd.f32 0.0, %v944
      %946 = vdwg.mxu0
      %v947 = vadd.f32 %v862, %v939
      %v948 = vadd.f32 %v863, %v941
      %v949 = vadd.f32 %v864, %v943
      %v950 = vadd.f32 %v865, %v945
      %951 = vrot.lane.b32.xlu0 %v453, 15
      %v952 = vpop.permute.xlu0 %951
      %953 = vrot.lane.b32.xlu0 %v460, 15
      %v954 = vpop.permute.xlu0 %953
      %v955 = vsel %vm666, %v952, %v954
      %v959 = vmul.bf16 %v866, %v952
      %v960 = vmul.bf16 %v867, %v955
      %v961 = vmul.bf16 %v868, %v954
      %s962 = scalar_lea.vmem %s3, 48
      %v963 = vld [vmem:[%s962] sm:$0xf]
      %v964 = vld [vmem:[%s962 + $0x4] sm:$0xf]
      %v967 = vunpack.c.l.b16 %v963
      %v968 = vunpack.c.l.b16 %v964
      %v969 = vpack.c.b16 %v968, %v967
      %973 = vrot.lane.b32.xlu0 %v959, 113
      %v974 = vpop.permute.xlu0 %973
      %975 = vrot.lane.b32.xlu0 %v960, 113
      %v976 = vpop.permute.xlu0 %975
      %977 = vrot.lane.b32.xlu0 %v961, 113
      %v978 = vpop.permute.xlu0 %977
      %v979 = vsel %vm641, %v974, %v976
      %v980 = vsel %vm641, %v976, %v978
      %v984 = vsel %vm499, %v969, 0
      %986 = vmatprep.subr.bf16.mxu0 %v980
      %987 = vmatpush1.bf16.msra.mxu0 %v979
      %988 = vmatprep.subr.bf16.mxu0 0
      %989 = vmatpush1.bf16.msra.mxu0 0
      %990 = vmatprep.subr.bf16.mxu0 0
      %991 = vmatpush1.bf16.msra.mxu0 0
      %992 = vmatprep.subr.bf16.mxu0 0
      %993 = vmatpush1.bf16.msra.mxu0 0
      %994 = vmatprep.subr.bf16.mxu0 0
      %995 = vmatpush1.bf16.msra.mxu0 0
      %996 = vmatprep.subr.bf16.mxu0 0
      %997 = vmatpush1.bf16.msra.mxu0 0
      %998 = vmatprep.subr.bf16.mxu0 0
      %999 = vmatpush1.bf16.msra.mxu0 0
      %1000 = vmatprep.subr.bf16.mxu0 0
      %1001 = vmatpush1.bf16.msra.mxu0 0
      %1002 = vmatprep.subr.bf16.mxu0 0
      %1003 = vmatpush1.bf16.msra.mxu0 0
      %1004 = vmatprep.subr.bf16.mxu0 0
      %1005 = vmatpush1.bf16.msra.mxu0 0
      %1006 = vmatprep.subr.bf16.mxu0 0
      %1007 = vmatpush1.bf16.msra.mxu0 0
      %1008 = vmatprep.subr.bf16.mxu0 0
      %1009 = vmatpush1.bf16.msra.mxu0 0
      %1010 = vmatprep.subr.bf16.mxu0 0
      %1011 = vmatpush1.bf16.msra.mxu0 0
      %1012 = vmatprep.subr.bf16.mxu0 0
      %1013 = vmatpush1.bf16.msra.mxu0 0
      %1014 = vmatprep.subr.bf16.mxu0 0
      %1015 = vmatpush1.bf16.msra.mxu0 0
      %1016 = vmatprep.subr.bf16.mxu0 0
      %1017 = vmatpush1.bf16.msra.mxu0 0
      %1018 = vmatprep.mubr.bf16.mxu0 0
      %1019 = vmatmul.mubr.bf16.gmra.mrb[0].mxu0 %v984
      %v1020 = vpop.f32.mrb[0].mxu0
      %v1021 = vadd.f32 0.0, %v1020
      %v1022 = vpop.f32.mrb[0].mxu0
      %v1023 = vadd.f32 0.0, %v1022
      %v1024 = vpop.f32.mrb[0].mxu0
      %v1025 = vadd.f32 0.0, %v1024
      %v1026 = vpop.f32.mrb[0].mxu0
      %v1027 = vadd.f32 0.0, %v1026
      %1028 = vdwg.mxu0
      %v1029 = vadd.f32 %v947, %v1021
      %v1030 = vadd.f32 %v948, %v1023
      %v1031 = vadd.f32 %v949, %v1025
      %v1032 = vadd.f32 %v950, %v1027
      %s1033 = scalar_lea.vmem %s3, 56
      %v1034 = vld [vmem:[%s1033] sm:$0xf]
      %v1035 = vld [vmem:[%s1033 + $0x4] sm:$0xf]
      %v1038 = vunpack.c.l.b16 %v1034
      %v1039 = vunpack.c.l.b16 %v1035
      %v1040 = vpack.c.b16 %v1039, %v1038
      %1044 = vrot.lane.b32.xlu0 %v866, 112
      %v1045 = vpop.permute.xlu0 %1044
      %1046 = vrot.lane.b32.xlu0 %v867, 112
      %v1047 = vpop.permute.xlu0 %1046
      %1048 = vrot.lane.b32.xlu0 %v868, 112
      %v1049 = vpop.permute.xlu0 %1048
      %vm1050 = vcmask 916480
      %v1051 = vsel %vm1050, %v1045, %v1047
      %v1052 = vsel %vm1050, %v1047, %v1049
      %v1056 = vsel %vm499, %v1040, 0
      %1058 = vmatprep.subr.bf16.mxu0 %v1052
      %1059 = vmatpush1.bf16.msra.mxu0 %v1051
      %1060 = vmatprep.subr.bf16.mxu0 0
      %1061 = vmatpush1.bf16.msra.mxu0 0
      %1062 = vmatprep.subr.bf16.mxu0 0
      %1063 = vmatpush1.bf16.msra.mxu0 0
      %1064 = vmatprep.subr.bf16.mxu0 0
      %1065 = vmatpush1.bf16.msra.mxu0 0
      %1066 = vmatprep.subr.bf16.mxu0 0
      %1067 = vmatpush1.bf16.msra.mxu0 0
      %1068 = vmatprep.subr.bf16.mxu0 0
      %1069 = vmatpush1.bf16.msra.mxu0 0
      %1070 = vmatprep.subr.bf16.mxu0 0
      %1071 = vmatpush1.bf16.msra.mxu0 0
      %1072 = vmatprep.subr.bf16.mxu0 0
      %1073 = vmatpush1.bf16.msra.mxu0 0
      %1074 = vmatprep.subr.bf16.mxu0 0
      %1075 = vmatpush1.bf16.msra.mxu0 0
      %1076 = vmatprep.subr.bf16.mxu0 0
      %1077 = vmatpush1.bf16.msra.mxu0 0
      %1078 = vmatprep.subr.bf16.mxu0 0
      %1079 = vmatpush1.bf16.msra.mxu0 0
      %1080 = vmatprep.subr.bf16.mxu0 0
      %1081 = vmatpush1.bf16.msra.mxu0 0
      %1082 = vmatprep.subr.bf16.mxu0 0
      %1083 = vmatpush1.bf16.msra.mxu0 0
      %1084 = vmatprep.subr.bf16.mxu0 0
      %1085 = vmatpush1.bf16.msra.mxu0 0
      %1086 = vmatprep.subr.bf16.mxu0 0
      %1087 = vmatpush1.bf16.msra.mxu0 0
      %1088 = vmatprep.subr.bf16.mxu0 0
      %1089 = vmatpush1.bf16.msra.mxu0 0
      %1090 = vmatprep.mubr.bf16.mxu0 0
      %1091 = vmatmul.mubr.bf16.gmra.mrb[0].mxu0 %v1056
      %v1092 = vpop.f32.mrb[0].mxu0
      %v1093 = vadd.f32 0.0, %v1092
      %v1094 = vpop.f32.mrb[0].mxu0
      %v1095 = vadd.f32 0.0, %v1094
      %v1096 = vpop.f32.mrb[0].mxu0
      %v1097 = vadd.f32 0.0, %v1096
      %v1098 = vpop.f32.mrb[0].mxu0
      %v1099 = vadd.f32 0.0, %v1098
      %1100 = vdwg.mxu0
      %v1101 = vadd.f32 %v1029, %v1093
      %v1102 = vadd.f32 %v1030, %v1095
      %v1103 = vadd.f32 %v1031, %v1097
      %v1104 = vadd.f32 %v1032, %v1099
      %1105 = vrot.lane.b32.xlu0 %v627, 17
      %v1106 = vpop.permute.xlu0 %1105
      %1107 = vrot.lane.b32.xlu0 %v634, 17
      %v1108 = vpop.permute.xlu0 %1107
      %v1109 = vsel %vm560, %v1106, %v1108
      %v1113 = vmul.bf16 %v866, %v1106
      %v1114 = vmul.bf16 %v867, %v1109
      %v1115 = vmul.bf16 %v868, %v1108
      %s1116 = scalar_lea.vmem %s3, 64
      %v1117 = vld [vmem:[%s1116] sm:$0xf]
      %v1118 = vld [vmem:[%s1116 + $0x4] sm:$0xf]
      %v1121 = vunpack.c.l.b16 %v1117
      %v1122 = vunpack.c.l.b16 %v1118
      %v1123 = vpack.c.b16 %v1122, %v1121
      %1127 = vrot.lane.b32.xlu0 %v1113, 111
      %v1128 = vpop.permute.xlu0 %1127
      %1129 = vrot.lane.b32.xlu0 %v1114, 111
      %v1130 = vpop.permute.xlu0 %1129
      %1131 = vrot.lane.b32.xlu0 %v1115, 111
      %v1132 = vpop.permute.xlu0 %1131
      %v1133 = vsel %vm467, %v1128, %v1130
      %v1134 = vsel %vm467, %v1130, %v1132
      %v1138 = vsel %vm499, %v1123, 0
      %1140 = vmatprep.subr.bf16.mxu0 %v1134
      %1141 = vmatpush1.bf16.msra.mxu0 %v1133
      %1142 = vmatprep.subr.bf16.mxu0 0
      %1143 = vmatpush1.bf16.msra.mxu0 0
      %1144 = vmatprep.subr.bf16.mxu0 0
      %1145 = vmatpush1.bf16.msra.mxu0 0
      %1146 = vmatprep.subr.bf16.mxu0 0
      %1147 = vmatpush1.bf16.msra.mxu0 0
      %1148 = vmatprep.subr.bf16.mxu0 0
      %1149 = vmatpush1.bf16.msra.mxu0 0
      %1150 = vmatprep.subr.bf16.mxu0 0
      %1151 = vmatpush1.bf16.msra.mxu0 0
      %1152 = vmatprep.subr.bf16.mxu0 0
      %1153 = vmatpush1.bf16.msra.mxu0 0
      %1154 = vmatprep.subr.bf16.mxu0 0
      %1155 = vmatpush1.bf16.msra.mxu0 0
      %1156 = vmatprep.subr.bf16.mxu0 0
      %1157 = vmatpush1.bf16.msra.mxu0 0
      %1158 = vmatprep.subr.bf16.mxu0 0
      %1159 = vmatpush1.bf16.msra.mxu0 0
      %1160 = vmatprep.subr.bf16.mxu0 0
      %1161 = vmatpush1.bf16.msra.mxu0 0
      %1162 = vmatprep.subr.bf16.mxu0 0
      %1163 = vmatpush1.bf16.msra.mxu0 0
      %1164 = vmatprep.subr.bf16.mxu0 0
      %1165 = vmatpush1.bf16.msra.mxu0 0
      %1166 = vmatprep.subr.bf16.mxu0 0
      %1167 = vmatpush1.bf16.msra.mxu0 0
      %1168 = vmatprep.subr.bf16.mxu0 0
      %1169 = vmatpush1.bf16.msra.mxu0 0
      %1170 = vmatprep.subr.bf16.mxu0 0
      %1171 = vmatpush1.bf16.msra.mxu0 0
      %1172 = vmatprep.mubr.bf16.mxu0 0
      %1173 = vmatmul.mubr.bf16.gmra.mrb[0].mxu0 %v1138
      %v1174 = vpop.f32.mrb[0].mxu0
      %v1175 = vadd.f32 0.0, %v1174
      %v1176 = vpop.f32.mrb[0].mxu0
      %v1177 = vadd.f32 0.0, %v1176
      %v1178 = vpop.f32.mrb[0].mxu0
      %v1179 = vadd.f32 0.0, %v1178
      %v1180 = vpop.f32.mrb[0].mxu0
      %v1181 = vadd.f32 0.0, %v1180
      %1182 = vdwg.mxu0
      %v1183 = vadd.f32 %v1101, %v1175
      %v1184 = vadd.f32 %v1102, %v1177
      %v1185 = vadd.f32 %v1103, %v1179
      %v1186 = vadd.f32 %v1104, %v1181
      %v1187 = vld [vmem:[%s4] sm:$0xff]
      %v1188 = vld [vmem:[%s4 + $0x8] sm:$0xff]
      %1190 = vset.pattern.permute.xlu0 0
      %1191 = vperm.xlu0 %1190, %v1187
      %v1192 = vpop.permute.xlu0 %1191
      %1195 = vset.pattern.permute.xlu0 0
      %1196 = vperm.xlu0 %1195, %v1188
      %v1197 = vpop.permute.xlu0 %1196
      %v1199 = vadd.f32 %v1183, %v1192
      %v1200 = vadd.f32 %v1184, %v1192
      %v1201 = vadd.f32 %v1185, %v1197
      %v1202 = vadd.f32 %v1186, %v1197
      %v1203 = vld [vmem:[%s5] sm:$0xff]
      %v1204 = vld [vmem:[%s5 + $0x8] sm:$0xff]
      %v1205 = vld [vmem:[%s6] sm:$0xff]
      %v1206 = vld [vmem:[%s6 + $0x8] sm:$0xff]
      %v1208 = vlaneseq
      %v1209 = vshrl.u32 %v1208, 7
      %v1210 = vsub.s32 0, %v1209
      %v1211 = vrot.slane %v415, %v1210
      %v1212 = vlaneseq
      %v1213 = vshrl.u32 %v1212, 7
      %v1214 = vsub.s32 1, %v1213
      %v1215 = vrot.slane %v415, %v1214
      %v1218 = vmul.f32 %v1199, %v1211
      %v1219 = vmul.f32 %v1200, %v1215
      %v1220 = vmul.f32 %v1201, %v1211
      %v1221 = vmul.f32 %v1202, %v1215
      %v1222 = vadd.f32 %v1218, %v1219
      %1223 = vadd.xlane.f32.xlu0 %v1222
      %v1224 = vpop.xlane.xlu0 %1223
      %v1225 = vadd.f32 %v1220, %v1221
      %1226 = vadd.xlane.f32.xlu0 %v1225
      %v1227 = vpop.xlane.xlu0 %1226
      %v1228 = vmul.f32 %v1218, %v1218
      %v1229 = vmul.f32 %v1219, %v1219
      %v1230 = vmul.f32 %v1220, %v1220
      %v1231 = vmul.f32 %v1221, %v1221
      %v1232 = vadd.f32 %v1228, %v1229
      %1233 = vadd.xlane.f32.xlu0 %v1232
      %v1234 = vpop.xlane.xlu0 %1233
      %v1235 = vadd.f32 %v1230, %v1231
      %1236 = vadd.xlane.f32.xlu0 %v1235
      %v1237 = vpop.xlane.xlu0 %1236
      %v1239 = vsel %vm499, %v416, 0
      %v1242 = vsel %vm499, %v417, 0
      %1244 = vmatprep.subr.mxu0 0.0
      %1245 = vmatpush1.msra.mxu0 %v1224
      %1246 = vmatprep.subr.mxu0 0.0
      %1247 = vmatpush1.msra.mxu0 %v1227
      %1248 = vmatprep.subr.mxu0 0.0
      %1249 = vmatpush1.msra.mxu0 0.0
      %1250 = vmatprep.subr.mxu0 0.0
      %1251 = vmatpush1.msra.mxu0 0.0
      %1252 = vmatprep.subr.mxu0 0.0
      %1253 = vmatpush1.msra.mxu0 0.0
      %1254 = vmatprep.subr.mxu0 0.0
      %1255 = vmatpush1.msra.mxu0 0.0
      %1256 = vmatprep.subr.mxu0 0.0
      %1257 = vmatpush1.msra.mxu0 0.0
      %1258 = vmatprep.subr.mxu0 0.0
      %1259 = vmatpush1.msra.mxu0 0.0
      %1260 = vmatprep.subr.mxu0 0.0
      %1261 = vmatpush1.msra.mxu0 0.0
      %1262 = vmatprep.subr.mxu0 0.0
      %1263 = vmatpush1.msra.mxu0 0.0
      %1264 = vmatprep.subr.mxu0 0.0
      %1265 = vmatpush1.msra.mxu0 0.0
      %1266 = vmatprep.subr.mxu0 0.0
      %1267 = vmatpush1.msra.mxu0 0.0
      %1268 = vmatprep.subr.mxu0 0.0
      %1269 = vmatpush1.msra.mxu0 0.0
      %1270 = vmatprep.subr.mxu0 0.0
      %1271 = vmatpush1.msra.mxu0 0.0
      %1272 = vmatprep.subr.mxu0 0.0
      %1273 = vmatpush1.msra.mxu0 0.0
      %1274 = vmatprep.subr.mxu0 0.0
      %1275 = vmatpush1.msra.mxu0 0.0
      %1276 = vmatprep.subr.mxu0 0.0
      %1277 = vmatpush1.msra.mxu0 0.0
      %1278 = vmatprep.subr.mxu0 0.0
      %1279 = vmatpush1.msra.mxu0 0.0
      %1280 = vmatprep.subr.mxu0 0.0
      %1281 = vmatpush1.msra.mxu0 0.0
      %1282 = vmatprep.subr.mxu0 0.0
      %1283 = vmatpush1.msra.mxu0 0.0
      %1284 = vmatprep.subr.mxu0 0.0
      %1285 = vmatpush1.msra.mxu0 0.0
      %1286 = vmatprep.subr.mxu0 0.0
      %1287 = vmatpush1.msra.mxu0 0.0
      %1288 = vmatprep.subr.mxu0 0.0
      %1289 = vmatpush1.msra.mxu0 0.0
      %1290 = vmatprep.subr.mxu0 0.0
      %1291 = vmatpush1.msra.mxu0 0.0
      %1292 = vmatprep.subr.mxu0 0.0
      %1293 = vmatpush1.msra.mxu0 0.0
      %1294 = vmatprep.subr.mxu0 0.0
      %1295 = vmatpush1.msra.mxu0 0.0
      %1296 = vmatprep.subr.mxu0 0.0
      %1297 = vmatpush1.msra.mxu0 0.0
      %1298 = vmatprep.subr.mxu0 0.0
      %1299 = vmatpush1.msra.mxu0 0.0
      %1300 = vmatprep.subr.mxu0 0.0
      %1301 = vmatpush1.msra.mxu0 0.0
      %1302 = vmatprep.subr.mxu0 0.0
      %1303 = vmatpush1.msra.mxu0 0.0
      %1304 = vmatprep.subr.mxu0 0.0
      %1305 = vmatpush1.msra.mxu0 0.0
      %1306 = vmatprep.subr.mxu0 0.0
      %1307 = vmatpush1.msra.mxu0 0.0
      %1308 = vmatprep.mubr.f32.mxu0 0.0
      %1309 = vmatmul.mubr.f32.gmra.mrb[0].mxu0 %v1239
      %v1310 = vpop.f32.mrb[0].mxu0
      %v1311 = vadd.f32 0.0, %v1310
      %v1312 = vpop.f32.mrb[0].mxu0
      %1313 = vmatprep.mubr.f32.mxu0 0.0
      %1314 = vmatmul.mubr.f32.gmra.mrb[0].mxu0 %v1242
      %v1315 = vpop.f32.mrb[0].mxu0
      %v1316 = vadd.f32 0.0, %v1315
      %v1317 = vpop.f32.mrb[0].mxu0
      %1318 = vdwg.mxu0
      %v1319 = vrcp.pop 512.0
      %v1320 = vmul.f32 %v1311, %v1319
      %v1321 = vmul.f32 %v1316, %v1319
      %1322 = vmatprep.subr.mxu0 0.0
      %1323 = vmatpush1.msra.mxu0 %v1234
      %1324 = vmatprep.subr.mxu0 0.0
      %1325 = vmatpush1.msra.mxu0 %v1237
      %1326 = vmatprep.subr.mxu0 0.0
      %1327 = vmatpush1.msra.mxu0 0.0
      %1328 = vmatprep.subr.mxu0 0.0
      %1329 = vmatpush1.msra.mxu0 0.0
      %1330 = vmatprep.subr.mxu0 0.0
      %1331 = vmatpush1.msra.mxu0 0.0
      %1332 = vmatprep.subr.mxu0 0.0
      %1333 = vmatpush1.msra.mxu0 0.0
      %1334 = vmatprep.subr.mxu0 0.0
      %1335 = vmatpush1.msra.mxu0 0.0
      %1336 = vmatprep.subr.mxu0 0.0
      %1337 = vmatpush1.msra.mxu0 0.0
      %1338 = vmatprep.subr.mxu0 0.0
      %1339 = vmatpush1.msra.mxu0 0.0
      %1340 = vmatprep.subr.mxu0 0.0
      %1341 = vmatpush1.msra.mxu0 0.0
      %1342 = vmatprep.subr.mxu0 0.0
      %1343 = vmatpush1.msra.mxu0 0.0
      %1344 = vmatprep.subr.mxu0 0.0
      %1345 = vmatpush1.msra.mxu0 0.0
      %1346 = vmatprep.subr.mxu0 0.0
      %1347 = vmatpush1.msra.mxu0 0.0
      %1348 = vmatprep.subr.mxu0 0.0
      %1349 = vmatpush1.msra.mxu0 0.0
      %1350 = vmatprep.subr.mxu0 0.0
      %1351 = vmatpush1.msra.mxu0 0.0
      %1352 = vmatprep.subr.mxu0 0.0
      %1353 = vmatpush1.msra.mxu0 0.0
      %1354 = vmatprep.subr.mxu0 0.0
      %1355 = vmatpush1.msra.mxu0 0.0
      %1356 = vmatprep.subr.mxu0 0.0
      %1357 = vmatpush1.msra.mxu0 0.0
      %1358 = vmatprep.subr.mxu0 0.0
      %1359 = vmatpush1.msra.mxu0 0.0
      %1360 = vmatprep.subr.mxu0 0.0
      %1361 = vmatpush1.msra.mxu0 0.0
      %1362 = vmatprep.subr.mxu0 0.0
      %1363 = vmatpush1.msra.mxu0 0.0
      %1364 = vmatprep.subr.mxu0 0.0
      %1365 = vmatpush1.msra.mxu0 0.0
      %1366 = vmatprep.subr.mxu0 0.0
      %1367 = vmatpush1.msra.mxu0 0.0
      %1368 = vmatprep.subr.mxu0 0.0
      %1369 = vmatpush1.msra.mxu0 0.0
      %1370 = vmatprep.subr.mxu0 0.0
      %1371 = vmatpush1.msra.mxu0 0.0
      %1372 = vmatprep.subr.mxu0 0.0
      %1373 = vmatpush1.msra.mxu0 0.0
      %1374 = vmatprep.subr.mxu0 0.0
      %1375 = vmatpush1.msra.mxu0 0.0
      %1376 = vmatprep.subr.mxu0 0.0
      %1377 = vmatpush1.msra.mxu0 0.0
      %1378 = vmatprep.subr.mxu0 0.0
      %1379 = vmatpush1.msra.mxu0 0.0
      %1380 = vmatprep.subr.mxu0 0.0
      %1381 = vmatpush1.msra.mxu0 0.0
      %1382 = vmatprep.subr.mxu0 0.0
      %1383 = vmatpush1.msra.mxu0 0.0
      %1384 = vmatprep.subr.mxu0 0.0
      %1385 = vmatpush1.msra.mxu0 0.0
      %1386 = vmatprep.mubr.f32.mxu0 0.0
      %1387 = vmatmul.mubr.f32.gmra.mrb[0].mxu0 %v1239
      %v1388 = vpop.f32.mrb[0].mxu0
      %v1389 = vadd.f32 0.0, %v1388
      %v1390 = vpop.f32.mrb[0].mxu0
      %1391 = vmatprep.mubr.f32.mxu0 0.0
      %1392 = vmatmul.mubr.f32.gmra.mrb[0].mxu0 %v1242
      %v1393 = vpop.f32.mrb[0].mxu0
      %v1394 = vadd.f32 0.0, %v1393
      %v1395 = vpop.f32.mrb[0].mxu0
      %1396 = vdwg.mxu0
      %v1397 = vmul.f32 %v1389, %v1319
      %v1398 = vmul.f32 %v1394, %v1319
      %v1399 = vmul.f32 %v1320, %v1320
      %v1400 = vmul.f32 %v1321, %v1321
      %v1401 = vsub.f32 %v1397, %v1399
      %v1402 = vsub.f32 %v1398, %v1400
      %v1403 = vmax.f32 %v1401, 0.0
      %v1404 = vmax.f32 %v1402, 0.0
      %v1405 = vadd.f32 %v1403, 1e-05
      %v1406 = vadd.f32 %v1404, 1e-05
      %v1407 = vrsqrt.pop %v1405
      %v1408 = vrsqrt.pop %v1406
      %1410 = vset.pattern.permute.xlu0 0
      %1411 = vperm.xlu0 %1410, %v1320
      %v1412 = vpop.permute.xlu0 %1411
      %1415 = vset.pattern.permute.xlu0 0
      %1416 = vperm.xlu0 %1415, %v1321
      %v1417 = vpop.permute.xlu0 %1416
      %v1419 = vsub.f32 %v1199, %v1412
      %v1420 = vsub.f32 %v1200, %v1412
      %v1421 = vsub.f32 %v1201, %v1417
      %v1422 = vsub.f32 %v1202, %v1417
      %1424 = vset.pattern.permute.xlu0 0
      %1425 = vperm.xlu0 %1424, %v1407
      %v1426 = vpop.permute.xlu0 %1425
      %1429 = vset.pattern.permute.xlu0 0
      %1430 = vperm.xlu0 %1429, %v1408
      %v1431 = vpop.permute.xlu0 %1430
      %v1433 = vmul.f32 %v1419, %v1426
      %v1434 = vmul.f32 %v1420, %v1426
      %v1435 = vmul.f32 %v1421, %v1431
      %v1436 = vmul.f32 %v1422, %v1431
      %1438 = vset.pattern.permute.xlu0 0
      %1439 = vperm.xlu0 %1438, %v1203
      %v1440 = vpop.permute.xlu0 %1439
      %1443 = vset.pattern.permute.xlu0 0
      %1444 = vperm.xlu0 %1443, %v1204
      %v1445 = vpop.permute.xlu0 %1444
      %v1447 = vmul.f32 %v1433, %v1440
      %v1448 = vmul.f32 %v1434, %v1440
      %v1449 = vmul.f32 %v1435, %v1445
      %v1450 = vmul.f32 %v1436, %v1445
      %1452 = vset.pattern.permute.xlu0 0
      %1453 = vperm.xlu0 %1452, %v1205
      %v1454 = vpop.permute.xlu0 %1453
      %1457 = vset.pattern.permute.xlu0 0
      %1458 = vperm.xlu0 %1457, %v1206
      %v1459 = vpop.permute.xlu0 %1458
      %v1461 = vadd.f32 %v1447, %v1454
      %v1462 = vadd.f32 %v1448, %v1454
      %v1463 = vadd.f32 %v1449, %v1459
      %v1464 = vadd.f32 %v1450, %v1459
      %v1465 = vxor.u32 %v1461, 2147483648
      %v1466 = vxor.u32 %v1462, 2147483648
      %v1467 = vxor.u32 %v1463, 2147483648
      %v1468 = vxor.u32 %v1464, 2147483648
      %v1469 = vmul.f32 %v1465, 1.442695
      %v1470 = vpow.pop %v1469
      %v1471 = vmul.f32 %v1466, 1.442695
      %v1472 = vpow.pop %v1471
      %v1473 = vmul.f32 %v1467, 1.442695
      %v1474 = vpow.pop %v1473
      %v1475 = vmul.f32 %v1468, 1.442695
      %v1476 = vpow.pop %v1475
      %v1477 = vadd.f32 %v1470, 1.0
      %v1478 = vadd.f32 %v1472, 1.0
      %v1479 = vadd.f32 %v1474, 1.0
      %v1480 = vadd.f32 %v1476, 1.0
      %v1481 = vrcp.pop %v1477
      %v1482 = vmul.f32 1.0, %v1481
      %v1483 = vrcp.pop %v1478
      %v1484 = vmul.f32 1.0, %v1483
      %v1485 = vrcp.pop %v1479
      %v1486 = vmul.f32 1.0, %v1485
      %v1487 = vrcp.pop %v1480
      %v1488 = vmul.f32 1.0, %v1487
      %v1489 = vmul.f32 %v1461, %v1482
      %v1490 = vmul.f32 %v1462, %v1484
      %v1491 = vmul.f32 %v1463, %v1486
      %v1492 = vmul.f32 %v1464, %v1488
      %v1493 = vmul.f32 %v1489, %v1211
      %v1494 = vmul.f32 %v1490, %v1215
      %v1495 = vmul.f32 %v1491, %v1211
      %v1496 = vmul.f32 %v1492, %v1215
      %v1497 = vpack.c.bf16 %v1495, %v1493
      %v1498 = vpack.c.bf16 %v1496, %v1494
      %1499 = vst [vmem:[#allocation2 + $0x8] sm:$0xff] %v1497
      %1500 = vst [vmem:[#allocation2 + $0x10] sm:$0xff] %v1498
      %v1501 = vld [vmem:[#allocation2] sm:$0xff]
      %v1502 = vld [vmem:[#allocation2 + $0x8] sm:$0xff]
      %v1503 = vld [vmem:[#allocation2 + $0x10] sm:$0xff]
      %v1504 = vld [vmem:[%s2] sm:$0x5]
      %v1507 = vunpack.c.l.s4 1983009808
      %v1508 = vunpack.c.0.s8 %v1507
      %v1509 = vlaneseq
      %v1510 = vshrl.u32 %v1509, 7
      %v1511 = vsub.s32 %v1508, %v1510
      %v1512 = vrot.slane %v1504, %v1511
      %v1513 = vcombine.high %v1512, %v1512
      %v1515 = vpack.i.b16 %v1512, %v1512
      %v1517 = vlaneseq
      %v1518 = vshrl.u32 %v1517, 7
      %v1519 = vsub.s32 0, %v1518
      %v1520 = vrot.slane %v1515, %v1519
      %v1522 = vpack.i.b16 %v1513, %v1513
      %v1524 = vlaneseq
      %v1525 = vshrl.u32 %v1524, 7
      %v1526 = vsub.s32 0, %v1525
      %v1527 = vrot.slane %v1522, %v1526
      %1530 = vrot.lane.b32.xlu0 %v1520, 111
      %v1531 = vpop.permute.xlu0 %1530
      %1532 = vrot.lane.b32.xlu0 %v1527, 111
      %v1533 = vpop.permute.xlu0 %1532
      %v1534 = vsel %vm467, %v1531, %v1533
      %v1538 = vmul.bf16 %v1501, %v1531
      %v1539 = vmul.bf16 %v1502, %v1534
      %v1540 = vmul.bf16 %v1503, %v1533
      %v1541 = vld [vmem:[%s7] sm:$0xf]
      %v1542 = vld [vmem:[%s7 + $0x4] sm:$0xf]
      %s1543 = scalar_lea.vmem %s7, 8
      %v1544 = vld [vmem:[%s1543] sm:$0xf]
      %v1545 = vld [vmem:[%s1543 + $0x4] sm:$0xf]
      %v1548 = vunpack.c.l.b16 %v1544
      %v1549 = vunpack.c.l.b16 %v1545
      %v1550 = vpack.c.b16 %v1549, %v1548
      %1554 = vrot.lane.b32.xlu0 %v1501, 16
      %v1555 = vpop.permute.xlu0 %1554
      %1556 = vrot.lane.b32.xlu0 %v1502, 16
      %v1557 = vpop.permute.xlu0 %1556
      %1558 = vrot.lane.b32.xlu0 %v1503, 16
      %v1559 = vpop.permute.xlu0 %1558
      %v1560 = vsel %vm494, %v1555, %v1557
      %v1561 = vsel %vm494, %v1557, %v1559
      %v1565 = vsel %vm499, %v1550, 0
      %1567 = vmatprep.subr.bf16.mxu0 %v1561
      %1568 = vmatpush1.bf16.msra.mxu0 %v1560
      %1569 = vmatprep.subr.bf16.mxu0 0
      %1570 = vmatpush1.bf16.msra.mxu0 0
      %1571 = vmatprep.subr.bf16.mxu0 0
      %1572 = vmatpush1.bf16.msra.mxu0 0
      %1573 = vmatprep.subr.bf16.mxu0 0
      %1574 = vmatpush1.bf16.msra.mxu0 0
      %1575 = vmatprep.subr.bf16.mxu0 0
      %1576 = vmatpush1.bf16.msra.mxu0 0
      %1577 = vmatprep.subr.bf16.mxu0 0
      %1578 = vmatpush1.bf16.msra.mxu0 0
      %1579 = vmatprep.subr.bf16.mxu0 0
      %1580 = vmatpush1.bf16.msra.mxu0 0
      %1581 = vmatprep.subr.bf16.mxu0 0
      %1582 = vmatpush1.bf16.msra.mxu0 0
      %1583 = vmatprep.subr.bf16.mxu0 0
      %1584 = vmatpush1.bf16.msra.mxu0 0
      %1585 = vmatprep.subr.bf16.mxu0 0
      %1586 = vmatpush1.bf16.msra.mxu0 0
      %1587 = vmatprep.subr.bf16.mxu0 0
      %1588 = vmatpush1.bf16.msra.mxu0 0
      %1589 = vmatprep.subr.bf16.mxu0 0
      %1590 = vmatpush1.bf16.msra.mxu0 0
      %1591 = vmatprep.subr.bf16.mxu0 0
      %1592 = vmatpush1.bf16.msra.mxu0 0
      %1593 = vmatprep.subr.bf16.mxu0 0
      %1594 = vmatpush1.bf16.msra.mxu0 0
      %1595 = vmatprep.subr.bf16.mxu0 0
      %1596 = vmatpush1.bf16.msra.mxu0 0
      %1597 = vmatprep.subr.bf16.mxu0 0
      %1598 = vmatpush1.bf16.msra.mxu0 0
      %1599 = vmatprep.mubr.bf16.mxu0 0
      %1600 = vmatmul.mubr.bf16.gmra.mrb[0].mxu0 %v1565
      %v1601 = vpop.f32.mrb[0].mxu0
      %v1602 = vadd.f32 0.0, %v1601
      %v1603 = vpop.f32.mrb[0].mxu0
      %v1604 = vadd.f32 0.0, %v1603
      %v1605 = vpop.f32.mrb[0].mxu0
      %v1606 = vadd.f32 0.0, %v1605
      %v1607 = vpop.f32.mrb[0].mxu0
      %v1608 = vadd.f32 0.0, %v1607
      %1609 = vdwg.mxu0
      %v1612 = vunpack.c.l.b16 %v1541
      %v1613 = vunpack.c.l.b16 %v1542
      %v1614 = vpack.c.b16 %v1613, %v1612
      %1618 = vrot.lane.b32.xlu0 %v1538, 17
      %v1619 = vpop.permute.xlu0 %1618
      %1620 = vrot.lane.b32.xlu0 %v1539, 17
      %v1621 = vpop.permute.xlu0 %1620
      %1622 = vrot.lane.b32.xlu0 %v1540, 17
      %v1623 = vpop.permute.xlu0 %1622
      %v1624 = vsel %vm560, %v1619, %v1621
      %v1625 = vsel %vm560, %v1621, %v1623
      %v1629 = vsel %vm499, %v1614, 0
      %1631 = vmatprep.subr.bf16.mxu0 %v1625
      %1632 = vmatpush1.bf16.msra.mxu0 %v1624
      %1633 = vmatprep.subr.bf16.mxu0 0
      %1634 = vmatpush1.bf16.msra.mxu0 0
      %1635 = vmatprep.subr.bf16.mxu0 0
      %1636 = vmatpush1.bf16.msra.mxu0 0
      %1637 = vmatprep.subr.bf16.mxu0 0
      %1638 = vmatpush1.bf16.msra.mxu0 0
      %1639 = vmatprep.subr.bf16.mxu0 0
      %1640 = vmatpush1.bf16.msra.mxu0 0
      %1641 = vmatprep.subr.bf16.mxu0 0
      %1642 = vmatpush1.bf16.msra.mxu0 0
      %1643 = vmatprep.subr.bf16.mxu0 0
      %1644 = vmatpush1.bf16.msra.mxu0 0
      %1645 = vmatprep.subr.bf16.mxu0 0
      %1646 = vmatpush1.bf16.msra.mxu0 0
      %1647 = vmatprep.subr.bf16.mxu0 0
      %1648 = vmatpush1.bf16.msra.mxu0 0
      %1649 = vmatprep.subr.bf16.mxu0 0
      %1650 = vmatpush1.bf16.msra.mxu0 0
      %1651 = vmatprep.subr.bf16.mxu0 0
      %1652 = vmatpush1.bf16.msra.mxu0 0
      %1653 = vmatprep.subr.bf16.mxu0 0
      %1654 = vmatpush1.bf16.msra.mxu0 0
      %1655 = vmatprep.subr.bf16.mxu0 0
      %1656 = vmatpush1.bf16.msra.mxu0 0
      %1657 = vmatprep.subr.bf16.mxu0 0
      %1658 = vmatpush1.bf16.msra.mxu0 0
      %1659 = vmatprep.subr.bf16.mxu0 0
      %1660 = vmatpush1.bf16.msra.mxu0 0
      %1661 = vmatprep.subr.bf16.mxu0 0
      %1662 = vmatpush1.bf16.msra.mxu0 0
      %1663 = vmatprep.mubr.bf16.mxu0 0
      %1664 = vmatmul.mubr.bf16.gmra.mrb[0].mxu0 %v1629
      %v1665 = vpop.f32.mrb[0].mxu0
      %v1666 = vadd.f32 %v1602, %v1665
      %v1667 = vpop.f32.mrb[0].mxu0
      %v1668 = vadd.f32 %v1604, %v1667
      %v1669 = vpop.f32.mrb[0].mxu0
      %v1670 = vadd.f32 %v1606, %v1669
      %v1671 = vpop.f32.mrb[0].mxu0
      %v1672 = vadd.f32 %v1608, %v1671
      %1673 = vdwg.mxu0
      %v1674 = vld [vmem:[%s2] sm:$0xa]
      %v1677 = vunpack.c.l.s4 1983009808
      %v1678 = vunpack.c.0.s8 %v1677
      %v1679 = vlaneseq
      %v1680 = vshrl.u32 %v1679, 7
      %v1681 = vsub.s32 %v1678, %v1680
      %v1682 = vrot.slane %v1674, %v1681
      %v1683 = vcombine.high %v1682, %v1682
      %v1685 = vpack.i.b16 %v1682, %v1682
      %v1687 = vlaneseq
      %v1688 = vshrl.u32 %v1687, 7
      %v1689 = vsub.s32 1, %v1688
      %v1690 = vrot.slane %v1685, %v1689
      %v1692 = vpack.i.b16 %v1683, %v1683
      %v1694 = vlaneseq
      %v1695 = vshrl.u32 %v1694, 7
      %v1696 = vsub.s32 1, %v1695
      %v1697 = vrot.slane %v1692, %v1696
      %1700 = vrot.lane.b32.xlu0 %v1690, 113
      %v1701 = vpop.permute.xlu0 %1700
      %1702 = vrot.lane.b32.xlu0 %v1697, 113
      %v1703 = vpop.permute.xlu0 %1702
      %v1704 = vsel %vm641, %v1701, %v1703
      %v1708 = vmul.bf16 %v1501, %v1701
      %v1709 = vmul.bf16 %v1502, %v1704
      %v1710 = vmul.bf16 %v1503, %v1703
      %s1711 = scalar_lea.vmem %s7, 16
      %v1712 = vld [vmem:[%s1711] sm:$0xf]
      %v1713 = vld [vmem:[%s1711 + $0x4] sm:$0xf]
      %v1716 = vunpack.c.l.b16 %v1712
      %v1717 = vunpack.c.l.b16 %v1713
      %v1718 = vpack.c.b16 %v1717, %v1716
      %1722 = vrot.lane.b32.xlu0 %v1708, 15
      %v1723 = vpop.permute.xlu0 %1722
      %1724 = vrot.lane.b32.xlu0 %v1709, 15
      %v1725 = vpop.permute.xlu0 %1724
      %1726 = vrot.lane.b32.xlu0 %v1710, 15
      %v1727 = vpop.permute.xlu0 %1726
      %v1728 = vsel %vm666, %v1723, %v1725
      %v1729 = vsel %vm666, %v1725, %v1727
      %v1733 = vsel %vm499, %v1718, 0
      %1735 = vmatprep.subr.bf16.mxu0 %v1729
      %1736 = vmatpush1.bf16.msra.mxu0 %v1728
      %1737 = vmatprep.subr.bf16.mxu0 0
      %1738 = vmatpush1.bf16.msra.mxu0 0
      %1739 = vmatprep.subr.bf16.mxu0 0
      %1740 = vmatpush1.bf16.msra.mxu0 0
      %1741 = vmatprep.subr.bf16.mxu0 0
      %1742 = vmatpush1.bf16.msra.mxu0 0
      %1743 = vmatprep.subr.bf16.mxu0 0
      %1744 = vmatpush1.bf16.msra.mxu0 0
      %1745 = vmatprep.subr.bf16.mxu0 0
      %1746 = vmatpush1.bf16.msra.mxu0 0
      %1747 = vmatprep.subr.bf16.mxu0 0
      %1748 = vmatpush1.bf16.msra.mxu0 0
      %1749 = vmatprep.subr.bf16.mxu0 0
      %1750 = vmatpush1.bf16.msra.mxu0 0
      %1751 = vmatprep.subr.bf16.mxu0 0
      %1752 = vmatpush1.bf16.msra.mxu0 0
      %1753 = vmatprep.subr.bf16.mxu0 0
      %1754 = vmatpush1.bf16.msra.mxu0 0
      %1755 = vmatprep.subr.bf16.mxu0 0
      %1756 = vmatpush1.bf16.msra.mxu0 0
      %1757 = vmatprep.subr.bf16.mxu0 0
      %1758 = vmatpush1.bf16.msra.mxu0 0
      %1759 = vmatprep.subr.bf16.mxu0 0
      %1760 = vmatpush1.bf16.msra.mxu0 0
      %1761 = vmatprep.subr.bf16.mxu0 0
      %1762 = vmatpush1.bf16.msra.mxu0 0
      %1763 = vmatprep.subr.bf16.mxu0 0
      %1764 = vmatpush1.bf16.msra.mxu0 0
      %1765 = vmatprep.subr.bf16.mxu0 0
      %1766 = vmatpush1.bf16.msra.mxu0 0
      %1767 = vmatprep.mubr.bf16.mxu0 0
      %1768 = vmatmul.mubr.bf16.gmra.mrb[0].mxu0 %v1733
      %v1769 = vpop.f32.mrb[0].mxu0
      %v1770 = vadd.f32 0.0, %v1769
      %v1771 = vpop.f32.mrb[0].mxu0
      %v1772 = vadd.f32 0.0, %v1771
      %v1773 = vpop.f32.mrb[0].mxu0
      %v1774 = vadd.f32 0.0, %v1773
      %v1775 = vpop.f32.mrb[0].mxu0
      %v1776 = vadd.f32 0.0, %v1775
      %1777 = vdwg.mxu0
      %v1778 = vadd.f32 %v1666, %v1770
      %v1779 = vadd.f32 %v1668, %v1772
      %v1780 = vadd.f32 %v1670, %v1774
      %v1781 = vadd.f32 %v1672, %v1776
      %v1782 = vld [vmem:[#allocation2] sm:$0xff]
      %v1783 = vld [vmem:[#allocation2 + $0x8] sm:$0xff]
      %v1784 = vld [vmem:[#allocation2 + $0x10] sm:$0xff]
      %1785 = vrot.lane.b32.xlu0 %v1520, 127
      %v1786 = vpop.permute.xlu0 %1785
      %1787 = vrot.lane.b32.xlu0 %v1527, 127
      %v1788 = vpop.permute.xlu0 %1787
      %v1789 = vsel %vm728, %v1786, %v1788
      %v1793 = vmul.bf16 %v1782, %v1786
      %v1794 = vmul.bf16 %v1783, %v1789
      %v1795 = vmul.bf16 %v1784, %v1788
      %s1796 = scalar_lea.vmem %s7, 24
      %v1797 = vld [vmem:[%s1796] sm:$0xf]
      %v1798 = vld [vmem:[%s1796 + $0x4] sm:$0xf]
      %v1801 = vunpack.c.l.b16 %v1797
      %v1802 = vunpack.c.l.b16 %v1798
      %v1803 = vpack.c.b16 %v1802, %v1801
      %1807 = vrot.lane.b32.xlu0 %v1793, 1
      %v1808 = vpop.permute.xlu0 %1807
      %1809 = vrot.lane.b32.xlu0 %v1794, 1
      %v1810 = vpop.permute.xlu0 %1809
      %1811 = vrot.lane.b32.xlu0 %v1795, 1
      %v1812 = vpop.permute.xlu0 %1811
      %v1813 = vsel %vm753, %v1808, %v1810
      %v1814 = vsel %vm753, %v1810, %v1812
      %v1818 = vsel %vm499, %v1803, 0
      %1820 = vmatprep.subr.bf16.mxu0 %v1814
      %1821 = vmatpush1.bf16.msra.mxu0 %v1813
      %1822 = vmatprep.subr.bf16.mxu0 0
      %1823 = vmatpush1.bf16.msra.mxu0 0
      %1824 = vmatprep.subr.bf16.mxu0 0
      %1825 = vmatpush1.bf16.msra.mxu0 0
      %1826 = vmatprep.subr.bf16.mxu0 0
      %1827 = vmatpush1.bf16.msra.mxu0 0
      %1828 = vmatprep.subr.bf16.mxu0 0
      %1829 = vmatpush1.bf16.msra.mxu0 0
      %1830 = vmatprep.subr.bf16.mxu0 0
      %1831 = vmatpush1.bf16.msra.mxu0 0
      %1832 = vmatprep.subr.bf16.mxu0 0
      %1833 = vmatpush1.bf16.msra.mxu0 0
      %1834 = vmatprep.subr.bf16.mxu0 0
      %1835 = vmatpush1.bf16.msra.mxu0 0
      %1836 = vmatprep.subr.bf16.mxu0 0
      %1837 = vmatpush1.bf16.msra.mxu0 0
      %1838 = vmatprep.subr.bf16.mxu0 0
      %1839 = vmatpush1.bf16.msra.mxu0 0
      %1840 = vmatprep.subr.bf16.mxu0 0
      %1841 = vmatpush1.bf16.msra.mxu0 0
      %1842 = vmatprep.subr.bf16.mxu0 0
      %1843 = vmatpush1.bf16.msra.mxu0 0
      %1844 = vmatprep.subr.bf16.mxu0 0
      %1845 = vmatpush1.bf16.msra.mxu0 0
      %1846 = vmatprep.subr.bf16.mxu0 0
      %1847 = vmatpush1.bf16.msra.mxu0 0
      %1848 = vmatprep.subr.bf16.mxu0 0
      %1849 = vmatpush1.bf16.msra.mxu0 0
      %1850 = vmatprep.subr.bf16.mxu0 0
      %1851 = vmatpush1.bf16.msra.mxu0 0
      %1852 = vmatprep.mubr.bf16.mxu0 0
      %1853 = vmatmul.mubr.bf16.gmra.mrb[0].mxu0 %v1818
      %v1854 = vpop.f32.mrb[0].mxu0
      %v1855 = vadd.f32 0.0, %v1854
      %v1856 = vpop.f32.mrb[0].mxu0
      %v1857 = vadd.f32 0.0, %v1856
      %v1858 = vpop.f32.mrb[0].mxu0
      %v1859 = vadd.f32 0.0, %v1858
      %v1860 = vpop.f32.mrb[0].mxu0
      %v1861 = vadd.f32 0.0, %v1860
      %1862 = vdwg.mxu0
      %v1863 = vadd.f32 %v1778, %v1855
      %v1864 = vadd.f32 %v1779, %v1857
      %v1865 = vadd.f32 %v1780, %v1859
      %v1866 = vadd.f32 %v1781, %v1861
      %s1867 = scalar_lea.vmem %s7, 32
      %v1868 = vld [vmem:[%s1867] sm:$0xf]
      %v1869 = vld [vmem:[%s1867 + $0x4] sm:$0xf]
      %v1872 = vunpack.c.l.b16 %v1868
      %v1873 = vunpack.c.l.b16 %v1869
      %v1874 = vpack.c.b16 %v1873, %v1872
      %v1876 = vsel %vm499, %v1874, 0
      %1878 = vmatprep.subr.bf16.mxu0 %v1784
      %1879 = vmatpush1.bf16.msra.mxu0 %v1783
      %1880 = vmatprep.subr.bf16.mxu0 0
      %1881 = vmatpush1.bf16.msra.mxu0 0
      %1882 = vmatprep.subr.bf16.mxu0 0
      %1883 = vmatpush1.bf16.msra.mxu0 0
      %1884 = vmatprep.subr.bf16.mxu0 0
      %1885 = vmatpush1.bf16.msra.mxu0 0
      %1886 = vmatprep.subr.bf16.mxu0 0
      %1887 = vmatpush1.bf16.msra.mxu0 0
      %1888 = vmatprep.subr.bf16.mxu0 0
      %1889 = vmatpush1.bf16.msra.mxu0 0
      %1890 = vmatprep.subr.bf16.mxu0 0
      %1891 = vmatpush1.bf16.msra.mxu0 0
      %1892 = vmatprep.subr.bf16.mxu0 0
      %1893 = vmatpush1.bf16.msra.mxu0 0
      %1894 = vmatprep.subr.bf16.mxu0 0
      %1895 = vmatpush1.bf16.msra.mxu0 0
      %1896 = vmatprep.subr.bf16.mxu0 0
      %1897 = vmatpush1.bf16.msra.mxu0 0
      %1898 = vmatprep.subr.bf16.mxu0 0
      %1899 = vmatpush1.bf16.msra.mxu0 0
      %1900 = vmatprep.subr.bf16.mxu0 0
      %1901 = vmatpush1.bf16.msra.mxu0 0
      %1902 = vmatprep.subr.bf16.mxu0 0
      %1903 = vmatpush1.bf16.msra.mxu0 0
      %1904 = vmatprep.subr.bf16.mxu0 0
      %1905 = vmatpush1.bf16.msra.mxu0 0
      %1906 = vmatprep.subr.bf16.mxu0 0
      %1907 = vmatpush1.bf16.msra.mxu0 0
      %1908 = vmatprep.subr.bf16.mxu0 0
      %1909 = vmatpush1.bf16.msra.mxu0 0
      %1910 = vmatprep.mubr.bf16.mxu0 0
      %1911 = vmatmul.mubr.bf16.gmra.mrb[0].mxu0 %v1876
      %v1912 = vpop.f32.mrb[0].mxu0
      %v1913 = vadd.f32 0.0, %v1912
      %v1914 = vpop.f32.mrb[0].mxu0
      %v1915 = vadd.f32 0.0, %v1914
      %v1916 = vpop.f32.mrb[0].mxu0
      %v1917 = vadd.f32 0.0, %v1916
      %v1918 = vpop.f32.mrb[0].mxu0
      %v1919 = vadd.f32 0.0, %v1918
      %1920 = vdwg.mxu0
      %v1921 = vadd.f32 %v1863, %v1913
      %v1922 = vadd.f32 %v1864, %v1915
      %v1923 = vadd.f32 %v1865, %v1917
      %v1924 = vadd.f32 %v1866, %v1919
      %v1925 = vld [vmem:[#allocation2 + $0x8] sm:$0xff]
      %v1926 = vld [vmem:[#allocation2 + $0x10] sm:$0xff]
      %v1927 = vld [vmem:[#allocation2 + $0x18] sm:$0xff]
      %1928 = vrot.lane.b32.xlu0 %v1690, 1
      %v1929 = vpop.permute.xlu0 %1928
      %1930 = vrot.lane.b32.xlu0 %v1697, 1
      %v1931 = vpop.permute.xlu0 %1930
      %v1932 = vsel %vm753, %v1929, %v1931
      %v1936 = vmul.bf16 %v1925, %v1929
      %v1937 = vmul.bf16 %v1926, %v1932
      %v1938 = vmul.bf16 %v1927, %v1931
      %s1939 = scalar_lea.vmem %s7, 40
      %v1940 = vld [vmem:[%s1939] sm:$0xf]
      %v1941 = vld [vmem:[%s1939 + $0x4] sm:$0xf]
      %v1944 = vunpack.c.l.b16 %v1940
      %v1945 = vunpack.c.l.b16 %v1941
      %v1946 = vpack.c.b16 %v1945, %v1944
      %1950 = vrot.lane.b32.xlu0 %v1936, 127
      %v1951 = vpop.permute.xlu0 %1950
      %1952 = vrot.lane.b32.xlu0 %v1937, 127
      %v1953 = vpop.permute.xlu0 %1952
      %1954 = vrot.lane.b32.xlu0 %v1938, 127
      %v1955 = vpop.permute.xlu0 %1954
      %v1956 = vsel %vm728, %v1951, %v1953
      %v1957 = vsel %vm728, %v1953, %v1955
      %v1961 = vsel %vm499, %v1946, 0
      %1963 = vmatprep.subr.bf16.mxu0 %v1957
      %1964 = vmatpush1.bf16.msra.mxu0 %v1956
      %1965 = vmatprep.subr.bf16.mxu0 0
      %1966 = vmatpush1.bf16.msra.mxu0 0
      %1967 = vmatprep.subr.bf16.mxu0 0
      %1968 = vmatpush1.bf16.msra.mxu0 0
      %1969 = vmatprep.subr.bf16.mxu0 0
      %1970 = vmatpush1.bf16.msra.mxu0 0
      %1971 = vmatprep.subr.bf16.mxu0 0
      %1972 = vmatpush1.bf16.msra.mxu0 0
      %1973 = vmatprep.subr.bf16.mxu0 0
      %1974 = vmatpush1.bf16.msra.mxu0 0
      %1975 = vmatprep.subr.bf16.mxu0 0
      %1976 = vmatpush1.bf16.msra.mxu0 0
      %1977 = vmatprep.subr.bf16.mxu0 0
      %1978 = vmatpush1.bf16.msra.mxu0 0
      %1979 = vmatprep.subr.bf16.mxu0 0
      %1980 = vmatpush1.bf16.msra.mxu0 0
      %1981 = vmatprep.subr.bf16.mxu0 0
      %1982 = vmatpush1.bf16.msra.mxu0 0
      %1983 = vmatprep.subr.bf16.mxu0 0
      %1984 = vmatpush1.bf16.msra.mxu0 0
      %1985 = vmatprep.subr.bf16.mxu0 0
      %1986 = vmatpush1.bf16.msra.mxu0 0
      %1987 = vmatprep.subr.bf16.mxu0 0
      %1988 = vmatpush1.bf16.msra.mxu0 0
      %1989 = vmatprep.subr.bf16.mxu0 0
      %1990 = vmatpush1.bf16.msra.mxu0 0
      %1991 = vmatprep.subr.bf16.mxu0 0
      %1992 = vmatpush1.bf16.msra.mxu0 0
      %1993 = vmatprep.subr.bf16.mxu0 0
      %1994 = vmatpush1.bf16.msra.mxu0 0
      %1995 = vmatprep.mubr.bf16.mxu0 0
      %1996 = vmatmul.mubr.bf16.gmra.mrb[0].mxu0 %v1961
      %v1997 = vpop.f32.mrb[0].mxu0
      %v1998 = vadd.f32 0.0, %v1997
      %v1999 = vpop.f32.mrb[0].mxu0
      %v2000 = vadd.f32 0.0, %v1999
      %v2001 = vpop.f32.mrb[0].mxu0
      %v2002 = vadd.f32 0.0, %v2001
      %v2003 = vpop.f32.mrb[0].mxu0
      %v2004 = vadd.f32 0.0, %v2003
      %2005 = vdwg.mxu0
      %v2006 = vadd.f32 %v1921, %v1998
      %v2007 = vadd.f32 %v1922, %v2000
      %v2008 = vadd.f32 %v1923, %v2002
      %v2009 = vadd.f32 %v1924, %v2004
      %2010 = vrot.lane.b32.xlu0 %v1520, 15
      %v2011 = vpop.permute.xlu0 %2010
      %2012 = vrot.lane.b32.xlu0 %v1527, 15
      %v2013 = vpop.permute.xlu0 %2012
      %v2014 = vsel %vm666, %v2011, %v2013
      %v2018 = vmul.bf16 %v1925, %v2011
      %v2019 = vmul.bf16 %v1926, %v2014
      %v2020 = vmul.bf16 %v1927, %v2013
      %s2021 = scalar_lea.vmem %s7, 48
      %v2022 = vld [vmem:[%s2021] sm:$0xf]
      %v2023 = vld [vmem:[%s2021 + $0x4] sm:$0xf]
      %v2026 = vunpack.c.l.b16 %v2022
      %v2027 = vunpack.c.l.b16 %v2023
      %v2028 = vpack.c.b16 %v2027, %v2026
      %2032 = vrot.lane.b32.xlu0 %v2018, 113
      %v2033 = vpop.permute.xlu0 %2032
      %2034 = vrot.lane.b32.xlu0 %v2019, 113
      %v2035 = vpop.permute.xlu0 %2034
      %2036 = vrot.lane.b32.xlu0 %v2020, 113
      %v2037 = vpop.permute.xlu0 %2036
      %v2038 = vsel %vm641, %v2033, %v2035
      %v2039 = vsel %vm641, %v2035, %v2037
      %v2043 = vsel %vm499, %v2028, 0
      %2045 = vmatprep.subr.bf16.mxu0 %v2039
      %2046 = vmatpush1.bf16.msra.mxu0 %v2038
      %2047 = vmatprep.subr.bf16.mxu0 0
      %2048 = vmatpush1.bf16.msra.mxu0 0
      %2049 = vmatprep.subr.bf16.mxu0 0
      %2050 = vmatpush1.bf16.msra.mxu0 0
      %2051 = vmatprep.subr.bf16.mxu0 0
      %2052 = vmatpush1.bf16.msra.mxu0 0
      %2053 = vmatprep.subr.bf16.mxu0 0
      %2054 = vmatpush1.bf16.msra.mxu0 0
      %2055 = vmatprep.subr.bf16.mxu0 0
      %2056 = vmatpush1.bf16.msra.mxu0 0
      %2057 = vmatprep.subr.bf16.mxu0 0
      %2058 = vmatpush1.bf16.msra.mxu0 0
      %2059 = vmatprep.subr.bf16.mxu0 0
      %2060 = vmatpush1.bf16.msra.mxu0 0
      %2061 = vmatprep.subr.bf16.mxu0 0
      %2062 = vmatpush1.bf16.msra.mxu0 0
      %2063 = vmatprep.subr.bf16.mxu0 0
      %2064 = vmatpush1.bf16.msra.mxu0 0
      %2065 = vmatprep.subr.bf16.mxu0 0
      %2066 = vmatpush1.bf16.msra.mxu0 0
      %2067 = vmatprep.subr.bf16.mxu0 0
      %2068 = vmatpush1.bf16.msra.mxu0 0
      %2069 = vmatprep.subr.bf16.mxu0 0
      %2070 = vmatpush1.bf16.msra.mxu0 0
      %2071 = vmatprep.subr.bf16.mxu0 0
      %2072 = vmatpush1.bf16.msra.mxu0 0
      %2073 = vmatprep.subr.bf16.mxu0 0
      %2074 = vmatpush1.bf16.msra.mxu0 0
      %2075 = vmatprep.subr.bf16.mxu0 0
      %2076 = vmatpush1.bf16.msra.mxu0 0
      %2077 = vmatprep.mubr.bf16.mxu0 0
      %2078 = vmatmul.mubr.bf16.gmra.mrb[0].mxu0 %v2043
      %v2079 = vpop.f32.mrb[0].mxu0
      %v2080 = vadd.f32 0.0, %v2079
      %v2081 = vpop.f32.mrb[0].mxu0
      %v2082 = vadd.f32 0.0, %v2081
      %v2083 = vpop.f32.mrb[0].mxu0
      %v2084 = vadd.f32 0.0, %v2083
      %v2085 = vpop.f32.mrb[0].mxu0
      %v2086 = vadd.f32 0.0, %v2085
      %2087 = vdwg.mxu0
      %v2088 = vadd.f32 %v2006, %v2080
      %v2089 = vadd.f32 %v2007, %v2082
      %v2090 = vadd.f32 %v2008, %v2084
      %v2091 = vadd.f32 %v2009, %v2086
      %s2092 = scalar_lea.vmem %s7, 56
      %v2093 = vld [vmem:[%s2092] sm:$0xf]
      %v2094 = vld [vmem:[%s2092 + $0x4] sm:$0xf]
      %v2097 = vunpack.c.l.b16 %v2093
      %v2098 = vunpack.c.l.b16 %v2094
      %v2099 = vpack.c.b16 %v2098, %v2097
      %2103 = vrot.lane.b32.xlu0 %v1925, 112
      %v2104 = vpop.permute.xlu0 %2103
      %2105 = vrot.lane.b32.xlu0 %v1926, 112
      %v2106 = vpop.permute.xlu0 %2105
      %2107 = vrot.lane.b32.xlu0 %v1927, 112
      %v2108 = vpop.permute.xlu0 %2107
      %v2109 = vsel %vm1050, %v2104, %v2106
      %v2110 = vsel %vm1050, %v2106, %v2108
      %v2114 = vsel %vm499, %v2099, 0
      %2116 = vmatprep.subr.bf16.mxu0 %v2110
      %2117 = vmatpush1.bf16.msra.mxu0 %v2109
      %2118 = vmatprep.subr.bf16.mxu0 0
      %2119 = vmatpush1.bf16.msra.mxu0 0
      %2120 = vmatprep.subr.bf16.mxu0 0
      %2121 = vmatpush1.bf16.msra.mxu0 0
      %2122 = vmatprep.subr.bf16.mxu0 0
      %2123 = vmatpush1.bf16.msra.mxu0 0
      %2124 = vmatprep.subr.bf16.mxu0 0
      %2125 = vmatpush1.bf16.msra.mxu0 0
      %2126 = vmatprep.subr.bf16.mxu0 0
      %2127 = vmatpush1.bf16.msra.mxu0 0
      %2128 = vmatprep.subr.bf16.mxu0 0
      %2129 = vmatpush1.bf16.msra.mxu0 0
      %2130 = vmatprep.subr.bf16.mxu0 0
      %2131 = vmatpush1.bf16.msra.mxu0 0
      %2132 = vmatprep.subr.bf16.mxu0 0
      %2133 = vmatpush1.bf16.msra.mxu0 0
      %2134 = vmatprep.subr.bf16.mxu0 0
      %2135 = vmatpush1.bf16.msra.mxu0 0
      %2136 = vmatprep.subr.bf16.mxu0 0
      %2137 = vmatpush1.bf16.msra.mxu0 0
      %2138 = vmatprep.subr.bf16.mxu0 0
      %2139 = vmatpush1.bf16.msra.mxu0 0
      %2140 = vmatprep.subr.bf16.mxu0 0
      %2141 = vmatpush1.bf16.msra.mxu0 0
      %2142 = vmatprep.subr.bf16.mxu0 0
      %2143 = vmatpush1.bf16.msra.mxu0 0
      %2144 = vmatprep.subr.bf16.mxu0 0
      %2145 = vmatpush1.bf16.msra.mxu0 0
      %2146 = vmatprep.subr.bf16.mxu0 0
      %2147 = vmatpush1.bf16.msra.mxu0 0
      %2148 = vmatprep.mubr.bf16.mxu0 0
      %2149 = vmatmul.mubr.bf16.gmra.mrb[0].mxu0 %v2114
      %v2150 = vpop.f32.mrb[0].mxu0
      %v2151 = vadd.f32 0.0, %v2150
      %v2152 = vpop.f32.mrb[0].mxu0
      %v2153 = vadd.f32 0.0, %v2152
      %v2154 = vpop.f32.mrb[0].mxu0
      %v2155 = vadd.f32 0.0, %v2154
      %v2156 = vpop.f32.mrb[0].mxu0
      %v2157 = vadd.f32 0.0, %v2156
      %2158 = vdwg.mxu0
      %v2159 = vadd.f32 %v2088, %v2151
      %v2160 = vadd.f32 %v2089, %v2153
      %v2161 = vadd.f32 %v2090, %v2155
      %v2162 = vadd.f32 %v2091, %v2157
      %2163 = vrot.lane.b32.xlu0 %v1690, 17
      %v2164 = vpop.permute.xlu0 %2163
      %2165 = vrot.lane.b32.xlu0 %v1697, 17
      %v2166 = vpop.permute.xlu0 %2165
      %v2167 = vsel %vm560, %v2164, %v2166
      %v2171 = vmul.bf16 %v1925, %v2164
      %v2172 = vmul.bf16 %v1926, %v2167
      %v2173 = vmul.bf16 %v1927, %v2166
      %s2174 = scalar_lea.vmem %s7, 64
      %v2175 = vld [vmem:[%s2174] sm:$0xf]
      %v2176 = vld [vmem:[%s2174 + $0x4] sm:$0xf]
      %v2179 = vunpack.c.l.b16 %v2175
      %v2180 = vunpack.c.l.b16 %v2176
      %v2181 = vpack.c.b16 %v2180, %v2179
      %2185 = vrot.lane.b32.xlu0 %v2171, 111
      %v2186 = vpop.permute.xlu0 %2185
      %2187 = vrot.lane.b32.xlu0 %v2172, 111
      %v2188 = vpop.permute.xlu0 %2187
      %2189 = vrot.lane.b32.xlu0 %v2173, 111
      %v2190 = vpop.permute.xlu0 %2189
      %v2191 = vsel %vm467, %v2186, %v2188
      %v2192 = vsel %vm467, %v2188, %v2190
      %v2196 = vsel %vm499, %v2181, 0
      %2198 = vmatprep.subr.bf16.mxu0 %v2192
      %2199 = vmatpush1.bf16.msra.mxu0 %v2191
      %2200 = vmatprep.subr.bf16.mxu0 0
      %2201 = vmatpush1.bf16.msra.mxu0 0
      %2202 = vmatprep.subr.bf16.mxu0 0
      %2203 = vmatpush1.bf16.msra.mxu0 0
      %2204 = vmatprep.subr.bf16.mxu0 0
      %2205 = vmatpush1.bf16.msra.mxu0 0
      %2206 = vmatprep.subr.bf16.mxu0 0
      %2207 = vmatpush1.bf16.msra.mxu0 0
      %2208 = vmatprep.subr.bf16.mxu0 0
      %2209 = vmatpush1.bf16.msra.mxu0 0
      %2210 = vmatprep.subr.bf16.mxu0 0
      %2211 = vmatpush1.bf16.msra.mxu0 0
      %2212 = vmatprep.subr.bf16.mxu0 0
      %2213 = vmatpush1.bf16.msra.mxu0 0
      %2214 = vmatprep.subr.bf16.mxu0 0
      %2215 = vmatpush1.bf16.msra.mxu0 0
      %2216 = vmatprep.subr.bf16.mxu0 0
      %2217 = vmatpush1.bf16.msra.mxu0 0
      %2218 = vmatprep.subr.bf16.mxu0 0
      %2219 = vmatpush1.bf16.msra.mxu0 0
      %2220 = vmatprep.subr.bf16.mxu0 0
      %2221 = vmatpush1.bf16.msra.mxu0 0
      %2222 = vmatprep.subr.bf16.mxu0 0
      %2223 = vmatpush1.bf16.msra.mxu0 0
      %2224 = vmatprep.subr.bf16.mxu0 0
      %2225 = vmatpush1.bf16.msra.mxu0 0
      %2226 = vmatprep.subr.bf16.mxu0 0
      %2227 = vmatpush1.bf16.msra.mxu0 0
      %2228 = vmatprep.subr.bf16.mxu0 0
      %2229 = vmatpush1.bf16.msra.mxu0 0
      %2230 = vmatprep.mubr.bf16.mxu0 0
      %2231 = vmatmul.mubr.bf16.gmra.mrb[0].mxu0 %v2196
      %v2232 = vpop.f32.mrb[0].mxu0
      %v2233 = vadd.f32 0.0, %v2232
      %v2234 = vpop.f32.mrb[0].mxu0
      %v2235 = vadd.f32 0.0, %v2234
      %v2236 = vpop.f32.mrb[0].mxu0
      %v2237 = vadd.f32 0.0, %v2236
      %v2238 = vpop.f32.mrb[0].mxu0
      %v2239 = vadd.f32 0.0, %v2238
      %2240 = vdwg.mxu0
      %v2241 = vadd.f32 %v2159, %v2233
      %v2242 = vadd.f32 %v2160, %v2235
      %v2243 = vadd.f32 %v2161, %v2237
      %v2244 = vadd.f32 %v2162, %v2239
      %v2245 = vld [vmem:[%s8] sm:$0xff]
      %v2246 = vld [vmem:[%s8 + $0x8] sm:$0xff]
      %2248 = vset.pattern.permute.xlu0 0
      %2249 = vperm.xlu0 %2248, %v2245
      %v2250 = vpop.permute.xlu0 %2249
      %2253 = vset.pattern.permute.xlu0 0
      %2254 = vperm.xlu0 %2253, %v2246
      %v2255 = vpop.permute.xlu0 %2254
      %v2257 = vadd.f32 %v2241, %v2250
      %v2258 = vadd.f32 %v2242, %v2250
      %v2259 = vadd.f32 %v2243, %v2255
      %v2260 = vadd.f32 %v2244, %v2255
      %v2261 = vld [vmem:[%s9] sm:$0xff]
      %v2262 = vld [vmem:[%s9 + $0x8] sm:$0xff]
      %v2263 = vld [vmem:[%s10] sm:$0xff]
      %v2264 = vld [vmem:[%s10 + $0x8] sm:$0xff]
      %v2265 = vmul.f32 %v2257, %v1211
      %v2266 = vmul.f32 %v2258, %v1215
      %v2267 = vmul.f32 %v2259, %v1211
      %v2268 = vmul.f32 %v2260, %v1215
      %v2269 = vadd.f32 %v2265, %v2266
      %2270 = vadd.xlane.f32.xlu0 %v2269
      %v2271 = vpop.xlane.xlu0 %2270
      %v2272 = vadd.f32 %v2267, %v2268
      %2273 = vadd.xlane.f32.xlu0 %v2272
      %v2274 = vpop.xlane.xlu0 %2273
      %v2275 = vmul.f32 %v2265, %v2265
      %v2276 = vmul.f32 %v2266, %v2266
      %v2277 = vmul.f32 %v2267, %v2267
      %v2278 = vmul.f32 %v2268, %v2268
      %v2279 = vadd.f32 %v2275, %v2276
      %2280 = vadd.xlane.f32.xlu0 %v2279
      %v2281 = vpop.xlane.xlu0 %2280
      %v2282 = vadd.f32 %v2277, %v2278
      %2283 = vadd.xlane.f32.xlu0 %v2282
      %v2284 = vpop.xlane.xlu0 %2283
      %2285 = vmatprep.subr.mxu0 0.0
      %2286 = vmatpush1.msra.mxu0 %v2271
      %2287 = vmatprep.subr.mxu0 0.0
      %2288 = vmatpush1.msra.mxu0 %v2274
      %2289 = vmatprep.subr.mxu0 0.0
      %2290 = vmatpush1.msra.mxu0 0.0
      %2291 = vmatprep.subr.mxu0 0.0
      %2292 = vmatpush1.msra.mxu0 0.0
      %2293 = vmatprep.subr.mxu0 0.0
      %2294 = vmatpush1.msra.mxu0 0.0
      %2295 = vmatprep.subr.mxu0 0.0
      %2296 = vmatpush1.msra.mxu0 0.0
      %2297 = vmatprep.subr.mxu0 0.0
      %2298 = vmatpush1.msra.mxu0 0.0
      %2299 = vmatprep.subr.mxu0 0.0
      %2300 = vmatpush1.msra.mxu0 0.0
      %2301 = vmatprep.subr.mxu0 0.0
      %2302 = vmatpush1.msra.mxu0 0.0
      %2303 = vmatprep.subr.mxu0 0.0
      %2304 = vmatpush1.msra.mxu0 0.0
      %2305 = vmatprep.subr.mxu0 0.0
      %2306 = vmatpush1.msra.mxu0 0.0
      %2307 = vmatprep.subr.mxu0 0.0
      %2308 = vmatpush1.msra.mxu0 0.0
      %2309 = vmatprep.subr.mxu0 0.0
      %2310 = vmatpush1.msra.mxu0 0.0
      %2311 = vmatprep.subr.mxu0 0.0
      %2312 = vmatpush1.msra.mxu0 0.0
      %2313 = vmatprep.subr.mxu0 0.0
      %2314 = vmatpush1.msra.mxu0 0.0
      %2315 = vmatprep.subr.mxu0 0.0
      %2316 = vmatpush1.msra.mxu0 0.0
      %2317 = vmatprep.subr.mxu0 0.0
      %2318 = vmatpush1.msra.mxu0 0.0
      %2319 = vmatprep.subr.mxu0 0.0
      %2320 = vmatpush1.msra.mxu0 0.0
      %2321 = vmatprep.subr.mxu0 0.0
      %2322 = vmatpush1.msra.mxu0 0.0
      %2323 = vmatprep.subr.mxu0 0.0
      %2324 = vmatpush1.msra.mxu0 0.0
      %2325 = vmatprep.subr.mxu0 0.0
      %2326 = vmatpush1.msra.mxu0 0.0
      %2327 = vmatprep.subr.mxu0 0.0
      %2328 = vmatpush1.msra.mxu0 0.0
      %2329 = vmatprep.subr.mxu0 0.0
      %2330 = vmatpush1.msra.mxu0 0.0
      %2331 = vmatprep.subr.mxu0 0.0
      %2332 = vmatpush1.msra.mxu0 0.0
      %2333 = vmatprep.subr.mxu0 0.0
      %2334 = vmatpush1.msra.mxu0 0.0
      %2335 = vmatprep.subr.mxu0 0.0
      %2336 = vmatpush1.msra.mxu0 0.0
      %2337 = vmatprep.subr.mxu0 0.0
      %2338 = vmatpush1.msra.mxu0 0.0
      %2339 = vmatprep.subr.mxu0 0.0
      %2340 = vmatpush1.msra.mxu0 0.0
      %2341 = vmatprep.subr.mxu0 0.0
      %2342 = vmatpush1.msra.mxu0 0.0
      %2343 = vmatprep.subr.mxu0 0.0
      %2344 = vmatpush1.msra.mxu0 0.0
      %2345 = vmatprep.subr.mxu0 0.0
      %2346 = vmatpush1.msra.mxu0 0.0
      %2347 = vmatprep.subr.mxu0 0.0
      %2348 = vmatpush1.msra.mxu0 0.0
      %2349 = vmatprep.mubr.f32.mxu0 0.0
      %2350 = vmatmul.mubr.f32.gmra.mrb[0].mxu0 %v1239
      %v2351 = vpop.f32.mrb[0].mxu0
      %v2352 = vadd.f32 0.0, %v2351
      %v2353 = vpop.f32.mrb[0].mxu0
      %2354 = vmatprep.mubr.f32.mxu0 0.0
      %2355 = vmatmul.mubr.f32.gmra.mrb[0].mxu0 %v1242
      %v2356 = vpop.f32.mrb[0].mxu0
      %v2357 = vadd.f32 0.0, %v2356
      %v2358 = vpop.f32.mrb[0].mxu0
      %2359 = vdwg.mxu0
      %v2360 = vmul.f32 %v2352, %v1319
      %v2361 = vmul.f32 %v2357, %v1319
      %2362 = vmatprep.subr.mxu0 0.0
      %2363 = vmatpush1.msra.mxu0 %v2281
      %2364 = vmatprep.subr.mxu0 0.0
      %2365 = vmatpush1.msra.mxu0 %v2284
      %2366 = vmatprep.subr.mxu0 0.0
      %2367 = vmatpush1.msra.mxu0 0.0
      %2368 = vmatprep.subr.mxu0 0.0
      %2369 = vmatpush1.msra.mxu0 0.0
      %2370 = vmatprep.subr.mxu0 0.0
      %2371 = vmatpush1.msra.mxu0 0.0
      %2372 = vmatprep.subr.mxu0 0.0
      %2373 = vmatpush1.msra.mxu0 0.0
      %2374 = vmatprep.subr.mxu0 0.0
      %2375 = vmatpush1.msra.mxu0 0.0
      %2376 = vmatprep.subr.mxu0 0.0
      %2377 = vmatpush1.msra.mxu0 0.0
      %2378 = vmatprep.subr.mxu0 0.0
      %2379 = vmatpush1.msra.mxu0 0.0
      %2380 = vmatprep.subr.mxu0 0.0
      %2381 = vmatpush1.msra.mxu0 0.0
      %2382 = vmatprep.subr.mxu0 0.0
      %2383 = vmatpush1.msra.mxu0 0.0
      %2384 = vmatprep.subr.mxu0 0.0
      %2385 = vmatpush1.msra.mxu0 0.0
      %2386 = vmatprep.subr.mxu0 0.0
      %2387 = vmatpush1.msra.mxu0 0.0
      %2388 = vmatprep.subr.mxu0 0.0
      %2389 = vmatpush1.msra.mxu0 0.0
      %2390 = vmatprep.subr.mxu0 0.0
      %2391 = vmatpush1.msra.mxu0 0.0
      %2392 = vmatprep.subr.mxu0 0.0
      %2393 = vmatpush1.msra.mxu0 0.0
      %2394 = vmatprep.subr.mxu0 0.0
      %2395 = vmatpush1.msra.mxu0 0.0
      %2396 = vmatprep.subr.mxu0 0.0
      %2397 = vmatpush1.msra.mxu0 0.0
      %2398 = vmatprep.subr.mxu0 0.0
      %2399 = vmatpush1.msra.mxu0 0.0
      %2400 = vmatprep.subr.mxu0 0.0
      %2401 = vmatpush1.msra.mxu0 0.0
      %2402 = vmatprep.subr.mxu0 0.0
      %2403 = vmatpush1.msra.mxu0 0.0
      %2404 = vmatprep.subr.mxu0 0.0
      %2405 = vmatpush1.msra.mxu0 0.0
      %2406 = vmatprep.subr.mxu0 0.0
      %2407 = vmatpush1.msra.mxu0 0.0
      %2408 = vmatprep.subr.mxu0 0.0
      %2409 = vmatpush1.msra.mxu0 0.0
      %2410 = vmatprep.subr.mxu0 0.0
      %2411 = vmatpush1.msra.mxu0 0.0
      %2412 = vmatprep.subr.mxu0 0.0
      %2413 = vmatpush1.msra.mxu0 0.0
      %2414 = vmatprep.subr.mxu0 0.0
      %2415 = vmatpush1.msra.mxu0 0.0
      %2416 = vmatprep.subr.mxu0 0.0
      %2417 = vmatpush1.msra.mxu0 0.0
      %2418 = vmatprep.subr.mxu0 0.0
      %2419 = vmatpush1.msra.mxu0 0.0
      %2420 = vmatprep.subr.mxu0 0.0
      %2421 = vmatpush1.msra.mxu0 0.0
      %2422 = vmatprep.subr.mxu0 0.0
      %2423 = vmatpush1.msra.mxu0 0.0
      %2424 = vmatprep.subr.mxu0 0.0
      %2425 = vmatpush1.msra.mxu0 0.0
      %2426 = vmatprep.mubr.f32.mxu0 0.0
      %2427 = vmatmul.mubr.f32.gmra.mrb[0].mxu0 %v1239
      %v2428 = vpop.f32.mrb[0].mxu0
      %v2429 = vadd.f32 0.0, %v2428
      %v2430 = vpop.f32.mrb[0].mxu0
      %2431 = vmatprep.mubr.f32.mxu0 0.0
      %2432 = vmatmul.mubr.f32.gmra.mrb[0].mxu0 %v1242
      %v2433 = vpop.f32.mrb[0].mxu0
      %v2434 = vadd.f32 0.0, %v2433
      %v2435 = vpop.f32.mrb[0].mxu0
      %2436 = vdwg.mxu0
      %v2437 = vmul.f32 %v2429, %v1319
      %v2438 = vmul.f32 %v2434, %v1319
      %v2439 = vmul.f32 %v2360, %v2360
      %v2440 = vmul.f32 %v2361, %v2361
      %v2441 = vsub.f32 %v2437, %v2439
      %v2442 = vsub.f32 %v2438, %v2440
      %v2443 = vmax.f32 %v2441, 0.0
      %v2444 = vmax.f32 %v2442, 0.0
      %v2445 = vadd.f32 %v2443, 1e-05
      %v2446 = vadd.f32 %v2444, 1e-05
      %v2447 = vrsqrt.pop %v2445
      %v2448 = vrsqrt.pop %v2446
      %2450 = vset.pattern.permute.xlu0 0
      %2451 = vperm.xlu0 %2450, %v2360
      %v2452 = vpop.permute.xlu0 %2451
      %2455 = vset.pattern.permute.xlu0 0
      %2456 = vperm.xlu0 %2455, %v2361
      %v2457 = vpop.permute.xlu0 %2456
      %v2459 = vsub.f32 %v2257, %v2452
      %v2460 = vsub.f32 %v2258, %v2452
      %v2461 = vsub.f32 %v2259, %v2457
      %v2462 = vsub.f32 %v2260, %v2457
      %2464 = vset.pattern.permute.xlu0 0
      %2465 = vperm.xlu0 %2464, %v2447
      %v2466 = vpop.permute.xlu0 %2465
      %2469 = vset.pattern.permute.xlu0 0
      %2470 = vperm.xlu0 %2469, %v2448
      %v2471 = vpop.permute.xlu0 %2470
      %v2473 = vmul.f32 %v2459, %v2466
      %v2474 = vmul.f32 %v2460, %v2466
      %v2475 = vmul.f32 %v2461, %v2471
      %v2476 = vmul.f32 %v2462, %v2471
      %2478 = vset.pattern.permute.xlu0 0
      %2479 = vperm.xlu0 %2478, %v2261
      %v2480 = vpop.permute.xlu0 %2479
      %2483 = vset.pattern.permute.xlu0 0
      %2484 = vperm.xlu0 %2483, %v2262
      %v2485 = vpop.permute.xlu0 %2484
      %v2487 = vmul.f32 %v2473, %v2480
      %v2488 = vmul.f32 %v2474, %v2480
      %v2489 = vmul.f32 %v2475, %v2485
      %v2490 = vmul.f32 %v2476, %v2485
      %2492 = vset.pattern.permute.xlu0 0
      %2493 = vperm.xlu0 %2492, %v2263
      %v2494 = vpop.permute.xlu0 %2493
      %2497 = vset.pattern.permute.xlu0 0
      %2498 = vperm.xlu0 %2497, %v2264
      %v2499 = vpop.permute.xlu0 %2498
      %v2501 = vadd.f32 %v2487, %v2494
      %v2502 = vadd.f32 %v2488, %v2494
      %v2503 = vadd.f32 %v2489, %v2499
      %v2504 = vadd.f32 %v2490, %v2499
      %v2505 = vxor.u32 %v2501, 2147483648
      %v2506 = vxor.u32 %v2502, 2147483648
      %v2507 = vxor.u32 %v2503, 2147483648
      %v2508 = vxor.u32 %v2504, 2147483648
      %v2509 = vmul.f32 %v2505, 1.442695
      %v2510 = vpow.pop %v2509
      %v2511 = vmul.f32 %v2506, 1.442695
      %v2512 = vpow.pop %v2511
      %v2513 = vmul.f32 %v2507, 1.442695
      %v2514 = vpow.pop %v2513
      %v2515 = vmul.f32 %v2508, 1.442695
      %v2516 = vpow.pop %v2515
      %v2517 = vadd.f32 %v2510, 1.0
      %v2518 = vadd.f32 %v2512, 1.0
      %v2519 = vadd.f32 %v2514, 1.0
      %v2520 = vadd.f32 %v2516, 1.0
      %v2521 = vrcp.pop %v2517
      %v2522 = vmul.f32 1.0, %v2521
      %v2523 = vrcp.pop %v2518
      %v2524 = vmul.f32 1.0, %v2523
      %v2525 = vrcp.pop %v2519
      %v2526 = vmul.f32 1.0, %v2525
      %v2527 = vrcp.pop %v2520
      %v2528 = vmul.f32 1.0, %v2527
      %v2529 = vmul.f32 %v2501, %v2522
      %v2530 = vmul.f32 %v2502, %v2524
      %v2531 = vmul.f32 %v2503, %v2526
      %v2532 = vmul.f32 %v2504, %v2528
      %v2533 = vmul.f32 %v2529, %v1211
      %v2534 = vmul.f32 %v2530, %v1215
      %v2535 = vmul.f32 %v2531, %v1211
      %v2536 = vmul.f32 %v2532, %v1215
      %v2537 = vld [vmem:[%s408] sm:$0xff]
      %v2538 = vld [vmem:[%s408 + $0x8] sm:$0xff]
      %v2539 = vunpack.c.l.bf16 %v2537
      %v2540 = vunpack.c.h.bf16 %v2537
      %v2541 = vunpack.c.l.bf16 %v2538
      %v2542 = vunpack.c.h.bf16 %v2538
      %v2543 = vadd.f32 %v2533, %v2539
      %v2544 = vadd.f32 %v2534, %v2540
      %v2545 = vadd.f32 %v2535, %v2541
      %v2546 = vadd.f32 %v2536, %v2542
      %v2547 = vpack.c.bf16 %v2545, %v2543
      %v2548 = vpack.c.bf16 %v2546, %v2544
      %v2551 = vunpack.c.l.b16 %v2547
      %v2552 = vunpack.c.l.b16 %v2548
      %v2553 = vunpack.c.h.b16 %v2547
      %v2554 = vunpack.c.h.b16 %v2548
      %v2555 = vpack.c.b16 %v2552, %v2551
      %v2556 = vpack.c.b16 %v2554, %v2553
      %2559 = vst [vmem:[%s413] sm:$0xff] %v2555
      %2560 = vst [vmem:[%s413 + $0x8] sm:$0xff] %v2556
      %p2561 = scmp.lt.s32.totalorder %s23, 1
      %s2562 = scalar_select %p2561, %s23, 1
      %s2563 = smul.addr %s2562, 4
      %s2564 = smul.addr %s2563, 4
      %s2565 = scalar_lea.vmem %s12, %s2564
      // Predicated region
      $region69: #{decoder_stage.5} parent=67 // pred_check
        %p2566 = pneg %p298
      $region70: #{decoder_stage.5} parent=67 // pred_check_branch
        %2568 = sbr.rel (%p2566) target = $region72
      $region71: #{decoder_stage.5} parent=67 // pred_region
        _
      $region72: #{decoder_stage.5} parent=67 // pred_fallthru
        _
    $region68: #{decoder_stage.5} parent=5 // pred_fallthru
      _
    %p2569 = scmp.le.s32.totalorder 2, %s18
    // Predicated region
    $region73: #{decoder_stage.5} parent=5 // pred_check
      %p2570 = pneg %p2569
    $region74: #{decoder_stage.5} parent=5 // pred_check_branch
      %2572 = sbr.rel (%p2570) target = $region76
    $region75: #{decoder_stage.5} parent=5 // pred_region
      %s2573 = ssub.s32 %s18, 2
      // Predicated region
      $region77: #{decoder_stage.5} parent=75 // pred_check
        %p2574 = pneg %p304
      $region78: #{decoder_stage.5} parent=75 // pred_check_branch
        %2576 = sbr.rel (%p2574) target = $region80
      $region79: #{decoder_stage.5} parent=75 // pred_region
        %p2577 = scmp.lt.s32.totalorder %s24, 1
        %s2578 = scalar_select %p2577, %s24, 1
        %s2579 = smul.addr %s2578, 4
        %s2580 = smul.addr %s2579, 4
        %s2581 = scalar_lea.vmem %s12, %s2580
      $region80: #{decoder_stage.5} parent=75 // pred_fallthru
        _
    $region76: #{decoder_stage.5} parent=5 // pred_fallthru
      _
  $region6: #{decoder_stage.5} parent=0 // loop_footer
    %s22 = sadd.s32 1, %s18
  $region7: #{decoder_stage.5} parent=0 // loop_footer_branch
    %17 = sbr.rel target = $region3
  $region8: #{decoder_stage.5} parent=0 // loop_exit
    _

</llo_original>
